<compile_context>
chip_gen: v6e
topology: v6e:2x2x1
jax: 0.10.0
libtpu: 0.0.40
codegen_flags: <defaults>
</compile_context>

<pallas_src>
import jax
import jax.numpy as jnp
from jax.experimental import pallas as pl
from jax.experimental.pallas import tpu as pltpu

LANE = 128
SUBLANE = 8


def _round_up(x, m):
    return (x + m - 1) // m * m


def _pad2d(a, rows, cols):
    r, c = a.shape
    if r == rows and c == cols:
        return a
    return jnp.pad(a, ((0, rows - r), (0, cols - c)))


def _make_kernel(num_hidden, use_bf16):
    """Fused MLP kernel.

    Ref order: x, [w_i, b_i]*num_hidden, w_out_row, b_out, out
      x        : (TILE_B, D_in_pad)
      w_i      : (D_{i-1}_pad, D_i_pad)   (bf16 if use_bf16 else f32)
      b_i      : (1, D_i_pad)              f32  (previous block's BN already folded in)
      w_out_row: (1, D_last_pad)           f32
      b_out    : (1, 1)                    f32
      out      : (TILE_B, 1)               f32
    """
    prec = None if use_bf16 else jax.lax.Precision.HIGHEST

    def kernel(*refs):
        x_ref = refs[0]
        w_out_ref = refs[1 + 2 * num_hidden]
        b_out_ref = refs[2 + 2 * num_hidden]
        out_ref = refs[-1]

        h = x_ref[...]
        if use_bf16 and num_hidden > 0:
            h = h.astype(jnp.bfloat16)

        for i in range(num_hidden):
            w = refs[1 + 2 * i][...]
            b = refs[2 + 2 * i][...]
            # Linear (+ previous block's folded BatchNorm), f32 accumulation on the MXU.
            z = jnp.dot(h, w, preferred_element_type=jnp.float32, precision=prec) + b
            # ReLU
            h = jnp.maximum(z, 0.0)
            # Dropout(0.3): identity in eval mode.
            # TODO(synk): train-mode dropout (stochastic masking) intentionally omitted.
            if use_bf16 and i + 1 < num_hidden:
                h = h.astype(jnp.bfloat16)

        # Final Linear(D_last, 1): an N=1 matmul wastes the MXU, so do a VPU multiply
        # + XLU lane reduce instead (those slots are idle here).
        z = jnp.sum(h * w_out_ref[...], axis=-1, keepdims=True) + b_out_ref[...]
        out_ref[...] = jax.nn.sigmoid(z)

    return kernel


def _fold_and_pack(params, use_bf16, eps=1e-5):
    """Fold eval-mode BatchNorm1d into the *following* Linear, pad dims to lane multiples.

    BN after ReLU:  y = h*s + t  with  s = gamma/sqrt(var+eps),  t = beta - mean*s.
    Next layer:     (h*s + t) @ W + b  ==  h @ (s[:,None]*W) + (t @ W + b).
    Padded rows/cols are zero, so padded lanes carry exact zeros through ReLU and
    contribute nothing to later layers.
    """
    w_dtype = jnp.bfloat16 if use_bf16 else jnp.float32
    inputs = []
    carry_s = None
    carry_t = None
    for (w, b, gamma, beta, rmean, rvar) in params["hidden"]:
        w = w.astype(jnp.float32)
        b = b.astype(jnp.float32)
        if carry_s is not None:
            b = b + carry_t @ w            # uses the un-scaled W
            w = carry_s[:, None] * w
        din, dout = w.shape
        w_p = _pad2d(w, _round_up(din, LANE), _round_up(dout, LANE))
        b_p = _pad2d(b.reshape(1, -1), 1, _round_up(dout, LANE))
        inputs.append(w_p.astype(w_dtype))
        inputs.append(b_p)
        carry_s = gamma / jnp.sqrt(rvar + eps)
        carry_t = beta - rmean * carry_s

    w_out, b_out = params["out"]
    w_out = w_out.astype(jnp.float32)
    b_out = b_out.astype(jnp.float32)
    if carry_s is not None:
        b_out = b_out + carry_t @ w_out
        w_out = carry_s[:, None] * w_out
    d_last = w_out.shape[0]
    w_row = _pad2d(w_out.reshape(1, -1), 1, _round_up(d_last, LANE))  # (1, D_last_pad)
    inputs.append(w_row)
    inputs.append(b_out.reshape(1, 1))
    return inputs


def severity_estimator_forward(x, params, *, tile_b=512, use_bf16=False):
    """Runs the fused MLP kernel.

    Args:
      x: (B, input_dim) float32
      params: dict with keys
        'hidden': list of (W (Din,Dout), b (Dout,), gamma, beta, run_mean, run_var)
        'out':    (W_out (Dlast, 1), b_out (1,))
      tile_b: batch rows per grid step (rounded to a multiple of 8).
      use_bf16: cast activations/weights to bf16 for the matmuls (f32 accumulation).
    Returns:
      (B, 1) float32 in [0, 1]
    """
    B, D_in = x.shape
    num_hidden = len(params["hidden"])

    kernel_params = _fold_and_pack(params, use_bf16)
    d_in_pad = _round_up(D_in, LANE)

    # Batch tiling: TILE_B rows per grid step, multiple of 8 (f32 sublane tile).
    tile_b = max(SUBLANE, min(int(tile_b), _round_up(B, SUBLANE)))
    tile_b = _round_up(tile_b, SUBLANE)
    b_pad = _round_up(B, tile_b)
    if b_pad != B or d_in_pad != D_in:
        x = jnp.pad(x, ((0, b_pad - B), (0, d_in_pad - D_in)))
    grid = (b_pad // tile_b,)

    # x / out stream over the batch grid; parameters use constant index_maps so they
    # stay resident in VMEM (no per-step re-DMA).
    in_specs = [pl.BlockSpec((tile_b, d_in_pad), lambda i: (i, 0))]
    for p in kernel_params:
        in_specs.append(pl.BlockSpec(p.shape, lambda i: (0, 0)))
    out_specs = pl.BlockSpec((tile_b, 1), lambda i: (i, 0))

    # Advisory cost estimate for the XLA scheduler.
    flops = 0
    prev = d_in_pad
    for i in range(num_hidden):
        w = kernel_params[2 * i]
        flops += 2 * b_pad * int(w.shape[0]) * int(w.shape[1])
        prev = int(w.shape[1])
    flops += 2 * b_pad * prev  # final row-dot
    bytes_accessed = (int(x.size) * 4
                      + sum(int(p.size) * p.dtype.itemsize for p in kernel_params)
                      + b_pad * 4)

    out = pl.pallas_call(
        _make_kernel(num_hidden, use_bf16),
        grid=grid,
        in_specs=in_specs,
        out_specs=out_specs,
        out_shape=jax.ShapeDtypeStruct((b_pad, 1), jnp.float32),
        compiler_params=pltpu.CompilerParams(
            dimension_semantics=("parallel",)),
        cost_estimate=pl.CostEstimate(
            flops=int(flops), transcendentals=int(b_pad),
            bytes_accessed=int(bytes_accessed)),
    )(x, *kernel_params)
    return out[:B]


def init_params(key, input_dim, hidden_dims):
    """Deterministic synthetic parameter init (no checkpoint load)."""
    params = {"hidden": [], "out": None}
    prev = input_dim
    for h in hidden_dims:
        key, kw, kb, kg, kbe, km, kv = jax.random.split(key, 7)
        w = jax.random.normal(kw, (prev, h), jnp.float32) * (1.0 / jnp.sqrt(prev))
        b = jax.random.normal(kb, (h,), jnp.float32) * 0.05
        gamma = 1.0 + 0.1 * jax.random.normal(kg, (h,), jnp.float32)
        beta = 0.1 * jax.random.normal(kbe, (h,), jnp.float32)
        rmean = 0.1 * jax.random.normal(km, (h,), jnp.float32)
        rvar = jax.random.uniform(kv, (h,), jnp.float32, 0.5, 1.5)
        params["hidden"].append((w, b, gamma, beta, rmean, rvar))
        prev = h
    key, kw, kb = jax.random.split(key, 3)
    w_out = jax.random.normal(kw, (prev, 1), jnp.float32) * (1.0 / jnp.sqrt(prev))
    b_out = jax.random.normal(kb, (1,), jnp.float32) * 0.05
    params["out"] = (w_out, b_out)
    return params


def reference_forward(x, params):
    """Pure-JAX reference (same eval-mode semantics), full-f32 matmuls."""
    eps = 1e-5
    hi = jax.lax.Precision.HIGHEST
    h = x
    for (w, b, gamma, beta, rmean, rvar) in params["hidden"]:
        h = jnp.maximum(jnp.dot(h, w, precision=hi) + b, 0.0)
        h = (h - rmean) / jnp.sqrt(rvar + eps) * gamma + beta
    z = jnp.dot(h, params["out"][0], precision=hi) + params["out"][1]
    return jax.nn.sigmoid(z)


if __name__ == "__main__":
    key = jax.random.PRNGKey(0)

    # Case 1: lane-friendly dims (multiples of 128), single batch tile.
    batch, input_dim, hidden_dims = 64, 128, [128, 128, 128]
    key, kx, kp = jax.random.split(key, 3)
    x = jax.random.normal(kx, (batch, input_dim), jnp.float32)
    params = init_params(kp, input_dim, hidden_dims)
    ref = reference_forward(x, params)

    out = jax.block_until_ready(severity_estimator_forward(x, params))
    assert out.shape == (batch, 1), out.shape
    assert jnp.allclose(out, ref, atol=1e-4, rtol=1e-4), float(jnp.max(jnp.abs(out - ref)))

    # bf16 MXU path (f32 accumulation) — looser tolerance vs. the f32 reference.
    out_bf16 = jax.block_until_ready(
        severity_estimator_forward(x, params, use_bf16=True))
    assert out_bf16.shape == (batch, 1), out_bf16.shape
    assert jnp.allclose(out_bf16, ref, atol=5e-2), float(jnp.max(jnp.abs(out_bf16 - ref)))

    # Case 2: ragged batch (padding path), multi-tile grid, non-128 feature dims
    # (exercises the lane-padding of input/hidden/last dims).
    batch2, input_dim2, hidden_dims2 = 200, 96, [64, 48]
    key, kx2, kp2 = jax.random.split(key, 3)
    x2 = jax.random.normal(kx2, (batch2, input_dim2), jnp.float32)
    params2 = init_params(kp2, input_dim2, hidden_dims2)
    out2 = jax.block_until_ready(
        severity_estimator_forward(x2, params2, tile_b=64))
    ref2 = reference_forward(x2, params2)
    assert out2.shape == (batch2, 1), out2.shape
    assert jnp.allclose(out2, ref2, atol=1e-4, rtol=1e-4), float(jnp.max(jnp.abs(out2 - ref2)))

    print("KERNEL_OK")
</pallas_src>

<mosaic_0001>
module attributes {stable_mosaic.version = 11 : i64} {
  func.func @kernel(%arg0: i32, %arg1: memref<64x128xf32, #tpu.memory_space<vmem>>, %arg2: memref<128x128xf32, #tpu.memory_space<vmem>>, %arg3: memref<1x128xf32, #tpu.memory_space<vmem>>, %arg4: memref<128x128xf32, #tpu.memory_space<vmem>>, %arg5: memref<1x128xf32, #tpu.memory_space<vmem>>, %arg6: memref<128x128xf32, #tpu.memory_space<vmem>>, %arg7: memref<1x128xf32, #tpu.memory_space<vmem>>, %arg8: memref<1x128xf32, #tpu.memory_space<vmem>>, %arg9: memref<1x1xf32, #tpu.memory_space<vmem>>, %arg10: memref<64x1xf32, #tpu.memory_space<vmem>>) attributes {dimension_semantics = [#tpu.dimension_semantics<parallel>], iteration_bounds = array<i64: 1>, scalar_prefetch = 0 : i64, scratch_operands = 0 : i64, tpu.core_type = #tpu.core_type<tc>, window_params = [{transform_indices = @transform_0, window_bounds = array<i64: 64, 128>}, {pipeline_mode = #tpu.pipeline_mode<synchronous>, transform_indices = @transform_1, window_bounds = array<i64: 128, 128>}, {pipeline_mode = #tpu.pipeline_mode<synchronous>, transform_indices = @transform_2, window_bounds = array<i64: 1, 128>}, {pipeline_mode = #tpu.pipeline_mode<synchronous>, transform_indices = @transform_3, window_bounds = array<i64: 128, 128>}, {pipeline_mode = #tpu.pipeline_mode<synchronous>, transform_indices = @transform_4, window_bounds = array<i64: 1, 128>}, {pipeline_mode = #tpu.pipeline_mode<synchronous>, transform_indices = @transform_5, window_bounds = array<i64: 128, 128>}, {pipeline_mode = #tpu.pipeline_mode<synchronous>, transform_indices = @transform_6, window_bounds = array<i64: 1, 128>}, {pipeline_mode = #tpu.pipeline_mode<synchronous>, transform_indices = @transform_7, window_bounds = array<i64: 1, 128>}, {pipeline_mode = #tpu.pipeline_mode<synchronous>, transform_indices = @transform_8, window_bounds = array<i64: 1, 1>}, {transform_indices = @transform_9, window_bounds = array<i64: 64, 1>}]} {
    %c0 = arith.constant 0 : index
    %c0_0 = arith.constant 0 : index
    %0 = vector.load %arg1[%c0, %c0_0] : memref<64x128xf32, #tpu.memory_space<vmem>>, vector<64x128xf32>
    %c0_1 = arith.constant 0 : index
    %c0_2 = arith.constant 0 : index
    %1 = vector.load %arg2[%c0_1, %c0_2] : memref<128x128xf32, #tpu.memory_space<vmem>>, vector<128x128xf32>
    %c0_3 = arith.constant 0 : index
    %c0_4 = arith.constant 0 : index
    %2 = vector.load %arg3[%c0_3, %c0_4] : memref<1x128xf32, #tpu.memory_space<vmem>>, vector<1x128xf32>
    %cst = arith.constant dense<0.000000e+00> : vector<64x128xf32>
    %3 = tpu.matmul %0, %1, %cst {dimension_numbers = #tpu.dot_dimension_numbers<[1], [0], [0], [1], [0, 0, 1, 1], [], []>, precision = #tpu.contract_precision<fp32>} : vector<64x128xf32>, vector<128x128xf32>, vector<64x128xf32> -> vector<64x128xf32>
    %4 = vector.broadcast %2 : vector<1x128xf32> to vector<64x128xf32>
    %5 = arith.addf %3, %4 : vector<64x128xf32>
    %cst_5 = arith.constant 0.000000e+00 : f32
    %6 = vector.broadcast %cst_5 : f32 to vector<64x128xf32>
    %7 = arith.maximumf %5, %6 : vector<64x128xf32>
    %c0_6 = arith.constant 0 : index
    %c0_7 = arith.constant 0 : index
    %8 = vector.load %arg4[%c0_6, %c0_7] : memref<128x128xf32, #tpu.memory_space<vmem>>, vector<128x128xf32>
    %c0_8 = arith.constant 0 : index
    %c0_9 = arith.constant 0 : index
    %9 = vector.load %arg5[%c0_8, %c0_9] : memref<1x128xf32, #tpu.memory_space<vmem>>, vector<1x128xf32>
    %cst_10 = arith.constant dense<0.000000e+00> : vector<64x128xf32>
    %10 = tpu.matmul %7, %8, %cst_10 {dimension_numbers = #tpu.dot_dimension_numbers<[1], [0], [0], [1], [0, 0, 1, 1], [], []>, precision = #tpu.contract_precision<fp32>} : vector<64x128xf32>, vector<128x128xf32>, vector<64x128xf32> -> vector<64x128xf32>
    %11 = vector.broadcast %9 : vector<1x128xf32> to vector<64x128xf32>
    %12 = arith.addf %10, %11 : vector<64x128xf32>
    %cst_11 = arith.constant 0.000000e+00 : f32
    %13 = vector.broadcast %cst_11 : f32 to vector<64x128xf32>
    %14 = arith.maximumf %12, %13 : vector<64x128xf32>
    %c0_12 = arith.constant 0 : index
    %c0_13 = arith.constant 0 : index
    %15 = vector.load %arg6[%c0_12, %c0_13] : memref<128x128xf32, #tpu.memory_space<vmem>>, vector<128x128xf32>
    %c0_14 = arith.constant 0 : index
    %c0_15 = arith.constant 0 : index
    %16 = vector.load %arg7[%c0_14, %c0_15] : memref<1x128xf32, #tpu.memory_space<vmem>>, vector<1x128xf32>
    %cst_16 = arith.constant dense<0.000000e+00> : vector<64x128xf32>
    %17 = tpu.matmul %14, %15, %cst_16 {dimension_numbers = #tpu.dot_dimension_numbers<[1], [0], [0], [1], [0, 0, 1, 1], [], []>, precision = #tpu.contract_precision<fp32>} : vector<64x128xf32>, vector<128x128xf32>, vector<64x128xf32> -> vector<64x128xf32>
    %18 = vector.broadcast %16 : vector<1x128xf32> to vector<64x128xf32>
    %19 = arith.addf %17, %18 : vector<64x128xf32>
    %cst_17 = arith.constant 0.000000e+00 : f32
    %20 = vector.broadcast %cst_17 : f32 to vector<64x128xf32>
    %21 = arith.maximumf %19, %20 : vector<64x128xf32>
    %c0_18 = arith.constant 0 : index
    %c0_19 = arith.constant 0 : index
    %22 = vector.load %arg8[%c0_18, %c0_19] : memref<1x128xf32, #tpu.memory_space<vmem>>, vector<1x128xf32>
    %23 = vector.broadcast %22 : vector<1x128xf32> to vector<64x128xf32>
    %24 = arith.mulf %21, %23 : vector<64x128xf32>
    %cst_20 = arith.constant dense<0.000000e+00> : vector<64xf32>
    %25 = vector.multi_reduction <add>, %24, %cst_20 [1] : vector<64x128xf32> to vector<64xf32>
    %26 = vector.shape_cast %25 : vector<64xf32> to vector<64x1xf32>
    %c0_21 = arith.constant 0 : index
    %c0_22 = arith.constant 0 : index
    %27 = vector.load %arg9[%c0_21, %c0_22] : memref<1x1xf32, #tpu.memory_space<vmem>>, vector<1x1xf32>
    %28 = vector.broadcast %27 : vector<1x1xf32> to vector<64x1xf32>
    %29 = arith.addf %26, %28 : vector<64x1xf32>
    %30 = arith.negf %29 : vector<64x1xf32>
    %31 = math.exp %30 : vector<64x1xf32>
    %cst_23 = arith.constant 1.000000e+00 : f32
    %32 = vector.broadcast %cst_23 : f32 to vector<64x1xf32>
    %33 = arith.addf %32, %31 : vector<64x1xf32>
    %34 = arith.divf %32, %33 : vector<64x1xf32>
    %c0_24 = arith.constant 0 : index
    %c0_25 = arith.constant 0 : index
    %35 = vector.load %arg10[%c0_24, %c0_25] : memref<64x1xf32, #tpu.memory_space<vmem>>, vector<64x1xf32>
    tpu.vector_store %arg10[%c0_24, %c0_25], %34 {strides = array<i32>} : memref<64x1xf32, #tpu.memory_space<vmem>>, vector<64x1xf32>,
    return
  }
  func.func @transform_0(%arg0: i32) -> (i32, i32) {
    %c0_i32 = arith.constant 0 : i32
    %c0_i32_0 = arith.constant 0 : i32
    return %arg0, %c0_i32 : i32, i32
  }
  func.func @transform_1(%arg0: i32) -> (i32, i32) {
    %c0_i32 = arith.constant 0 : i32
    %c0_i32_0 = arith.constant 0 : i32
    %c0_i32_1 = arith.constant 0 : i32
    return %c0_i32, %c0_i32_0 : i32, i32
  }
  func.func @transform_2(%arg0: i32) -> (i32, i32) {
    %c0_i32 = arith.constant 0 : i32
    %c0_i32_0 = arith.constant 0 : i32
    %c0_i32_1 = arith.constant 0 : i32
    return %c0_i32, %c0_i32_0 : i32, i32
  }
  func.func @transform_3(%arg0: i32) -> (i32, i32) {
    %c0_i32 = arith.constant 0 : i32
    %c0_i32_0 = arith.constant 0 : i32
    %c0_i32_1 = arith.constant 0 : i32
    return %c0_i32, %c0_i32_0 : i32, i32
  }
  func.func @transform_4(%arg0: i32) -> (i32, i32) {
    %c0_i32 = arith.constant 0 : i32
    %c0_i32_0 = arith.constant 0 : i32
    %c0_i32_1 = arith.constant 0 : i32
    return %c0_i32, %c0_i32_0 : i32, i32
  }
  func.func @transform_5(%arg0: i32) -> (i32, i32) {
    %c0_i32 = arith.constant 0 : i32
    %c0_i32_0 = arith.constant 0 : i32
    %c0_i32_1 = arith.constant 0 : i32
    return %c0_i32, %c0_i32_0 : i32, i32
  }
  func.func @transform_6(%arg0: i32) -> (i32, i32) {
    %c0_i32 = arith.constant 0 : i32
    %c0_i32_0 = arith.constant 0 : i32
    %c0_i32_1 = arith.constant 0 : i32
    return %c0_i32, %c0_i32_0 : i32, i32
  }
  func.func @transform_7(%arg0: i32) -> (i32, i32) {
    %c0_i32 = arith.constant 0 : i32
    %c0_i32_0 = arith.constant 0 : i32
    %c0_i32_1 = arith.constant 0 : i32
    return %c0_i32, %c0_i32_0 : i32, i32
  }
  func.func @transform_8(%arg0: i32) -> (i32, i32) {
    %c0_i32 = arith.constant 0 : i32
    %c0_i32_0 = arith.constant 0 : i32
    %c0_i32_1 = arith.constant 0 : i32
    return %c0_i32, %c0_i32_0 : i32, i32
  }
  func.func @transform_9(%arg0: i32) -> (i32, i32) {
    %c0_i32 = arith.constant 0 : i32
    %c0_i32_0 = arith.constant 0 : i32
    return %arg0, %c0_i32 : i32, i32
  }
}

</mosaic_0001>

<llo_original>
// kernel: tpu_custom_call.1
$region0: #{tpu_custom_call.1}
  #allocation0 [shape = 'u32[]', space=smem, size = 0x4, offset = 0x4, fixed_abs, tag = 'smem constant byte address 0x4 - core index']
  #allocation1 [shape = 'u32[144,128]{1,0:T(1,128)}', space=vmem, size = 0x12000, scoped, tag = 'internal scratch']
  #allocation2 [shape = 'f32[1,1]{1,0:T(1,128)S(1)}', space=vmem, size = 0x200, scoped, tag = 'scoped memory for tpu_custom_call.1']
  %s0 = inlined_call_operand.hbm [shape: f32[64,128], index: 0, kind: input, shape index: {}]
  %s1 = inlined_call_operand.hbm [shape: f32[128,128], index: 1, kind: input, shape index: {}]
  %s2 = inlined_call_operand.vmem [shape: f32[1,128], index: 2, kind: input, shape index: {}]
  %s3 = inlined_call_operand.hbm [shape: f32[128,128], index: 3, kind: input, shape index: {}]
  %s4 = inlined_call_operand.vmem [shape: f32[1,128], index: 4, kind: input, shape index: {}]
  %s5 = inlined_call_operand.hbm [shape: f32[128,128], index: 5, kind: input, shape index: {}]
  %s6 = inlined_call_operand.vmem [shape: f32[1,128], index: 6, kind: input, shape index: {}]
  %s7 = inlined_call_operand.vmem [shape: f32[1,128], index: 7, kind: input, shape index: {}]
  %s8 = inlined_call_operand.<no memory space> [shape: f32[1,1], index: 8, kind: input, shape index: {}]
  %s9 = inlined_call_operand.vmem [shape: f32[64,1], index: 9, kind: output, shape index: {}]
  %s10 = sld [smem:[#allocation0]]
  $region62: #{tpu_custom_call.1} parent=0
    _
  %s12 = ssub.s32 1, %s10
  %s13 = scalar_select 0, %s12, %s10
  %v14 = vstv %s8
  %15 = vst [vmem:[#allocation2] sm:$0x1] %v14
  $region1: #{tpu_custom_call.1} parent=0
    #allocation3 [shape = 'u8[32768]{0}', space=vmem, size = 0x8000, scoped, tag = 'input window, operand 0, single buffered']
    #allocation4 [shape = 's32[1]{0}', space=sflag, size = 0x4, scoped, tag = 'scoped memory for tpu_custom_call.1']
    #allocation5 [shape = 'u8[65536]{0}', space=vmem, size = 0x10000, scoped, tag = 'input window, operand 1, single buffered']
    #allocation6 [shape = 's32[1]{0}', space=sflag, size = 0x4, scoped, tag = 'scoped memory for tpu_custom_call.1']
    #allocation7 [shape = 'u8[65536]{0}', space=vmem, size = 0x10000, scoped, tag = 'input window, operand 3, single buffered']
    #allocation8 [shape = 'u8[65536]{0}', space=vmem, size = 0x10000, scoped, tag = 'input window, operand 5, single buffered']
    #allocation9 [shape = 's32[1]{0}', space=sflag, size = 0x4, scoped, tag = 'scoped memory for tpu_custom_call.1']
    %16 = vsyncpa [#allocation4], 0
    %17 = vsyncpa [#allocation6], 0
    %18 = vsyncpa [#allocation9], 0
    // Predicated region
    $region2: #{tpu_custom_call.1} parent=1 // pred_check
      _
    $region3: #{tpu_custom_call.1} parent=1 // pred_check_branch
      %20 = sbr.rel (0) target = $region5
    $region4: #{tpu_custom_call.1} parent=1 // pred_region
      %s22 = ssub.s32 1024, 1024
      %23 = vsyncadd [#allocation4], %s22
      %s24 = sshll.u32 [#allocation3], 4
      %s25 = int_to_ptr.vmem [resolvable:$true] %s24
      %30 = dma.hbm_to_vmem [thread:$0]  %s0, 1024, %s25, [#allocation4], 128, 128, 8
    $region5: #{tpu_custom_call.1} parent=1 // pred_fallthru
      _
    // Predicated region
    $region6: #{tpu_custom_call.1} parent=1 // pred_check
      _
    $region7: #{tpu_custom_call.1} parent=1 // pred_check_branch
      %32 = sbr.rel (0) target = $region9
    $region8: #{tpu_custom_call.1} parent=1 // pred_region
      %s34 = ssub.s32 2048, 2048
      %35 = vsyncadd [#allocation6], %s34
      %s36 = sshll.u32 [#allocation5], 4
      %s37 = int_to_ptr.vmem [resolvable:$true] %s36
      %42 = dma.hbm_to_vmem [thread:$0]  %s1, 2048, %s37, [#allocation6], 128, 128, 8
    $region9: #{tpu_custom_call.1} parent=1 // pred_fallthru
      _
    // Predicated region
    $region10: #{tpu_custom_call.1} parent=1 // pred_check
      _
    $region11: #{tpu_custom_call.1} parent=1 // pred_check_branch
      %44 = sbr.rel (0) target = $region13
    $region12: #{tpu_custom_call.1} parent=1 // pred_region
      _
    $region13: #{tpu_custom_call.1} parent=1 // pred_fallthru
      _
    // Predicated region
    $region14: #{tpu_custom_call.1} parent=1 // pred_check
      _
    $region15: #{tpu_custom_call.1} parent=1 // pred_check_branch
      %46 = sbr.rel (0) target = $region17
    $region16: #{tpu_custom_call.1} parent=1 // pred_region
      %s48 = ssub.s32 2048, 2048
      %49 = vsyncadd [#allocation6], %s48
      %s50 = sshll.u32 [#allocation7], 4
      %s51 = int_to_ptr.vmem [resolvable:$true] %s50
      %56 = dma.hbm_to_vmem [thread:$0]  %s3, 2048, %s51, [#allocation6], 128, 128, 8
    $region17: #{tpu_custom_call.1} parent=1 // pred_fallthru
      _
    // Predicated region
    $region18: #{tpu_custom_call.1} parent=1 // pred_check
      _
    $region19: #{tpu_custom_call.1} parent=1 // pred_check_branch
      %58 = sbr.rel (0) target = $region21
    $region20: #{tpu_custom_call.1} parent=1 // pred_region
      _
    $region21: #{tpu_custom_call.1} parent=1 // pred_fallthru
      _
    // Predicated region
    $region22: #{tpu_custom_call.1} parent=1 // pred_check
      _
    $region23: #{tpu_custom_call.1} parent=1 // pred_check_branch
      %60 = sbr.rel (0) target = $region25
    $region24: #{tpu_custom_call.1} parent=1 // pred_region
      %s62 = ssub.s32 2048, 2048
      %63 = vsyncadd [#allocation9], %s62
      %s64 = sshll.u32 [#allocation8], 4
      %s65 = int_to_ptr.vmem [resolvable:$true] %s64
      %70 = dma.hbm_to_vmem [thread:$0]  %s5, 2048, %s65, [#allocation9], 128, 128, 8
    $region25: #{tpu_custom_call.1} parent=1 // pred_fallthru
      _
    // Predicated region
    $region26: #{tpu_custom_call.1} parent=1 // pred_check
      _
    $region27: #{tpu_custom_call.1} parent=1 // pred_check_branch
      %72 = sbr.rel (0) target = $region29
    $region28: #{tpu_custom_call.1} parent=1 // pred_region
      _
    $region29: #{tpu_custom_call.1} parent=1 // pred_fallthru
      _
    // Predicated region
    $region30: #{tpu_custom_call.1} parent=1 // pred_check
      _
    $region31: #{tpu_custom_call.1} parent=1 // pred_check_branch
      %74 = sbr.rel (0) target = $region33
    $region32: #{tpu_custom_call.1} parent=1 // pred_region
      _
    $region33: #{tpu_custom_call.1} parent=1 // pred_fallthru
      _
    // Predicated region
    $region34: #{tpu_custom_call.1} parent=1 // pred_check
      _
    $region35: #{tpu_custom_call.1} parent=1 // pred_check_branch
      %76 = sbr.rel (0) target = $region37
    $region36: #{tpu_custom_call.1} parent=1 // pred_region
      _
    $region37: #{tpu_custom_call.1} parent=1 // pred_fallthru
      _
    // Predicated region
    $region38: #{tpu_custom_call.1} parent=1 // pred_check
      _
    $region39: #{tpu_custom_call.1} parent=1 // pred_check_branch
      %78 = sbr.rel (0) target = $region41
    $region40: #{tpu_custom_call.1} parent=1 // pred_region
      %79 = dma.done [#allocation4], 1024
    $region41: #{tpu_custom_call.1} parent=1 // pred_fallthru
      _
    // Predicated region
    $region42: #{tpu_custom_call.1} parent=1 // pred_check
      _
    $region43: #{tpu_custom_call.1} parent=1 // pred_check_branch
      %81 = sbr.rel (0) target = $region45
    $region44: #{tpu_custom_call.1} parent=1 // pred_region
      %82 = dma.done [#allocation6], 2048
    $region45: #{tpu_custom_call.1} parent=1 // pred_fallthru
      _
    // Predicated region
    $region46: #{tpu_custom_call.1} parent=1 // pred_check
      _
    $region47: #{tpu_custom_call.1} parent=1 // pred_check_branch
      %84 = sbr.rel (0) target = $region49
    $region48: #{tpu_custom_call.1} parent=1 // pred_region
      %85 = dma.done [#allocation6], 2048
    $region49: #{tpu_custom_call.1} parent=1 // pred_fallthru
      _
    // Predicated region
    $region50: #{tpu_custom_call.1} parent=1 // pred_check
      _
    $region51: #{tpu_custom_call.1} parent=1 // pred_check_branch
      %87 = sbr.rel (0) target = $region53
    $region52: #{tpu_custom_call.1} parent=1 // pred_region
      %88 = dma.done [#allocation9], 2048
    $region53: #{tpu_custom_call.1} parent=1 // pred_fallthru
      _
    %v89 = vld [vmem:[#allocation3] sm:$0xff]
    %v90 = vld [vmem:[#allocation3 + $0x8] sm:$0xff]
    %v91 = vld [vmem:[#allocation3 + $0x10] sm:$0xff]
    %v92 = vld [vmem:[#allocation3 + $0x18] sm:$0xff]
    %v93 = vld [vmem:[#allocation3 + $0x20] sm:$0xff]
    %v94 = vld [vmem:[#allocation3 + $0x28] sm:$0xff]
    %v95 = vld [vmem:[#allocation3 + $0x30] sm:$0xff]
    %v96 = vld [vmem:[#allocation3 + $0x38] sm:$0xff]
    %v97 = vld [vmem:[#allocation5] sm:$0xff]
    %v98 = vld [vmem:[#allocation5 + $0x8] sm:$0xff]
    %v99 = vld [vmem:[#allocation5 + $0x10] sm:$0xff]
    %v100 = vld [vmem:[#allocation5 + $0x18] sm:$0xff]
    %v101 = vld [vmem:[#allocation5 + $0x20] sm:$0xff]
    %v102 = vld [vmem:[#allocation5 + $0x28] sm:$0xff]
    %v103 = vld [vmem:[#allocation5 + $0x30] sm:$0xff]
    %v104 = vld [vmem:[#allocation5 + $0x38] sm:$0xff]
    %v105 = vld [vmem:[#allocation5 + $0x40] sm:$0xff]
    %v106 = vld [vmem:[#allocation5 + $0x48] sm:$0xff]
    %v107 = vld [vmem:[#allocation5 + $0x50] sm:$0xff]
    %v108 = vld [vmem:[#allocation5 + $0x58] sm:$0xff]
    %v109 = vld [vmem:[#allocation5 + $0x60] sm:$0xff]
    %v110 = vld [vmem:[#allocation5 + $0x68] sm:$0xff]
    %v111 = vld [vmem:[#allocation5 + $0x70] sm:$0xff]
    %v112 = vld [vmem:[#allocation5 + $0x78] sm:$0xff]
    %v113 = vld [vmem:[%s2] sm:$0x1]
    %v115 = vlaneseq
    %v116 = vshrl.u32 %v115, 7
    %v117 = vsub.s32 0, %v116
    %v118 = vrot.slane %v113, %v117
    %120 = vmatprep.subr.mxu0 0.0
    %v121 = vand.u32 %v112, 4294901760
    %122 = vmatpush1.msra.mxu0 %v121
    %123 = vmatprep.subr.mxu0 0.0
    %v124 = vand.u32 %v111, 4294901760
    %125 = vmatpush1.msra.mxu0 %v124
    %126 = vmatprep.subr.mxu0 0.0
    %v127 = vand.u32 %v110, 4294901760
    %128 = vmatpush1.msra.mxu0 %v127
    %129 = vmatprep.subr.mxu0 0.0
    %v130 = vand.u32 %v109, 4294901760
    %131 = vmatpush1.msra.mxu0 %v130
    %132 = vmatprep.subr.mxu0 0.0
    %v133 = vand.u32 %v108, 4294901760
    %134 = vmatpush1.msra.mxu0 %v133
    %135 = vmatprep.subr.mxu0 0.0
    %v136 = vand.u32 %v107, 4294901760
    %137 = vmatpush1.msra.mxu0 %v136
    %138 = vmatprep.subr.mxu0 0.0
    %v139 = vand.u32 %v106, 4294901760
    %140 = vmatpush1.msra.mxu0 %v139
    %141 = vmatprep.subr.mxu0 0.0
    %v142 = vand.u32 %v105, 4294901760
    %143 = vmatpush1.msra.mxu0 %v142
    %144 = vmatprep.subr.mxu0 0.0
    %v145 = vand.u32 %v104, 4294901760
    %146 = vmatpush1.msra.mxu0 %v145
    %147 = vmatprep.subr.mxu0 0.0
    %v148 = vand.u32 %v103, 4294901760
    %149 = vmatpush1.msra.mxu0 %v148
    %150 = vmatprep.subr.mxu0 0.0
    %v151 = vand.u32 %v102, 4294901760
    %152 = vmatpush1.msra.mxu0 %v151
    %153 = vmatprep.subr.mxu0 0.0
    %v154 = vand.u32 %v101, 4294901760
    %155 = vmatpush1.msra.mxu0 %v154
    %156 = vmatprep.subr.mxu0 0.0
    %v157 = vand.u32 %v100, 4294901760
    %158 = vmatpush1.msra.mxu0 %v157
    %159 = vmatprep.subr.mxu0 0.0
    %v160 = vand.u32 %v99, 4294901760
    %161 = vmatpush1.msra.mxu0 %v160
    %162 = vmatprep.subr.mxu0 0.0
    %v163 = vand.u32 %v98, 4294901760
    %164 = vmatpush1.msra.mxu0 %v163
    %165 = vmatprep.subr.mxu0 0.0
    %v166 = vand.u32 %v97, 4294901760
    %167 = vmatpush1.msra.mxu0 %v166
    %168 = vmatprep.subr.mxu0 0.0
    %169 = vmatpush2.msra.mxu0 0.0
    %170 = vmatprep.subr.mxu0 0.0
    %171 = vmatpush2.msra.mxu0 0.0
    %172 = vmatprep.subr.mxu0 0.0
    %173 = vmatpush2.msra.mxu0 0.0
    %174 = vmatprep.subr.mxu0 0.0
    %175 = vmatpush2.msra.mxu0 0.0
    %176 = vmatprep.subr.mxu0 0.0
    %177 = vmatpush2.msra.mxu0 0.0
    %178 = vmatprep.subr.mxu0 0.0
    %179 = vmatpush2.msra.mxu0 0.0
    %180 = vmatprep.subr.mxu0 0.0
    %181 = vmatpush2.msra.mxu0 0.0
    %182 = vmatprep.subr.mxu0 0.0
    %183 = vmatpush2.msra.mxu0 0.0
    %184 = vmatprep.subr.mxu0 0.0
    %185 = vmatpush2.msra.mxu0 0.0
    %186 = vmatprep.subr.mxu0 0.0
    %187 = vmatpush2.msra.mxu0 0.0
    %188 = vmatprep.subr.mxu0 0.0
    %189 = vmatpush2.msra.mxu0 0.0
    %190 = vmatprep.subr.mxu0 0.0
    %191 = vmatpush2.msra.mxu0 0.0
    %192 = vmatprep.subr.mxu0 0.0
    %193 = vmatpush2.msra.mxu0 0.0
    %194 = vmatprep.subr.mxu0 0.0
    %195 = vmatpush2.msra.mxu0 0.0
    %196 = vmatprep.subr.mxu0 0.0
    %197 = vmatpush2.msra.mxu0 0.0
    %198 = vmatprep.subr.mxu0 0.0
    %199 = vmatpush2.msra.mxu0 0.0
    %200 = vmatprep.mubr.f32.mxu0 0.0
    %v201 = vand.u32 %v89, 4294901760
    %v202 = vsub.f32 %v89, %v201
    %v203 = vand.u32 %v202, 4294901760
    %v204 = vsub.f32 %v202, %v203
    %v205 = vand.u32 %v204, 4294901760
    %206 = vmatmul.mubr.f32.gmra.mxu0 %v205
    %v207 = vpop.f32.mrf.mxu0
    %v208 = vadd.f32 %v118, %v207
    %v209 = vpop.f32.mrf.mxu0
    %210 = vmatprep.mubr.f32.mxu0 0.0
    %v211 = vand.u32 %v90, 4294901760
    %v212 = vsub.f32 %v90, %v211
    %v213 = vand.u32 %v212, 4294901760
    %v214 = vsub.f32 %v212, %v213
    %v215 = vand.u32 %v214, 4294901760
    %216 = vmatmul.mubr.f32.gmra.mxu0 %v215
    %v217 = vpop.f32.mrf.mxu0
    %v218 = vadd.f32 %v118, %v217
    %v219 = vpop.f32.mrf.mxu0
    %220 = vmatprep.mubr.f32.mxu0 0.0
    %v221 = vand.u32 %v91, 4294901760
    %v222 = vsub.f32 %v91, %v221
    %v223 = vand.u32 %v222, 4294901760
    %v224 = vsub.f32 %v222, %v223
    %v225 = vand.u32 %v224, 4294901760
    %226 = vmatmul.mubr.f32.gmra.mxu0 %v225
    %v227 = vpop.f32.mrf.mxu0
    %v228 = vadd.f32 %v118, %v227
    %v229 = vpop.f32.mrf.mxu0
    %230 = vmatprep.mubr.f32.mxu0 0.0
    %v231 = vand.u32 %v92, 4294901760
    %v232 = vsub.f32 %v92, %v231
    %v233 = vand.u32 %v232, 4294901760
    %v234 = vsub.f32 %v232, %v233
    %v235 = vand.u32 %v234, 4294901760
    %236 = vmatmul.mubr.f32.gmra.mxu0 %v235
    %v237 = vpop.f32.mrf.mxu0
    %v238 = vadd.f32 %v118, %v237
    %v239 = vpop.f32.mrf.mxu0
    %240 = vmatprep.mubr.f32.mxu0 0.0
    %v241 = vand.u32 %v93, 4294901760
    %v242 = vsub.f32 %v93, %v241
    %v243 = vand.u32 %v242, 4294901760
    %v244 = vsub.f32 %v242, %v243
    %v245 = vand.u32 %v244, 4294901760
    %246 = vmatmul.mubr.f32.gmra.mxu0 %v245
    %v247 = vpop.f32.mrf.mxu0
    %v248 = vadd.f32 %v118, %v247
    %v249 = vpop.f32.mrf.mxu0
    %250 = vmatprep.mubr.f32.mxu0 0.0
    %v251 = vand.u32 %v94, 4294901760
    %v252 = vsub.f32 %v94, %v251
    %v253 = vand.u32 %v252, 4294901760
    %v254 = vsub.f32 %v252, %v253
    %v255 = vand.u32 %v254, 4294901760
    %256 = vmatmul.mubr.f32.gmra.mxu0 %v255
    %v257 = vpop.f32.mrf.mxu0
    %v258 = vadd.f32 %v118, %v257
    %v259 = vpop.f32.mrf.mxu0
    %260 = vmatprep.mubr.f32.mxu0 0.0
    %v261 = vand.u32 %v95, 4294901760
    %v262 = vsub.f32 %v95, %v261
    %v263 = vand.u32 %v262, 4294901760
    %v264 = vsub.f32 %v262, %v263
    %v265 = vand.u32 %v264, 4294901760
    %266 = vmatmul.mubr.f32.gmra.mxu0 %v265
    %v267 = vpop.f32.mrf.mxu0
    %v268 = vadd.f32 %v118, %v267
    %v269 = vpop.f32.mrf.mxu0
    %270 = vmatprep.mubr.f32.mxu0 0.0
    %v271 = vand.u32 %v96, 4294901760
    %v272 = vsub.f32 %v96, %v271
    %v273 = vand.u32 %v272, 4294901760
    %v274 = vsub.f32 %v272, %v273
    %v275 = vand.u32 %v274, 4294901760
    %276 = vmatmul.mubr.f32.gmra.mxu0 %v275
    %v277 = vpop.f32.mrf.mxu0
    %v278 = vadd.f32 %v118, %v277
    %v279 = vpop.f32.mrf.mxu0
    %280 = vdwg.mxu0
    %281 = vmatprep.subr.mxu0 0.0
    %v282 = vand.u32 %v112, 4294901760
    %v283 = vsub.f32 %v112, %v282
    %v284 = vand.u32 %v283, 4294901760
    %v285 = vsub.f32 %v283, %v284
    %v286 = vand.u32 %v285, 4294901760
    %287 = vmatpush1.msra.mxu0 %v286
    %288 = vmatprep.subr.mxu0 0.0
    %v289 = vand.u32 %v111, 4294901760
    %v290 = vsub.f32 %v111, %v289
    %v291 = vand.u32 %v290, 4294901760
    %v292 = vsub.f32 %v290, %v291
    %v293 = vand.u32 %v292, 4294901760
    %294 = vmatpush1.msra.mxu0 %v293
    %295 = vmatprep.subr.mxu0 0.0
    %v296 = vand.u32 %v110, 4294901760
    %v297 = vsub.f32 %v110, %v296
    %v298 = vand.u32 %v297, 4294901760
    %v299 = vsub.f32 %v297, %v298
    %v300 = vand.u32 %v299, 4294901760
    %301 = vmatpush1.msra.mxu0 %v300
    %302 = vmatprep.subr.mxu0 0.0
    %v303 = vand.u32 %v109, 4294901760
    %v304 = vsub.f32 %v109, %v303
    %v305 = vand.u32 %v304, 4294901760
    %v306 = vsub.f32 %v304, %v305
    %v307 = vand.u32 %v306, 4294901760
    %308 = vmatpush1.msra.mxu0 %v307
    %309 = vmatprep.subr.mxu0 0.0
    %v310 = vand.u32 %v108, 4294901760
    %v311 = vsub.f32 %v108, %v310
    %v312 = vand.u32 %v311, 4294901760
    %v313 = vsub.f32 %v311, %v312
    %v314 = vand.u32 %v313, 4294901760
    %315 = vmatpush1.msra.mxu0 %v314
    %316 = vmatprep.subr.mxu0 0.0
    %v317 = vand.u32 %v107, 4294901760
    %v318 = vsub.f32 %v107, %v317
    %v319 = vand.u32 %v318, 4294901760
    %v320 = vsub.f32 %v318, %v319
    %v321 = vand.u32 %v320, 4294901760
    %322 = vmatpush1.msra.mxu0 %v321
    %323 = vmatprep.subr.mxu0 0.0
    %v324 = vand.u32 %v106, 4294901760
    %v325 = vsub.f32 %v106, %v324
    %v326 = vand.u32 %v325, 4294901760
    %v327 = vsub.f32 %v325, %v326
    %v328 = vand.u32 %v327, 4294901760
    %329 = vmatpush1.msra.mxu0 %v328
    %330 = vmatprep.subr.mxu0 0.0
    %v331 = vand.u32 %v105, 4294901760
    %v332 = vsub.f32 %v105, %v331
    %v333 = vand.u32 %v332, 4294901760
    %v334 = vsub.f32 %v332, %v333
    %v335 = vand.u32 %v334, 4294901760
    %336 = vmatpush1.msra.mxu0 %v335
    %337 = vmatprep.subr.mxu0 0.0
    %v338 = vand.u32 %v104, 4294901760
    %v339 = vsub.f32 %v104, %v338
    %v340 = vand.u32 %v339, 4294901760
    %v341 = vsub.f32 %v339, %v340
    %v342 = vand.u32 %v341, 4294901760
    %343 = vmatpush1.msra.mxu0 %v342
    %344 = vmatprep.subr.mxu0 0.0
    %v345 = vand.u32 %v103, 4294901760
    %v346 = vsub.f32 %v103, %v345
    %v347 = vand.u32 %v346, 4294901760
    %v348 = vsub.f32 %v346, %v347
    %v349 = vand.u32 %v348, 4294901760
    %350 = vmatpush1.msra.mxu0 %v349
    %351 = vmatprep.subr.mxu0 0.0
    %v352 = vand.u32 %v102, 4294901760
    %v353 = vsub.f32 %v102, %v352
    %v354 = vand.u32 %v353, 4294901760
    %v355 = vsub.f32 %v353, %v354
    %v356 = vand.u32 %v355, 4294901760
    %357 = vmatpush1.msra.mxu0 %v356
    %358 = vmatprep.subr.mxu0 0.0
    %v359 = vand.u32 %v101, 4294901760
    %v360 = vsub.f32 %v101, %v359
    %v361 = vand.u32 %v360, 4294901760
    %v362 = vsub.f32 %v360, %v361
    %v363 = vand.u32 %v362, 4294901760
    %364 = vmatpush1.msra.mxu0 %v363
    %365 = vmatprep.subr.mxu0 0.0
    %v366 = vand.u32 %v100, 4294901760
    %v367 = vsub.f32 %v100, %v366
    %v368 = vand.u32 %v367, 4294901760
    %v369 = vsub.f32 %v367, %v368
    %v370 = vand.u32 %v369, 4294901760
    %371 = vmatpush1.msra.mxu0 %v370
    %372 = vmatprep.subr.mxu0 0.0
    %v373 = vand.u32 %v99, 4294901760
    %v374 = vsub.f32 %v99, %v373
    %v375 = vand.u32 %v374, 4294901760
    %v376 = vsub.f32 %v374, %v375
    %v377 = vand.u32 %v376, 4294901760
    %378 = vmatpush1.msra.mxu0 %v377
    %379 = vmatprep.subr.mxu0 0.0
    %v380 = vand.u32 %v98, 4294901760
    %v381 = vsub.f32 %v98, %v380
    %v382 = vand.u32 %v381, 4294901760
    %v383 = vsub.f32 %v381, %v382
    %v384 = vand.u32 %v383, 4294901760
    %385 = vmatpush1.msra.mxu0 %v384
    %386 = vmatprep.subr.mxu0 0.0
    %v387 = vand.u32 %v97, 4294901760
    %v388 = vsub.f32 %v97, %v387
    %v389 = vand.u32 %v388, 4294901760
    %v390 = vsub.f32 %v388, %v389
    %v391 = vand.u32 %v390, 4294901760
    %392 = vmatpush1.msra.mxu0 %v391
    %393 = vmatprep.subr.mxu0 0.0
    %394 = vmatpush2.msra.mxu0 0.0
    %395 = vmatprep.subr.mxu0 0.0
    %396 = vmatpush2.msra.mxu0 0.0
    %397 = vmatprep.subr.mxu0 0.0
    %398 = vmatpush2.msra.mxu0 0.0
    %399 = vmatprep.subr.mxu0 0.0
    %400 = vmatpush2.msra.mxu0 0.0
    %401 = vmatprep.subr.mxu0 0.0
    %402 = vmatpush2.msra.mxu0 0.0
    %403 = vmatprep.subr.mxu0 0.0
    %404 = vmatpush2.msra.mxu0 0.0
    %405 = vmatprep.subr.mxu0 0.0
    %406 = vmatpush2.msra.mxu0 0.0
    %407 = vmatprep.subr.mxu0 0.0
    %408 = vmatpush2.msra.mxu0 0.0
    %409 = vmatprep.subr.mxu0 0.0
    %410 = vmatpush2.msra.mxu0 0.0
    %411 = vmatprep.subr.mxu0 0.0
    %412 = vmatpush2.msra.mxu0 0.0
    %413 = vmatprep.subr.mxu0 0.0
    %414 = vmatpush2.msra.mxu0 0.0
    %415 = vmatprep.subr.mxu0 0.0
    %416 = vmatpush2.msra.mxu0 0.0
    %417 = vmatprep.subr.mxu0 0.0
    %418 = vmatpush2.msra.mxu0 0.0
    %419 = vmatprep.subr.mxu0 0.0
    %420 = vmatpush2.msra.mxu0 0.0
    %421 = vmatprep.subr.mxu0 0.0
    %422 = vmatpush2.msra.mxu0 0.0
    %423 = vmatprep.subr.mxu0 0.0
    %424 = vmatpush2.msra.mxu0 0.0
    %425 = vmatprep.mubr.f32.mxu0 0.0
    %v426 = vand.u32 %v89, 4294901760
    %427 = vmatmul.mubr.f32.gmra.mxu0 %v426
    %v428 = vpop.f32.mrf.mxu0
    %v429 = vadd.f32 %v208, %v428
    %v430 = vpop.f32.mrf.mxu0
    %431 = vmatprep.mubr.f32.mxu0 0.0
    %v432 = vand.u32 %v90, 4294901760
    %433 = vmatmul.mubr.f32.gmra.mxu0 %v432
    %v434 = vpop.f32.mrf.mxu0
    %v435 = vadd.f32 %v218, %v434
    %v436 = vpop.f32.mrf.mxu0
    %437 = vmatprep.mubr.f32.mxu0 0.0
    %v438 = vand.u32 %v91, 4294901760
    %439 = vmatmul.mubr.f32.gmra.mxu0 %v438
    %v440 = vpop.f32.mrf.mxu0
    %v441 = vadd.f32 %v228, %v440
    %v442 = vpop.f32.mrf.mxu0
    %443 = vmatprep.mubr.f32.mxu0 0.0
    %v444 = vand.u32 %v92, 4294901760
    %445 = vmatmul.mubr.f32.gmra.mxu0 %v444
    %v446 = vpop.f32.mrf.mxu0
    %v447 = vadd.f32 %v238, %v446
    %v448 = vpop.f32.mrf.mxu0
    %449 = vmatprep.mubr.f32.mxu0 0.0
    %v450 = vand.u32 %v93, 4294901760
    %451 = vmatmul.mubr.f32.gmra.mxu0 %v450
    %v452 = vpop.f32.mrf.mxu0
    %v453 = vadd.f32 %v248, %v452
    %v454 = vpop.f32.mrf.mxu0
    %455 = vmatprep.mubr.f32.mxu0 0.0
    %v456 = vand.u32 %v94, 4294901760
    %457 = vmatmul.mubr.f32.gmra.mxu0 %v456
    %v458 = vpop.f32.mrf.mxu0
    %v459 = vadd.f32 %v258, %v458
    %v460 = vpop.f32.mrf.mxu0
    %461 = vmatprep.mubr.f32.mxu0 0.0
    %v462 = vand.u32 %v95, 4294901760
    %463 = vmatmul.mubr.f32.gmra.mxu0 %v462
    %v464 = vpop.f32.mrf.mxu0
    %v465 = vadd.f32 %v268, %v464
    %v466 = vpop.f32.mrf.mxu0
    %467 = vmatprep.mubr.f32.mxu0 0.0
    %v468 = vand.u32 %v96, 4294901760
    %469 = vmatmul.mubr.f32.gmra.mxu0 %v468
    %v470 = vpop.f32.mrf.mxu0
    %v471 = vadd.f32 %v278, %v470
    %v472 = vpop.f32.mrf.mxu0
    %473 = vdwg.mxu0
    %474 = vmatprep.subr.mxu0 0.0
    %v475 = vand.u32 %v112, 4294901760
    %v476 = vsub.f32 %v112, %v475
    %477 = vmatpush1.msra.mxu0 %v476
    %478 = vmatprep.subr.mxu0 0.0
    %v479 = vand.u32 %v111, 4294901760
    %v480 = vsub.f32 %v111, %v479
    %481 = vmatpush1.msra.mxu0 %v480
    %482 = vmatprep.subr.mxu0 0.0
    %v483 = vand.u32 %v110, 4294901760
    %v484 = vsub.f32 %v110, %v483
    %485 = vmatpush1.msra.mxu0 %v484
    %486 = vmatprep.subr.mxu0 0.0
    %v487 = vand.u32 %v109, 4294901760
    %v488 = vsub.f32 %v109, %v487
    %489 = vmatpush1.msra.mxu0 %v488
    %490 = vmatprep.subr.mxu0 0.0
    %v491 = vand.u32 %v108, 4294901760
    %v492 = vsub.f32 %v108, %v491
    %493 = vmatpush1.msra.mxu0 %v492
    %494 = vmatprep.subr.mxu0 0.0
    %v495 = vand.u32 %v107, 4294901760
    %v496 = vsub.f32 %v107, %v495
    %497 = vmatpush1.msra.mxu0 %v496
    %498 = vmatprep.subr.mxu0 0.0
    %v499 = vand.u32 %v106, 4294901760
    %v500 = vsub.f32 %v106, %v499
    %501 = vmatpush1.msra.mxu0 %v500
    %502 = vmatprep.subr.mxu0 0.0
    %v503 = vand.u32 %v105, 4294901760
    %v504 = vsub.f32 %v105, %v503
    %505 = vmatpush1.msra.mxu0 %v504
    %506 = vmatprep.subr.mxu0 0.0
    %v507 = vand.u32 %v104, 4294901760
    %v508 = vsub.f32 %v104, %v507
    %509 = vmatpush1.msra.mxu0 %v508
    %510 = vmatprep.subr.mxu0 0.0
    %v511 = vand.u32 %v103, 4294901760
    %v512 = vsub.f32 %v103, %v511
    %513 = vmatpush1.msra.mxu0 %v512
    %514 = vmatprep.subr.mxu0 0.0
    %v515 = vand.u32 %v102, 4294901760
    %v516 = vsub.f32 %v102, %v515
    %517 = vmatpush1.msra.mxu0 %v516
    %518 = vmatprep.subr.mxu0 0.0
    %v519 = vand.u32 %v101, 4294901760
    %v520 = vsub.f32 %v101, %v519
    %521 = vmatpush1.msra.mxu0 %v520
    %522 = vmatprep.subr.mxu0 0.0
    %v523 = vand.u32 %v100, 4294901760
    %v524 = vsub.f32 %v100, %v523
    %525 = vmatpush1.msra.mxu0 %v524
    %526 = vmatprep.subr.mxu0 0.0
    %v527 = vand.u32 %v99, 4294901760
    %v528 = vsub.f32 %v99, %v527
    %529 = vmatpush1.msra.mxu0 %v528
    %530 = vmatprep.subr.mxu0 0.0
    %v531 = vand.u32 %v98, 4294901760
    %v532 = vsub.f32 %v98, %v531
    %533 = vmatpush1.msra.mxu0 %v532
    %534 = vmatprep.subr.mxu0 0.0
    %v535 = vand.u32 %v97, 4294901760
    %v536 = vsub.f32 %v97, %v535
    %537 = vmatpush1.msra.mxu0 %v536
    %538 = vmatprep.subr.mxu0 0.0
    %539 = vmatpush2.msra.mxu0 0.0
    %540 = vmatprep.subr.mxu0 0.0
    %541 = vmatpush2.msra.mxu0 0.0
    %542 = vmatprep.subr.mxu0 0.0
    %543 = vmatpush2.msra.mxu0 0.0
    %544 = vmatprep.subr.mxu0 0.0
    %545 = vmatpush2.msra.mxu0 0.0
    %546 = vmatprep.subr.mxu0 0.0
    %547 = vmatpush2.msra.mxu0 0.0
    %548 = vmatprep.subr.mxu0 0.0
    %549 = vmatpush2.msra.mxu0 0.0
    %550 = vmatprep.subr.mxu0 0.0
    %551 = vmatpush2.msra.mxu0 0.0
    %552 = vmatprep.subr.mxu0 0.0
    %553 = vmatpush2.msra.mxu0 0.0
    %554 = vmatprep.subr.mxu0 0.0
    %555 = vmatpush2.msra.mxu0 0.0
    %556 = vmatprep.subr.mxu0 0.0
    %557 = vmatpush2.msra.mxu0 0.0
    %558 = vmatprep.subr.mxu0 0.0
    %559 = vmatpush2.msra.mxu0 0.0
    %560 = vmatprep.subr.mxu0 0.0
    %561 = vmatpush2.msra.mxu0 0.0
    %562 = vmatprep.subr.mxu0 0.0
    %563 = vmatpush2.msra.mxu0 0.0
    %564 = vmatprep.subr.mxu0 0.0
    %565 = vmatpush2.msra.mxu0 0.0
    %566 = vmatprep.subr.mxu0 0.0
    %567 = vmatpush2.msra.mxu0 0.0
    %568 = vmatprep.subr.mxu0 0.0
    %569 = vmatpush2.msra.mxu0 0.0
    %570 = vmatprep.mubr.f32.mxu0 0.0
    %v571 = vand.u32 %v89, 4294901760
    %v572 = vsub.f32 %v89, %v571
    %573 = vmatmul.mubr.f32.gmra.mxu0 %v572
    %v574 = vpop.f32.mrf.mxu0
    %v575 = vadd.f32 %v429, %v574
    %v576 = vpop.f32.mrf.mxu0
    %577 = vmatprep.mubr.f32.mxu0 0.0
    %v578 = vand.u32 %v90, 4294901760
    %v579 = vsub.f32 %v90, %v578
    %580 = vmatmul.mubr.f32.gmra.mxu0 %v579
    %v581 = vpop.f32.mrf.mxu0
    %v582 = vadd.f32 %v435, %v581
    %v583 = vpop.f32.mrf.mxu0
    %584 = vmatprep.mubr.f32.mxu0 0.0
    %v585 = vand.u32 %v91, 4294901760
    %v586 = vsub.f32 %v91, %v585
    %587 = vmatmul.mubr.f32.gmra.mxu0 %v586
    %v588 = vpop.f32.mrf.mxu0
    %v589 = vadd.f32 %v441, %v588
    %v590 = vpop.f32.mrf.mxu0
    %591 = vmatprep.mubr.f32.mxu0 0.0
    %v592 = vand.u32 %v92, 4294901760
    %v593 = vsub.f32 %v92, %v592
    %594 = vmatmul.mubr.f32.gmra.mxu0 %v593
    %v595 = vpop.f32.mrf.mxu0
    %v596 = vadd.f32 %v447, %v595
    %v597 = vpop.f32.mrf.mxu0
    %598 = vmatprep.mubr.f32.mxu0 0.0
    %v599 = vand.u32 %v93, 4294901760
    %v600 = vsub.f32 %v93, %v599
    %601 = vmatmul.mubr.f32.gmra.mxu0 %v600
    %v602 = vpop.f32.mrf.mxu0
    %v603 = vadd.f32 %v453, %v602
    %v604 = vpop.f32.mrf.mxu0
    %605 = vmatprep.mubr.f32.mxu0 0.0
    %v606 = vand.u32 %v94, 4294901760
    %v607 = vsub.f32 %v94, %v606
    %608 = vmatmul.mubr.f32.gmra.mxu0 %v607
    %v609 = vpop.f32.mrf.mxu0
    %v610 = vadd.f32 %v459, %v609
    %v611 = vpop.f32.mrf.mxu0
    %612 = vmatprep.mubr.f32.mxu0 0.0
    %v613 = vand.u32 %v95, 4294901760
    %v614 = vsub.f32 %v95, %v613
    %615 = vmatmul.mubr.f32.gmra.mxu0 %v614
    %v616 = vpop.f32.mrf.mxu0
    %v617 = vadd.f32 %v465, %v616
    %v618 = vpop.f32.mrf.mxu0
    %619 = vmatprep.mubr.f32.mxu0 0.0
    %v620 = vand.u32 %v96, 4294901760
    %v621 = vsub.f32 %v96, %v620
    %622 = vmatmul.mubr.f32.gmra.mxu0 %v621
    %v623 = vpop.f32.mrf.mxu0
    %v624 = vadd.f32 %v471, %v623
    %v625 = vpop.f32.mrf.mxu0
    %626 = vdwg.mxu0
    %627 = vmatprep.subr.mxu0 0.0
    %v628 = vand.u32 %v112, 4294901760
    %629 = vmatpush1.msra.mxu0 %v628
    %630 = vmatprep.subr.mxu0 0.0
    %v631 = vand.u32 %v111, 4294901760
    %632 = vmatpush1.msra.mxu0 %v631
    %633 = vmatprep.subr.mxu0 0.0
    %v634 = vand.u32 %v110, 4294901760
    %635 = vmatpush1.msra.mxu0 %v634
    %636 = vmatprep.subr.mxu0 0.0
    %v637 = vand.u32 %v109, 4294901760
    %638 = vmatpush1.msra.mxu0 %v637
    %639 = vmatprep.subr.mxu0 0.0
    %v640 = vand.u32 %v108, 4294901760
    %641 = vmatpush1.msra.mxu0 %v640
    %642 = vmatprep.subr.mxu0 0.0
    %v643 = vand.u32 %v107, 4294901760
    %644 = vmatpush1.msra.mxu0 %v643
    %645 = vmatprep.subr.mxu0 0.0
    %v646 = vand.u32 %v106, 4294901760
    %647 = vmatpush1.msra.mxu0 %v646
    %648 = vmatprep.subr.mxu0 0.0
    %v649 = vand.u32 %v105, 4294901760
    %650 = vmatpush1.msra.mxu0 %v649
    %651 = vmatprep.subr.mxu0 0.0
    %v652 = vand.u32 %v104, 4294901760
    %653 = vmatpush1.msra.mxu0 %v652
    %654 = vmatprep.subr.mxu0 0.0
    %v655 = vand.u32 %v103, 4294901760
    %656 = vmatpush1.msra.mxu0 %v655
    %657 = vmatprep.subr.mxu0 0.0
    %v658 = vand.u32 %v102, 4294901760
    %659 = vmatpush1.msra.mxu0 %v658
    %660 = vmatprep.subr.mxu0 0.0
    %v661 = vand.u32 %v101, 4294901760
    %662 = vmatpush1.msra.mxu0 %v661
    %663 = vmatprep.subr.mxu0 0.0
    %v664 = vand.u32 %v100, 4294901760
    %665 = vmatpush1.msra.mxu0 %v664
    %666 = vmatprep.subr.mxu0 0.0
    %v667 = vand.u32 %v99, 4294901760
    %668 = vmatpush1.msra.mxu0 %v667
    %669 = vmatprep.subr.mxu0 0.0
    %v670 = vand.u32 %v98, 4294901760
    %671 = vmatpush1.msra.mxu0 %v670
    %672 = vmatprep.subr.mxu0 0.0
    %v673 = vand.u32 %v97, 4294901760
    %674 = vmatpush1.msra.mxu0 %v673
    %675 = vmatprep.subr.mxu0 0.0
    %676 = vmatpush2.msra.mxu0 0.0
    %677 = vmatprep.subr.mxu0 0.0
    %678 = vmatpush2.msra.mxu0 0.0
    %679 = vmatprep.subr.mxu0 0.0
    %680 = vmatpush2.msra.mxu0 0.0
    %681 = vmatprep.subr.mxu0 0.0
    %682 = vmatpush2.msra.mxu0 0.0
    %683 = vmatprep.subr.mxu0 0.0
    %684 = vmatpush2.msra.mxu0 0.0
    %685 = vmatprep.subr.mxu0 0.0
    %686 = vmatpush2.msra.mxu0 0.0
    %687 = vmatprep.subr.mxu0 0.0
    %688 = vmatpush2.msra.mxu0 0.0
    %689 = vmatprep.subr.mxu0 0.0
    %690 = vmatpush2.msra.mxu0 0.0
    %691 = vmatprep.subr.mxu0 0.0
    %692 = vmatpush2.msra.mxu0 0.0
    %693 = vmatprep.subr.mxu0 0.0
    %694 = vmatpush2.msra.mxu0 0.0
    %695 = vmatprep.subr.mxu0 0.0
    %696 = vmatpush2.msra.mxu0 0.0
    %697 = vmatprep.subr.mxu0 0.0
    %698 = vmatpush2.msra.mxu0 0.0
    %699 = vmatprep.subr.mxu0 0.0
    %700 = vmatpush2.msra.mxu0 0.0
    %701 = vmatprep.subr.mxu0 0.0
    %702 = vmatpush2.msra.mxu0 0.0
    %703 = vmatprep.subr.mxu0 0.0
    %704 = vmatpush2.msra.mxu0 0.0
    %705 = vmatprep.subr.mxu0 0.0
    %706 = vmatpush2.msra.mxu0 0.0
    %707 = vmatprep.mubr.f32.mxu0 0.0
    %v708 = vand.u32 %v89, 4294901760
    %v709 = vsub.f32 %v89, %v708
    %v710 = vand.u32 %v709, 4294901760
    %711 = vmatmul.mubr.f32.gmra.mxu0 %v710
    %v712 = vpop.f32.mrf.mxu0
    %v713 = vadd.f32 %v575, %v712
    %v714 = vpop.f32.mrf.mxu0
    %715 = vmatprep.mubr.f32.mxu0 0.0
    %v716 = vand.u32 %v90, 4294901760
    %v717 = vsub.f32 %v90, %v716
    %v718 = vand.u32 %v717, 4294901760
    %719 = vmatmul.mubr.f32.gmra.mxu0 %v718
    %v720 = vpop.f32.mrf.mxu0
    %v721 = vadd.f32 %v582, %v720
    %v722 = vpop.f32.mrf.mxu0
    %723 = vmatprep.mubr.f32.mxu0 0.0
    %v724 = vand.u32 %v91, 4294901760
    %v725 = vsub.f32 %v91, %v724
    %v726 = vand.u32 %v725, 4294901760
    %727 = vmatmul.mubr.f32.gmra.mxu0 %v726
    %v728 = vpop.f32.mrf.mxu0
    %v729 = vadd.f32 %v589, %v728
    %v730 = vpop.f32.mrf.mxu0
    %731 = vmatprep.mubr.f32.mxu0 0.0
    %v732 = vand.u32 %v92, 4294901760
    %v733 = vsub.f32 %v92, %v732
    %v734 = vand.u32 %v733, 4294901760
    %735 = vmatmul.mubr.f32.gmra.mxu0 %v734
    %v736 = vpop.f32.mrf.mxu0
    %v737 = vadd.f32 %v596, %v736
    %v738 = vpop.f32.mrf.mxu0
    %739 = vmatprep.mubr.f32.mxu0 0.0
    %v740 = vand.u32 %v93, 4294901760
    %v741 = vsub.f32 %v93, %v740
    %v742 = vand.u32 %v741, 4294901760
    %743 = vmatmul.mubr.f32.gmra.mxu0 %v742
    %v744 = vpop.f32.mrf.mxu0
    %v745 = vadd.f32 %v603, %v744
    %v746 = vpop.f32.mrf.mxu0
    %747 = vmatprep.mubr.f32.mxu0 0.0
    %v748 = vand.u32 %v94, 4294901760
    %v749 = vsub.f32 %v94, %v748
    %v750 = vand.u32 %v749, 4294901760
    %751 = vmatmul.mubr.f32.gmra.mxu0 %v750
    %v752 = vpop.f32.mrf.mxu0
    %v753 = vadd.f32 %v610, %v752
    %v754 = vpop.f32.mrf.mxu0
    %755 = vmatprep.mubr.f32.mxu0 0.0
    %v756 = vand.u32 %v95, 4294901760
    %v757 = vsub.f32 %v95, %v756
    %v758 = vand.u32 %v757, 4294901760
    %759 = vmatmul.mubr.f32.gmra.mxu0 %v758
    %v760 = vpop.f32.mrf.mxu0
    %v761 = vadd.f32 %v617, %v760
    %v762 = vpop.f32.mrf.mxu0
    %763 = vmatprep.mubr.f32.mxu0 0.0
    %v764 = vand.u32 %v96, 4294901760
    %v765 = vsub.f32 %v96, %v764
    %v766 = vand.u32 %v765, 4294901760
    %767 = vmatmul.mubr.f32.gmra.mxu0 %v766
    %v768 = vpop.f32.mrf.mxu0
    %v769 = vadd.f32 %v624, %v768
    %v770 = vpop.f32.mrf.mxu0
    %771 = vdwg.mxu0
    %772 = vmatprep.subr.mxu0 0.0
    %v773 = vand.u32 %v112, 4294901760
    %v774 = vsub.f32 %v112, %v773
    %v775 = vand.u32 %v774, 4294901760
    %776 = vmatpush1.msra.mxu0 %v775
    %777 = vmatprep.subr.mxu0 0.0
    %v778 = vand.u32 %v111, 4294901760
    %v779 = vsub.f32 %v111, %v778
    %v780 = vand.u32 %v779, 4294901760
    %781 = vmatpush1.msra.mxu0 %v780
    %782 = vmatprep.subr.mxu0 0.0
    %v783 = vand.u32 %v110, 4294901760
    %v784 = vsub.f32 %v110, %v783
    %v785 = vand.u32 %v784, 4294901760
    %786 = vmatpush1.msra.mxu0 %v785
    %787 = vmatprep.subr.mxu0 0.0
    %v788 = vand.u32 %v109, 4294901760
    %v789 = vsub.f32 %v109, %v788
    %v790 = vand.u32 %v789, 4294901760
    %791 = vmatpush1.msra.mxu0 %v790
    %792 = vmatprep.subr.mxu0 0.0
    %v793 = vand.u32 %v108, 4294901760
    %v794 = vsub.f32 %v108, %v793
    %v795 = vand.u32 %v794, 4294901760
    %796 = vmatpush1.msra.mxu0 %v795
    %797 = vmatprep.subr.mxu0 0.0
    %v798 = vand.u32 %v107, 4294901760
    %v799 = vsub.f32 %v107, %v798
    %v800 = vand.u32 %v799, 4294901760
    %801 = vmatpush1.msra.mxu0 %v800
    %802 = vmatprep.subr.mxu0 0.0
    %v803 = vand.u32 %v106, 4294901760
    %v804 = vsub.f32 %v106, %v803
    %v805 = vand.u32 %v804, 4294901760
    %806 = vmatpush1.msra.mxu0 %v805
    %807 = vmatprep.subr.mxu0 0.0
    %v808 = vand.u32 %v105, 4294901760
    %v809 = vsub.f32 %v105, %v808
    %v810 = vand.u32 %v809, 4294901760
    %811 = vmatpush1.msra.mxu0 %v810
    %812 = vmatprep.subr.mxu0 0.0
    %v813 = vand.u32 %v104, 4294901760
    %v814 = vsub.f32 %v104, %v813
    %v815 = vand.u32 %v814, 4294901760
    %816 = vmatpush1.msra.mxu0 %v815
    %817 = vmatprep.subr.mxu0 0.0
    %v818 = vand.u32 %v103, 4294901760
    %v819 = vsub.f32 %v103, %v818
    %v820 = vand.u32 %v819, 4294901760
    %821 = vmatpush1.msra.mxu0 %v820
    %822 = vmatprep.subr.mxu0 0.0
    %v823 = vand.u32 %v102, 4294901760
    %v824 = vsub.f32 %v102, %v823
    %v825 = vand.u32 %v824, 4294901760
    %826 = vmatpush1.msra.mxu0 %v825
    %827 = vmatprep.subr.mxu0 0.0
    %v828 = vand.u32 %v101, 4294901760
    %v829 = vsub.f32 %v101, %v828
    %v830 = vand.u32 %v829, 4294901760
    %831 = vmatpush1.msra.mxu0 %v830
    %832 = vmatprep.subr.mxu0 0.0
    %v833 = vand.u32 %v100, 4294901760
    %v834 = vsub.f32 %v100, %v833
    %v835 = vand.u32 %v834, 4294901760
    %836 = vmatpush1.msra.mxu0 %v835
    %837 = vmatprep.subr.mxu0 0.0
    %v838 = vand.u32 %v99, 4294901760
    %v839 = vsub.f32 %v99, %v838
    %v840 = vand.u32 %v839, 4294901760
    %841 = vmatpush1.msra.mxu0 %v840
    %842 = vmatprep.subr.mxu0 0.0
    %v843 = vand.u32 %v98, 4294901760
    %v844 = vsub.f32 %v98, %v843
    %v845 = vand.u32 %v844, 4294901760
    %846 = vmatpush1.msra.mxu0 %v845
    %847 = vmatprep.subr.mxu0 0.0
    %v848 = vand.u32 %v97, 4294901760
    %v849 = vsub.f32 %v97, %v848
    %v850 = vand.u32 %v849, 4294901760
    %851 = vmatpush1.msra.mxu0 %v850
    %852 = vmatprep.subr.mxu0 0.0
    %853 = vmatpush2.msra.mxu0 0.0
    %854 = vmatprep.subr.mxu0 0.0
    %855 = vmatpush2.msra.mxu0 0.0
    %856 = vmatprep.subr.mxu0 0.0
    %857 = vmatpush2.msra.mxu0 0.0
    %858 = vmatprep.subr.mxu0 0.0
    %859 = vmatpush2.msra.mxu0 0.0
    %860 = vmatprep.subr.mxu0 0.0
    %861 = vmatpush2.msra.mxu0 0.0
    %862 = vmatprep.subr.mxu0 0.0
    %863 = vmatpush2.msra.mxu0 0.0
    %864 = vmatprep.subr.mxu0 0.0
    %865 = vmatpush2.msra.mxu0 0.0
    %866 = vmatprep.subr.mxu0 0.0
    %867 = vmatpush2.msra.mxu0 0.0
    %868 = vmatprep.subr.mxu0 0.0
    %869 = vmatpush2.msra.mxu0 0.0
    %870 = vmatprep.subr.mxu0 0.0
    %871 = vmatpush2.msra.mxu0 0.0
    %872 = vmatprep.subr.mxu0 0.0
    %873 = vmatpush2.msra.mxu0 0.0
    %874 = vmatprep.subr.mxu0 0.0
    %875 = vmatpush2.msra.mxu0 0.0
    %876 = vmatprep.subr.mxu0 0.0
    %877 = vmatpush2.msra.mxu0 0.0
    %878 = vmatprep.subr.mxu0 0.0
    %879 = vmatpush2.msra.mxu0 0.0
    %880 = vmatprep.subr.mxu0 0.0
    %881 = vmatpush2.msra.mxu0 0.0
    %882 = vmatprep.subr.mxu0 0.0
    %883 = vmatpush2.msra.mxu0 0.0
    %884 = vmatprep.mubr.f32.mxu0 0.0
    %v885 = vand.u32 %v89, 4294901760
    %886 = vmatmul.mubr.f32.gmra.mxu0 %v885
    %v887 = vpop.f32.mrf.mxu0
    %v888 = vadd.f32 %v713, %v887
    %v889 = vpop.f32.mrf.mxu0
    %890 = vmatprep.mubr.f32.mxu0 0.0
    %v891 = vand.u32 %v90, 4294901760
    %892 = vmatmul.mubr.f32.gmra.mxu0 %v891
    %v893 = vpop.f32.mrf.mxu0
    %v894 = vadd.f32 %v721, %v893
    %v895 = vpop.f32.mrf.mxu0
    %896 = vmatprep.mubr.f32.mxu0 0.0
    %v897 = vand.u32 %v91, 4294901760
    %898 = vmatmul.mubr.f32.gmra.mxu0 %v897
    %v899 = vpop.f32.mrf.mxu0
    %v900 = vadd.f32 %v729, %v899
    %v901 = vpop.f32.mrf.mxu0
    %902 = vmatprep.mubr.f32.mxu0 0.0
    %v903 = vand.u32 %v92, 4294901760
    %904 = vmatmul.mubr.f32.gmra.mxu0 %v903
    %v905 = vpop.f32.mrf.mxu0
    %v906 = vadd.f32 %v737, %v905
    %v907 = vpop.f32.mrf.mxu0
    %908 = vmatprep.mubr.f32.mxu0 0.0
    %v909 = vand.u32 %v93, 4294901760
    %910 = vmatmul.mubr.f32.gmra.mxu0 %v909
    %v911 = vpop.f32.mrf.mxu0
    %v912 = vadd.f32 %v745, %v911
    %v913 = vpop.f32.mrf.mxu0
    %914 = vmatprep.mubr.f32.mxu0 0.0
    %v915 = vand.u32 %v94, 4294901760
    %916 = vmatmul.mubr.f32.gmra.mxu0 %v915
    %v917 = vpop.f32.mrf.mxu0
    %v918 = vadd.f32 %v753, %v917
    %v919 = vpop.f32.mrf.mxu0
    %920 = vmatprep.mubr.f32.mxu0 0.0
    %v921 = vand.u32 %v95, 4294901760
    %922 = vmatmul.mubr.f32.gmra.mxu0 %v921
    %v923 = vpop.f32.mrf.mxu0
    %v924 = vadd.f32 %v761, %v923
    %v925 = vpop.f32.mrf.mxu0
    %926 = vmatprep.mubr.f32.mxu0 0.0
    %v927 = vand.u32 %v96, 4294901760
    %928 = vmatmul.mubr.f32.gmra.mxu0 %v927
    %v929 = vpop.f32.mrf.mxu0
    %v930 = vadd.f32 %v769, %v929
    %v931 = vpop.f32.mrf.mxu0
    %932 = vdwg.mxu0
    %933 = vmatprep.subr.mxu0 0.0
    %v934 = vand.u32 %v112, 4294901760
    %935 = vmatpush1.msra.mxu0 %v934
    %936 = vmatprep.subr.mxu0 0.0
    %v937 = vand.u32 %v111, 4294901760
    %938 = vmatpush1.msra.mxu0 %v937
    %939 = vmatprep.subr.mxu0 0.0
    %v940 = vand.u32 %v110, 4294901760
    %941 = vmatpush1.msra.mxu0 %v940
    %942 = vmatprep.subr.mxu0 0.0
    %v943 = vand.u32 %v109, 4294901760
    %944 = vmatpush1.msra.mxu0 %v943
    %945 = vmatprep.subr.mxu0 0.0
    %v946 = vand.u32 %v108, 4294901760
    %947 = vmatpush1.msra.mxu0 %v946
    %948 = vmatprep.subr.mxu0 0.0
    %v949 = vand.u32 %v107, 4294901760
    %950 = vmatpush1.msra.mxu0 %v949
    %951 = vmatprep.subr.mxu0 0.0
    %v952 = vand.u32 %v106, 4294901760
    %953 = vmatpush1.msra.mxu0 %v952
    %954 = vmatprep.subr.mxu0 0.0
    %v955 = vand.u32 %v105, 4294901760
    %956 = vmatpush1.msra.mxu0 %v955
    %957 = vmatprep.subr.mxu0 0.0
    %v958 = vand.u32 %v104, 4294901760
    %959 = vmatpush1.msra.mxu0 %v958
    %960 = vmatprep.subr.mxu0 0.0
    %v961 = vand.u32 %v103, 4294901760
    %962 = vmatpush1.msra.mxu0 %v961
    %963 = vmatprep.subr.mxu0 0.0
    %v964 = vand.u32 %v102, 4294901760
    %965 = vmatpush1.msra.mxu0 %v964
    %966 = vmatprep.subr.mxu0 0.0
    %v967 = vand.u32 %v101, 4294901760
    %968 = vmatpush1.msra.mxu0 %v967
    %969 = vmatprep.subr.mxu0 0.0
    %v970 = vand.u32 %v100, 4294901760
    %971 = vmatpush1.msra.mxu0 %v970
    %972 = vmatprep.subr.mxu0 0.0
    %v973 = vand.u32 %v99, 4294901760
    %974 = vmatpush1.msra.mxu0 %v973
    %975 = vmatprep.subr.mxu0 0.0
    %v976 = vand.u32 %v98, 4294901760
    %977 = vmatpush1.msra.mxu0 %v976
    %978 = vmatprep.subr.mxu0 0.0
    %v979 = vand.u32 %v97, 4294901760
    %980 = vmatpush1.msra.mxu0 %v979
    %981 = vmatprep.subr.mxu0 0.0
    %982 = vmatpush2.msra.mxu0 0.0
    %983 = vmatprep.subr.mxu0 0.0
    %984 = vmatpush2.msra.mxu0 0.0
    %985 = vmatprep.subr.mxu0 0.0
    %986 = vmatpush2.msra.mxu0 0.0
    %987 = vmatprep.subr.mxu0 0.0
    %988 = vmatpush2.msra.mxu0 0.0
    %989 = vmatprep.subr.mxu0 0.0
    %990 = vmatpush2.msra.mxu0 0.0
    %991 = vmatprep.subr.mxu0 0.0
    %992 = vmatpush2.msra.mxu0 0.0
    %993 = vmatprep.subr.mxu0 0.0
    %994 = vmatpush2.msra.mxu0 0.0
    %995 = vmatprep.subr.mxu0 0.0
    %996 = vmatpush2.msra.mxu0 0.0
    %997 = vmatprep.subr.mxu0 0.0
    %998 = vmatpush2.msra.mxu0 0.0
    %999 = vmatprep.subr.mxu0 0.0
    %1000 = vmatpush2.msra.mxu0 0.0
    %1001 = vmatprep.subr.mxu0 0.0
    %1002 = vmatpush2.msra.mxu0 0.0
    %1003 = vmatprep.subr.mxu0 0.0
    %1004 = vmatpush2.msra.mxu0 0.0
    %1005 = vmatprep.subr.mxu0 0.0
    %1006 = vmatpush2.msra.mxu0 0.0
    %1007 = vmatprep.subr.mxu0 0.0
    %1008 = vmatpush2.msra.mxu0 0.0
    %1009 = vmatprep.subr.mxu0 0.0
    %1010 = vmatpush2.msra.mxu0 0.0
    %1011 = vmatprep.subr.mxu0 0.0
    %1012 = vmatpush2.msra.mxu0 0.0
    %1013 = vmatprep.mubr.f32.mxu0 0.0
    %v1014 = vand.u32 %v89, 4294901760
    %1015 = vmatmul.mubr.f32.gmra.mxu0 %v1014
    %v1016 = vpop.f32.mrf.mxu0
    %v1017 = vadd.f32 %v888, %v1016
    %v1018 = vpop.f32.mrf.mxu0
    %1019 = vmatprep.mubr.f32.mxu0 0.0
    %v1020 = vand.u32 %v90, 4294901760
    %1021 = vmatmul.mubr.f32.gmra.mxu0 %v1020
    %v1022 = vpop.f32.mrf.mxu0
    %v1023 = vadd.f32 %v894, %v1022
    %v1024 = vpop.f32.mrf.mxu0
    %1025 = vmatprep.mubr.f32.mxu0 0.0
    %v1026 = vand.u32 %v91, 4294901760
    %1027 = vmatmul.mubr.f32.gmra.mxu0 %v1026
    %v1028 = vpop.f32.mrf.mxu0
    %v1029 = vadd.f32 %v900, %v1028
    %v1030 = vpop.f32.mrf.mxu0
    %1031 = vmatprep.mubr.f32.mxu0 0.0
    %v1032 = vand.u32 %v92, 4294901760
    %1033 = vmatmul.mubr.f32.gmra.mxu0 %v1032
    %v1034 = vpop.f32.mrf.mxu0
    %v1035 = vadd.f32 %v906, %v1034
    %v1036 = vpop.f32.mrf.mxu0
    %1037 = vmatprep.mubr.f32.mxu0 0.0
    %v1038 = vand.u32 %v93, 4294901760
    %1039 = vmatmul.mubr.f32.gmra.mxu0 %v1038
    %v1040 = vpop.f32.mrf.mxu0
    %v1041 = vadd.f32 %v912, %v1040
    %v1042 = vpop.f32.mrf.mxu0
    %1043 = vmatprep.mubr.f32.mxu0 0.0
    %v1044 = vand.u32 %v94, 4294901760
    %1045 = vmatmul.mubr.f32.gmra.mxu0 %v1044
    %v1046 = vpop.f32.mrf.mxu0
    %v1047 = vadd.f32 %v918, %v1046
    %v1048 = vpop.f32.mrf.mxu0
    %1049 = vmatprep.mubr.f32.mxu0 0.0
    %v1050 = vand.u32 %v95, 4294901760
    %1051 = vmatmul.mubr.f32.gmra.mxu0 %v1050
    %v1052 = vpop.f32.mrf.mxu0
    %v1053 = vadd.f32 %v924, %v1052
    %v1054 = vpop.f32.mrf.mxu0
    %1055 = vmatprep.mubr.f32.mxu0 0.0
    %v1056 = vand.u32 %v96, 4294901760
    %1057 = vmatmul.mubr.f32.gmra.mxu0 %v1056
    %v1058 = vpop.f32.mrf.mxu0
    %v1059 = vadd.f32 %v930, %v1058
    %v1060 = vpop.f32.mrf.mxu0
    %1061 = vdwg.mxu0
    %v1062 = vmax.f32 %v1017, 0.0
    %v1063 = vmax.f32 %v1023, 0.0
    %v1064 = vmax.f32 %v1029, 0.0
    %v1065 = vmax.f32 %v1035, 0.0
    %v1066 = vmax.f32 %v1041, 0.0
    %v1067 = vmax.f32 %v1047, 0.0
    %v1068 = vmax.f32 %v1053, 0.0
    %v1069 = vmax.f32 %v1059, 0.0
    %v1070 = vld [vmem:[#allocation7] sm:$0xff]
    %v1071 = vld [vmem:[#allocation7 + $0x8] sm:$0xff]
    %v1072 = vld [vmem:[#allocation7 + $0x10] sm:$0xff]
    %v1073 = vld [vmem:[#allocation7 + $0x18] sm:$0xff]
    %v1074 = vld [vmem:[#allocation7 + $0x20] sm:$0xff]
    %v1075 = vld [vmem:[#allocation7 + $0x28] sm:$0xff]
    %v1076 = vld [vmem:[#allocation7 + $0x30] sm:$0xff]
    %v1077 = vld [vmem:[#allocation7 + $0x38] sm:$0xff]
    %v1078 = vld [vmem:[#allocation7 + $0x40] sm:$0xff]
    %v1079 = vld [vmem:[#allocation7 + $0x48] sm:$0xff]
    %v1080 = vld [vmem:[#allocation7 + $0x50] sm:$0xff]
    %v1081 = vld [vmem:[#allocation7 + $0x58] sm:$0xff]
    %v1082 = vld [vmem:[#allocation7 + $0x60] sm:$0xff]
    %v1083 = vld [vmem:[#allocation7 + $0x68] sm:$0xff]
    %v1084 = vld [vmem:[#allocation7 + $0x70] sm:$0xff]
    %v1085 = vld [vmem:[#allocation7 + $0x78] sm:$0xff]
    %v1086 = vld [vmem:[%s4] sm:$0x1]
    %v1088 = vlaneseq
    %v1089 = vshrl.u32 %v1088, 7
    %v1090 = vsub.s32 0, %v1089
    %v1091 = vrot.slane %v1086, %v1090
    %1093 = vmatprep.subr.mxu0 0.0
    %v1094 = vand.u32 %v1085, 4294901760
    %1095 = vmatpush1.msra.mxu0 %v1094
    %1096 = vmatprep.subr.mxu0 0.0
    %v1097 = vand.u32 %v1084, 4294901760
    %1098 = vmatpush1.msra.mxu0 %v1097
    %1099 = vmatprep.subr.mxu0 0.0
    %v1100 = vand.u32 %v1083, 4294901760
    %1101 = vmatpush1.msra.mxu0 %v1100
    %1102 = vmatprep.subr.mxu0 0.0
    %v1103 = vand.u32 %v1082, 4294901760
    %1104 = vmatpush1.msra.mxu0 %v1103
    %1105 = vmatprep.subr.mxu0 0.0
    %v1106 = vand.u32 %v1081, 4294901760
    %1107 = vmatpush1.msra.mxu0 %v1106
    %1108 = vmatprep.subr.mxu0 0.0
    %v1109 = vand.u32 %v1080, 4294901760
    %1110 = vmatpush1.msra.mxu0 %v1109
    %1111 = vmatprep.subr.mxu0 0.0
    %v1112 = vand.u32 %v1079, 4294901760
    %1113 = vmatpush1.msra.mxu0 %v1112
    %1114 = vmatprep.subr.mxu0 0.0
    %v1115 = vand.u32 %v1078, 4294901760
    %1116 = vmatpush1.msra.mxu0 %v1115
    %1117 = vmatprep.subr.mxu0 0.0
    %v1118 = vand.u32 %v1077, 4294901760
    %1119 = vmatpush1.msra.mxu0 %v1118
    %1120 = vmatprep.subr.mxu0 0.0
    %v1121 = vand.u32 %v1076, 4294901760
    %1122 = vmatpush1.msra.mxu0 %v1121
    %1123 = vmatprep.subr.mxu0 0.0
    %v1124 = vand.u32 %v1075, 4294901760
    %1125 = vmatpush1.msra.mxu0 %v1124
    %1126 = vmatprep.subr.mxu0 0.0
    %v1127 = vand.u32 %v1074, 4294901760
    %1128 = vmatpush1.msra.mxu0 %v1127
    %1129 = vmatprep.subr.mxu0 0.0
    %v1130 = vand.u32 %v1073, 4294901760
    %1131 = vmatpush1.msra.mxu0 %v1130
    %1132 = vmatprep.subr.mxu0 0.0
    %v1133 = vand.u32 %v1072, 4294901760
    %1134 = vmatpush1.msra.mxu0 %v1133
    %1135 = vmatprep.subr.mxu0 0.0
    %v1136 = vand.u32 %v1071, 4294901760
    %1137 = vmatpush1.msra.mxu0 %v1136
    %1138 = vmatprep.subr.mxu0 0.0
    %v1139 = vand.u32 %v1070, 4294901760
    %1140 = vmatpush1.msra.mxu0 %v1139
    %1141 = vmatprep.subr.mxu0 0.0
    %1142 = vmatpush2.msra.mxu0 0.0
    %1143 = vmatprep.subr.mxu0 0.0
    %1144 = vmatpush2.msra.mxu0 0.0
    %1145 = vmatprep.subr.mxu0 0.0
    %1146 = vmatpush2.msra.mxu0 0.0
    %1147 = vmatprep.subr.mxu0 0.0
    %1148 = vmatpush2.msra.mxu0 0.0
    %1149 = vmatprep.subr.mxu0 0.0
    %1150 = vmatpush2.msra.mxu0 0.0
    %1151 = vmatprep.subr.mxu0 0.0
    %1152 = vmatpush2.msra.mxu0 0.0
    %1153 = vmatprep.subr.mxu0 0.0
    %1154 = vmatpush2.msra.mxu0 0.0
    %1155 = vmatprep.subr.mxu0 0.0
    %1156 = vmatpush2.msra.mxu0 0.0
    %1157 = vmatprep.subr.mxu0 0.0
    %1158 = vmatpush2.msra.mxu0 0.0
    %1159 = vmatprep.subr.mxu0 0.0
    %1160 = vmatpush2.msra.mxu0 0.0
    %1161 = vmatprep.subr.mxu0 0.0
    %1162 = vmatpush2.msra.mxu0 0.0
    %1163 = vmatprep.subr.mxu0 0.0
    %1164 = vmatpush2.msra.mxu0 0.0
    %1165 = vmatprep.subr.mxu0 0.0
    %1166 = vmatpush2.msra.mxu0 0.0
    %1167 = vmatprep.subr.mxu0 0.0
    %1168 = vmatpush2.msra.mxu0 0.0
    %1169 = vmatprep.subr.mxu0 0.0
    %1170 = vmatpush2.msra.mxu0 0.0
    %1171 = vmatprep.subr.mxu0 0.0
    %1172 = vmatpush2.msra.mxu0 0.0
    %1173 = vmatprep.mubr.f32.mxu0 0.0
    %v1174 = vand.u32 %v1062, 4294901760
    %v1175 = vsub.f32 %v1062, %v1174
    %v1176 = vand.u32 %v1175, 4294901760
    %v1177 = vsub.f32 %v1175, %v1176
    %v1178 = vand.u32 %v1177, 4294901760
    %1179 = vmatmul.mubr.f32.gmra.mxu0 %v1178
    %v1180 = vpop.f32.mrf.mxu0
    %v1181 = vadd.f32 %v1091, %v1180
    %v1182 = vpop.f32.mrf.mxu0
    %1183 = vmatprep.mubr.f32.mxu0 0.0
    %v1184 = vand.u32 %v1063, 4294901760
    %v1185 = vsub.f32 %v1063, %v1184
    %v1186 = vand.u32 %v1185, 4294901760
    %v1187 = vsub.f32 %v1185, %v1186
    %v1188 = vand.u32 %v1187, 4294901760
    %1189 = vmatmul.mubr.f32.gmra.mxu0 %v1188
    %v1190 = vpop.f32.mrf.mxu0
    %v1191 = vadd.f32 %v1091, %v1190
    %v1192 = vpop.f32.mrf.mxu0
    %1193 = vmatprep.mubr.f32.mxu0 0.0
    %v1194 = vand.u32 %v1064, 4294901760
    %v1195 = vsub.f32 %v1064, %v1194
    %v1196 = vand.u32 %v1195, 4294901760
    %v1197 = vsub.f32 %v1195, %v1196
    %v1198 = vand.u32 %v1197, 4294901760
    %1199 = vmatmul.mubr.f32.gmra.mxu0 %v1198
    %v1200 = vpop.f32.mrf.mxu0
    %v1201 = vadd.f32 %v1091, %v1200
    %v1202 = vpop.f32.mrf.mxu0
    %1203 = vmatprep.mubr.f32.mxu0 0.0
    %v1204 = vand.u32 %v1065, 4294901760
    %v1205 = vsub.f32 %v1065, %v1204
    %v1206 = vand.u32 %v1205, 4294901760
    %v1207 = vsub.f32 %v1205, %v1206
    %v1208 = vand.u32 %v1207, 4294901760
    %1209 = vmatmul.mubr.f32.gmra.mxu0 %v1208
    %v1210 = vpop.f32.mrf.mxu0
    %v1211 = vadd.f32 %v1091, %v1210
    %v1212 = vpop.f32.mrf.mxu0
    %1213 = vmatprep.mubr.f32.mxu0 0.0
    %v1214 = vand.u32 %v1066, 4294901760
    %v1215 = vsub.f32 %v1066, %v1214
    %v1216 = vand.u32 %v1215, 4294901760
    %v1217 = vsub.f32 %v1215, %v1216
    %v1218 = vand.u32 %v1217, 4294901760
    %1219 = vmatmul.mubr.f32.gmra.mxu0 %v1218
    %v1220 = vpop.f32.mrf.mxu0
    %v1221 = vadd.f32 %v1091, %v1220
    %v1222 = vpop.f32.mrf.mxu0
    %1223 = vmatprep.mubr.f32.mxu0 0.0
    %v1224 = vand.u32 %v1067, 4294901760
    %v1225 = vsub.f32 %v1067, %v1224
    %v1226 = vand.u32 %v1225, 4294901760
    %v1227 = vsub.f32 %v1225, %v1226
    %v1228 = vand.u32 %v1227, 4294901760
    %1229 = vmatmul.mubr.f32.gmra.mxu0 %v1228
    %v1230 = vpop.f32.mrf.mxu0
    %v1231 = vadd.f32 %v1091, %v1230
    %v1232 = vpop.f32.mrf.mxu0
    %1233 = vmatprep.mubr.f32.mxu0 0.0
    %v1234 = vand.u32 %v1068, 4294901760
    %v1235 = vsub.f32 %v1068, %v1234
    %v1236 = vand.u32 %v1235, 4294901760
    %v1237 = vsub.f32 %v1235, %v1236
    %v1238 = vand.u32 %v1237, 4294901760
    %1239 = vmatmul.mubr.f32.gmra.mxu0 %v1238
    %v1240 = vpop.f32.mrf.mxu0
    %v1241 = vadd.f32 %v1091, %v1240
    %v1242 = vpop.f32.mrf.mxu0
    %1243 = vmatprep.mubr.f32.mxu0 0.0
    %v1244 = vand.u32 %v1069, 4294901760
    %v1245 = vsub.f32 %v1069, %v1244
    %v1246 = vand.u32 %v1245, 4294901760
    %v1247 = vsub.f32 %v1245, %v1246
    %v1248 = vand.u32 %v1247, 4294901760
    %1249 = vmatmul.mubr.f32.gmra.mxu0 %v1248
    %v1250 = vpop.f32.mrf.mxu0
    %v1251 = vadd.f32 %v1091, %v1250
    %v1252 = vpop.f32.mrf.mxu0
    %1253 = vdwg.mxu0
    %1254 = vmatprep.subr.mxu0 0.0
    %v1255 = vand.u32 %v1085, 4294901760
    %v1256 = vsub.f32 %v1085, %v1255
    %v1257 = vand.u32 %v1256, 4294901760
    %v1258 = vsub.f32 %v1256, %v1257
    %v1259 = vand.u32 %v1258, 4294901760
    %1260 = vmatpush1.msra.mxu0 %v1259
    %1261 = vmatprep.subr.mxu0 0.0
    %v1262 = vand.u32 %v1084, 4294901760
    %v1263 = vsub.f32 %v1084, %v1262
    %v1264 = vand.u32 %v1263, 4294901760
    %v1265 = vsub.f32 %v1263, %v1264
    %v1266 = vand.u32 %v1265, 4294901760
    %1267 = vmatpush1.msra.mxu0 %v1266
    %1268 = vmatprep.subr.mxu0 0.0
    %v1269 = vand.u32 %v1083, 4294901760
    %v1270 = vsub.f32 %v1083, %v1269
    %v1271 = vand.u32 %v1270, 4294901760
    %v1272 = vsub.f32 %v1270, %v1271
    %v1273 = vand.u32 %v1272, 4294901760
    %1274 = vmatpush1.msra.mxu0 %v1273
    %1275 = vmatprep.subr.mxu0 0.0
    %v1276 = vand.u32 %v1082, 4294901760
    %v1277 = vsub.f32 %v1082, %v1276
    %v1278 = vand.u32 %v1277, 4294901760
    %v1279 = vsub.f32 %v1277, %v1278
    %v1280 = vand.u32 %v1279, 4294901760
    %1281 = vmatpush1.msra.mxu0 %v1280
    %1282 = vmatprep.subr.mxu0 0.0
    %v1283 = vand.u32 %v1081, 4294901760
    %v1284 = vsub.f32 %v1081, %v1283
    %v1285 = vand.u32 %v1284, 4294901760
    %v1286 = vsub.f32 %v1284, %v1285
    %v1287 = vand.u32 %v1286, 4294901760
    %1288 = vmatpush1.msra.mxu0 %v1287
    %1289 = vmatprep.subr.mxu0 0.0
    %v1290 = vand.u32 %v1080, 4294901760
    %v1291 = vsub.f32 %v1080, %v1290
    %v1292 = vand.u32 %v1291, 4294901760
    %v1293 = vsub.f32 %v1291, %v1292
    %v1294 = vand.u32 %v1293, 4294901760
    %1295 = vmatpush1.msra.mxu0 %v1294
    %1296 = vmatprep.subr.mxu0 0.0
    %v1297 = vand.u32 %v1079, 4294901760
    %v1298 = vsub.f32 %v1079, %v1297
    %v1299 = vand.u32 %v1298, 4294901760
    %v1300 = vsub.f32 %v1298, %v1299
    %v1301 = vand.u32 %v1300, 4294901760
    %1302 = vmatpush1.msra.mxu0 %v1301
    %1303 = vmatprep.subr.mxu0 0.0
    %v1304 = vand.u32 %v1078, 4294901760
    %v1305 = vsub.f32 %v1078, %v1304
    %v1306 = vand.u32 %v1305, 4294901760
    %v1307 = vsub.f32 %v1305, %v1306
    %v1308 = vand.u32 %v1307, 4294901760
    %1309 = vmatpush1.msra.mxu0 %v1308
    %1310 = vmatprep.subr.mxu0 0.0
    %v1311 = vand.u32 %v1077, 4294901760
    %v1312 = vsub.f32 %v1077, %v1311
    %v1313 = vand.u32 %v1312, 4294901760
    %v1314 = vsub.f32 %v1312, %v1313
    %v1315 = vand.u32 %v1314, 4294901760
    %1316 = vmatpush1.msra.mxu0 %v1315
    %1317 = vmatprep.subr.mxu0 0.0
    %v1318 = vand.u32 %v1076, 4294901760
    %v1319 = vsub.f32 %v1076, %v1318
    %v1320 = vand.u32 %v1319, 4294901760
    %v1321 = vsub.f32 %v1319, %v1320
    %v1322 = vand.u32 %v1321, 4294901760
    %1323 = vmatpush1.msra.mxu0 %v1322
    %1324 = vmatprep.subr.mxu0 0.0
    %v1325 = vand.u32 %v1075, 4294901760
    %v1326 = vsub.f32 %v1075, %v1325
    %v1327 = vand.u32 %v1326, 4294901760
    %v1328 = vsub.f32 %v1326, %v1327
    %v1329 = vand.u32 %v1328, 4294901760
    %1330 = vmatpush1.msra.mxu0 %v1329
    %1331 = vmatprep.subr.mxu0 0.0
    %v1332 = vand.u32 %v1074, 4294901760
    %v1333 = vsub.f32 %v1074, %v1332
    %v1334 = vand.u32 %v1333, 4294901760
    %v1335 = vsub.f32 %v1333, %v1334
    %v1336 = vand.u32 %v1335, 4294901760
    %1337 = vmatpush1.msra.mxu0 %v1336
    %1338 = vmatprep.subr.mxu0 0.0
    %v1339 = vand.u32 %v1073, 4294901760
    %v1340 = vsub.f32 %v1073, %v1339
    %v1341 = vand.u32 %v1340, 4294901760
    %v1342 = vsub.f32 %v1340, %v1341
    %v1343 = vand.u32 %v1342, 4294901760
    %1344 = vmatpush1.msra.mxu0 %v1343
    %1345 = vmatprep.subr.mxu0 0.0
    %v1346 = vand.u32 %v1072, 4294901760
    %v1347 = vsub.f32 %v1072, %v1346
    %v1348 = vand.u32 %v1347, 4294901760
    %v1349 = vsub.f32 %v1347, %v1348
    %v1350 = vand.u32 %v1349, 4294901760
    %1351 = vmatpush1.msra.mxu0 %v1350
    %1352 = vmatprep.subr.mxu0 0.0
    %v1353 = vand.u32 %v1071, 4294901760
    %v1354 = vsub.f32 %v1071, %v1353
    %v1355 = vand.u32 %v1354, 4294901760
    %v1356 = vsub.f32 %v1354, %v1355
    %v1357 = vand.u32 %v1356, 4294901760
    %1358 = vmatpush1.msra.mxu0 %v1357
    %1359 = vmatprep.subr.mxu0 0.0
    %v1360 = vand.u32 %v1070, 4294901760
    %v1361 = vsub.f32 %v1070, %v1360
    %v1362 = vand.u32 %v1361, 4294901760
    %v1363 = vsub.f32 %v1361, %v1362
    %v1364 = vand.u32 %v1363, 4294901760
    %1365 = vmatpush1.msra.mxu0 %v1364
    %1366 = vmatprep.subr.mxu0 0.0
    %1367 = vmatpush2.msra.mxu0 0.0
    %1368 = vmatprep.subr.mxu0 0.0
    %1369 = vmatpush2.msra.mxu0 0.0
    %1370 = vmatprep.subr.mxu0 0.0
    %1371 = vmatpush2.msra.mxu0 0.0
    %1372 = vmatprep.subr.mxu0 0.0
    %1373 = vmatpush2.msra.mxu0 0.0
    %1374 = vmatprep.subr.mxu0 0.0
    %1375 = vmatpush2.msra.mxu0 0.0
    %1376 = vmatprep.subr.mxu0 0.0
    %1377 = vmatpush2.msra.mxu0 0.0
    %1378 = vmatprep.subr.mxu0 0.0
    %1379 = vmatpush2.msra.mxu0 0.0
    %1380 = vmatprep.subr.mxu0 0.0
    %1381 = vmatpush2.msra.mxu0 0.0
    %1382 = vmatprep.subr.mxu0 0.0
    %1383 = vmatpush2.msra.mxu0 0.0
    %1384 = vmatprep.subr.mxu0 0.0
    %1385 = vmatpush2.msra.mxu0 0.0
    %1386 = vmatprep.subr.mxu0 0.0
    %1387 = vmatpush2.msra.mxu0 0.0
    %1388 = vmatprep.subr.mxu0 0.0
    %1389 = vmatpush2.msra.mxu0 0.0
    %1390 = vmatprep.subr.mxu0 0.0
    %1391 = vmatpush2.msra.mxu0 0.0
    %1392 = vmatprep.subr.mxu0 0.0
    %1393 = vmatpush2.msra.mxu0 0.0
    %1394 = vmatprep.subr.mxu0 0.0
    %1395 = vmatpush2.msra.mxu0 0.0
    %1396 = vmatprep.subr.mxu0 0.0
    %1397 = vmatpush2.msra.mxu0 0.0
    %1398 = vmatprep.mubr.f32.mxu0 0.0
    %v1399 = vand.u32 %v1062, 4294901760
    %1400 = vmatmul.mubr.f32.gmra.mxu0 %v1399
    %v1401 = vpop.f32.mrf.mxu0
    %v1402 = vadd.f32 %v1181, %v1401
    %v1403 = vpop.f32.mrf.mxu0
    %1404 = vmatprep.mubr.f32.mxu0 0.0
    %v1405 = vand.u32 %v1063, 4294901760
    %1406 = vmatmul.mubr.f32.gmra.mxu0 %v1405
    %v1407 = vpop.f32.mrf.mxu0
    %v1408 = vadd.f32 %v1191, %v1407
    %v1409 = vpop.f32.mrf.mxu0
    %1410 = vmatprep.mubr.f32.mxu0 0.0
    %v1411 = vand.u32 %v1064, 4294901760
    %1412 = vmatmul.mubr.f32.gmra.mxu0 %v1411
    %v1413 = vpop.f32.mrf.mxu0
    %v1414 = vadd.f32 %v1201, %v1413
    %v1415 = vpop.f32.mrf.mxu0
    %1416 = vmatprep.mubr.f32.mxu0 0.0
    %v1417 = vand.u32 %v1065, 4294901760
    %1418 = vmatmul.mubr.f32.gmra.mxu0 %v1417
    %v1419 = vpop.f32.mrf.mxu0
    %v1420 = vadd.f32 %v1211, %v1419
    %v1421 = vpop.f32.mrf.mxu0
    %1422 = vmatprep.mubr.f32.mxu0 0.0
    %v1423 = vand.u32 %v1066, 4294901760
    %1424 = vmatmul.mubr.f32.gmra.mxu0 %v1423
    %v1425 = vpop.f32.mrf.mxu0
    %v1426 = vadd.f32 %v1221, %v1425
    %v1427 = vpop.f32.mrf.mxu0
    %1428 = vmatprep.mubr.f32.mxu0 0.0
    %v1429 = vand.u32 %v1067, 4294901760
    %1430 = vmatmul.mubr.f32.gmra.mxu0 %v1429
    %v1431 = vpop.f32.mrf.mxu0
    %v1432 = vadd.f32 %v1231, %v1431
    %v1433 = vpop.f32.mrf.mxu0
    %1434 = vmatprep.mubr.f32.mxu0 0.0
    %v1435 = vand.u32 %v1068, 4294901760
    %1436 = vmatmul.mubr.f32.gmra.mxu0 %v1435
    %v1437 = vpop.f32.mrf.mxu0
    %v1438 = vadd.f32 %v1241, %v1437
    %v1439 = vpop.f32.mrf.mxu0
    %1440 = vmatprep.mubr.f32.mxu0 0.0
    %v1441 = vand.u32 %v1069, 4294901760
    %1442 = vmatmul.mubr.f32.gmra.mxu0 %v1441
    %v1443 = vpop.f32.mrf.mxu0
    %v1444 = vadd.f32 %v1251, %v1443
    %v1445 = vpop.f32.mrf.mxu0
    %1446 = vdwg.mxu0
    %1447 = vmatprep.subr.mxu0 0.0
    %v1448 = vand.u32 %v1085, 4294901760
    %v1449 = vsub.f32 %v1085, %v1448
    %1450 = vmatpush1.msra.mxu0 %v1449
    %1451 = vmatprep.subr.mxu0 0.0
    %v1452 = vand.u32 %v1084, 4294901760
    %v1453 = vsub.f32 %v1084, %v1452
    %1454 = vmatpush1.msra.mxu0 %v1453
    %1455 = vmatprep.subr.mxu0 0.0
    %v1456 = vand.u32 %v1083, 4294901760
    %v1457 = vsub.f32 %v1083, %v1456
    %1458 = vmatpush1.msra.mxu0 %v1457
    %1459 = vmatprep.subr.mxu0 0.0
    %v1460 = vand.u32 %v1082, 4294901760
    %v1461 = vsub.f32 %v1082, %v1460
    %1462 = vmatpush1.msra.mxu0 %v1461
    %1463 = vmatprep.subr.mxu0 0.0
    %v1464 = vand.u32 %v1081, 4294901760
    %v1465 = vsub.f32 %v1081, %v1464
    %1466 = vmatpush1.msra.mxu0 %v1465
    %1467 = vmatprep.subr.mxu0 0.0
    %v1468 = vand.u32 %v1080, 4294901760
    %v1469 = vsub.f32 %v1080, %v1468
    %1470 = vmatpush1.msra.mxu0 %v1469
    %1471 = vmatprep.subr.mxu0 0.0
    %v1472 = vand.u32 %v1079, 4294901760
    %v1473 = vsub.f32 %v1079, %v1472
    %1474 = vmatpush1.msra.mxu0 %v1473
    %1475 = vmatprep.subr.mxu0 0.0
    %v1476 = vand.u32 %v1078, 4294901760
    %v1477 = vsub.f32 %v1078, %v1476
    %1478 = vmatpush1.msra.mxu0 %v1477
    %1479 = vmatprep.subr.mxu0 0.0
    %v1480 = vand.u32 %v1077, 4294901760
    %v1481 = vsub.f32 %v1077, %v1480
    %1482 = vmatpush1.msra.mxu0 %v1481
    %1483 = vmatprep.subr.mxu0 0.0
    %v1484 = vand.u32 %v1076, 4294901760
    %v1485 = vsub.f32 %v1076, %v1484
    %1486 = vmatpush1.msra.mxu0 %v1485
    %1487 = vmatprep.subr.mxu0 0.0
    %v1488 = vand.u32 %v1075, 4294901760
    %v1489 = vsub.f32 %v1075, %v1488
    %1490 = vmatpush1.msra.mxu0 %v1489
    %1491 = vmatprep.subr.mxu0 0.0
    %v1492 = vand.u32 %v1074, 4294901760
    %v1493 = vsub.f32 %v1074, %v1492
    %1494 = vmatpush1.msra.mxu0 %v1493
    %1495 = vmatprep.subr.mxu0 0.0
    %v1496 = vand.u32 %v1073, 4294901760
    %v1497 = vsub.f32 %v1073, %v1496
    %1498 = vmatpush1.msra.mxu0 %v1497
    %1499 = vmatprep.subr.mxu0 0.0
    %v1500 = vand.u32 %v1072, 4294901760
    %v1501 = vsub.f32 %v1072, %v1500
    %1502 = vmatpush1.msra.mxu0 %v1501
    %1503 = vmatprep.subr.mxu0 0.0
    %v1504 = vand.u32 %v1071, 4294901760
    %v1505 = vsub.f32 %v1071, %v1504
    %1506 = vmatpush1.msra.mxu0 %v1505
    %1507 = vmatprep.subr.mxu0 0.0
    %v1508 = vand.u32 %v1070, 4294901760
    %v1509 = vsub.f32 %v1070, %v1508
    %1510 = vmatpush1.msra.mxu0 %v1509
    %1511 = vmatprep.subr.mxu0 0.0
    %1512 = vmatpush2.msra.mxu0 0.0
    %1513 = vmatprep.subr.mxu0 0.0
    %1514 = vmatpush2.msra.mxu0 0.0
    %1515 = vmatprep.subr.mxu0 0.0
    %1516 = vmatpush2.msra.mxu0 0.0
    %1517 = vmatprep.subr.mxu0 0.0
    %1518 = vmatpush2.msra.mxu0 0.0
    %1519 = vmatprep.subr.mxu0 0.0
    %1520 = vmatpush2.msra.mxu0 0.0
    %1521 = vmatprep.subr.mxu0 0.0
    %1522 = vmatpush2.msra.mxu0 0.0
    %1523 = vmatprep.subr.mxu0 0.0
    %1524 = vmatpush2.msra.mxu0 0.0
    %1525 = vmatprep.subr.mxu0 0.0
    %1526 = vmatpush2.msra.mxu0 0.0
    %1527 = vmatprep.subr.mxu0 0.0
    %1528 = vmatpush2.msra.mxu0 0.0
    %1529 = vmatprep.subr.mxu0 0.0
    %1530 = vmatpush2.msra.mxu0 0.0
    %1531 = vmatprep.subr.mxu0 0.0
    %1532 = vmatpush2.msra.mxu0 0.0
    %1533 = vmatprep.subr.mxu0 0.0
    %1534 = vmatpush2.msra.mxu0 0.0
    %1535 = vmatprep.subr.mxu0 0.0
    %1536 = vmatpush2.msra.mxu0 0.0
    %1537 = vmatprep.subr.mxu0 0.0
    %1538 = vmatpush2.msra.mxu0 0.0
    %1539 = vmatprep.subr.mxu0 0.0
    %1540 = vmatpush2.msra.mxu0 0.0
    %1541 = vmatprep.subr.mxu0 0.0
    %1542 = vmatpush2.msra.mxu0 0.0
    %1543 = vmatprep.mubr.f32.mxu0 0.0
    %v1544 = vand.u32 %v1062, 4294901760
    %v1545 = vsub.f32 %v1062, %v1544
    %1546 = vmatmul.mubr.f32.gmra.mxu0 %v1545
    %v1547 = vpop.f32.mrf.mxu0
    %v1548 = vadd.f32 %v1402, %v1547
    %v1549 = vpop.f32.mrf.mxu0
    %1550 = vmatprep.mubr.f32.mxu0 0.0
    %v1551 = vand.u32 %v1063, 4294901760
    %v1552 = vsub.f32 %v1063, %v1551
    %1553 = vmatmul.mubr.f32.gmra.mxu0 %v1552
    %v1554 = vpop.f32.mrf.mxu0
    %v1555 = vadd.f32 %v1408, %v1554
    %v1556 = vpop.f32.mrf.mxu0
    %1557 = vmatprep.mubr.f32.mxu0 0.0
    %v1558 = vand.u32 %v1064, 4294901760
    %v1559 = vsub.f32 %v1064, %v1558
    %1560 = vmatmul.mubr.f32.gmra.mxu0 %v1559
    %v1561 = vpop.f32.mrf.mxu0
    %v1562 = vadd.f32 %v1414, %v1561
    %v1563 = vpop.f32.mrf.mxu0
    %1564 = vmatprep.mubr.f32.mxu0 0.0
    %v1565 = vand.u32 %v1065, 4294901760
    %v1566 = vsub.f32 %v1065, %v1565
    %1567 = vmatmul.mubr.f32.gmra.mxu0 %v1566
    %v1568 = vpop.f32.mrf.mxu0
    %v1569 = vadd.f32 %v1420, %v1568
    %v1570 = vpop.f32.mrf.mxu0
    %1571 = vmatprep.mubr.f32.mxu0 0.0
    %v1572 = vand.u32 %v1066, 4294901760
    %v1573 = vsub.f32 %v1066, %v1572
    %1574 = vmatmul.mubr.f32.gmra.mxu0 %v1573
    %v1575 = vpop.f32.mrf.mxu0
    %v1576 = vadd.f32 %v1426, %v1575
    %v1577 = vpop.f32.mrf.mxu0
    %1578 = vmatprep.mubr.f32.mxu0 0.0
    %v1579 = vand.u32 %v1067, 4294901760
    %v1580 = vsub.f32 %v1067, %v1579
    %1581 = vmatmul.mubr.f32.gmra.mxu0 %v1580
    %v1582 = vpop.f32.mrf.mxu0
    %v1583 = vadd.f32 %v1432, %v1582
    %v1584 = vpop.f32.mrf.mxu0
    %1585 = vmatprep.mubr.f32.mxu0 0.0
    %v1586 = vand.u32 %v1068, 4294901760
    %v1587 = vsub.f32 %v1068, %v1586
    %1588 = vmatmul.mubr.f32.gmra.mxu0 %v1587
    %v1589 = vpop.f32.mrf.mxu0
    %v1590 = vadd.f32 %v1438, %v1589
    %v1591 = vpop.f32.mrf.mxu0
    %1592 = vmatprep.mubr.f32.mxu0 0.0
    %v1593 = vand.u32 %v1069, 4294901760
    %v1594 = vsub.f32 %v1069, %v1593
    %1595 = vmatmul.mubr.f32.gmra.mxu0 %v1594
    %v1596 = vpop.f32.mrf.mxu0
    %v1597 = vadd.f32 %v1444, %v1596
    %v1598 = vpop.f32.mrf.mxu0
    %1599 = vdwg.mxu0
    %1600 = vmatprep.subr.mxu0 0.0
    %v1601 = vand.u32 %v1085, 4294901760
    %1602 = vmatpush1.msra.mxu0 %v1601
    %1603 = vmatprep.subr.mxu0 0.0
    %v1604 = vand.u32 %v1084, 4294901760
    %1605 = vmatpush1.msra.mxu0 %v1604
    %1606 = vmatprep.subr.mxu0 0.0
    %v1607 = vand.u32 %v1083, 4294901760
    %1608 = vmatpush1.msra.mxu0 %v1607
    %1609 = vmatprep.subr.mxu0 0.0
    %v1610 = vand.u32 %v1082, 4294901760
    %1611 = vmatpush1.msra.mxu0 %v1610
    %1612 = vmatprep.subr.mxu0 0.0
    %v1613 = vand.u32 %v1081, 4294901760
    %1614 = vmatpush1.msra.mxu0 %v1613
    %1615 = vmatprep.subr.mxu0 0.0
    %v1616 = vand.u32 %v1080, 4294901760
    %1617 = vmatpush1.msra.mxu0 %v1616
    %1618 = vmatprep.subr.mxu0 0.0
    %v1619 = vand.u32 %v1079, 4294901760
    %1620 = vmatpush1.msra.mxu0 %v1619
    %1621 = vmatprep.subr.mxu0 0.0
    %v1622 = vand.u32 %v1078, 4294901760
    %1623 = vmatpush1.msra.mxu0 %v1622
    %1624 = vmatprep.subr.mxu0 0.0
    %v1625 = vand.u32 %v1077, 4294901760
    %1626 = vmatpush1.msra.mxu0 %v1625
    %1627 = vmatprep.subr.mxu0 0.0
    %v1628 = vand.u32 %v1076, 4294901760
    %1629 = vmatpush1.msra.mxu0 %v1628
    %1630 = vmatprep.subr.mxu0 0.0
    %v1631 = vand.u32 %v1075, 4294901760
    %1632 = vmatpush1.msra.mxu0 %v1631
    %1633 = vmatprep.subr.mxu0 0.0
    %v1634 = vand.u32 %v1074, 4294901760
    %1635 = vmatpush1.msra.mxu0 %v1634
    %1636 = vmatprep.subr.mxu0 0.0
    %v1637 = vand.u32 %v1073, 4294901760
    %1638 = vmatpush1.msra.mxu0 %v1637
    %1639 = vmatprep.subr.mxu0 0.0
    %v1640 = vand.u32 %v1072, 4294901760
    %1641 = vmatpush1.msra.mxu0 %v1640
    %1642 = vmatprep.subr.mxu0 0.0
    %v1643 = vand.u32 %v1071, 4294901760
    %1644 = vmatpush1.msra.mxu0 %v1643
    %1645 = vmatprep.subr.mxu0 0.0
    %v1646 = vand.u32 %v1070, 4294901760
    %1647 = vmatpush1.msra.mxu0 %v1646
    %1648 = vmatprep.subr.mxu0 0.0
    %1649 = vmatpush2.msra.mxu0 0.0
    %1650 = vmatprep.subr.mxu0 0.0
    %1651 = vmatpush2.msra.mxu0 0.0
    %1652 = vmatprep.subr.mxu0 0.0
    %1653 = vmatpush2.msra.mxu0 0.0
    %1654 = vmatprep.subr.mxu0 0.0
    %1655 = vmatpush2.msra.mxu0 0.0
    %1656 = vmatprep.subr.mxu0 0.0
    %1657 = vmatpush2.msra.mxu0 0.0
    %1658 = vmatprep.subr.mxu0 0.0
    %1659 = vmatpush2.msra.mxu0 0.0
    %1660 = vmatprep.subr.mxu0 0.0
    %1661 = vmatpush2.msra.mxu0 0.0
    %1662 = vmatprep.subr.mxu0 0.0
    %1663 = vmatpush2.msra.mxu0 0.0
    %1664 = vmatprep.subr.mxu0 0.0
    %1665 = vmatpush2.msra.mxu0 0.0
    %1666 = vmatprep.subr.mxu0 0.0
    %1667 = vmatpush2.msra.mxu0 0.0
    %1668 = vmatprep.subr.mxu0 0.0
    %1669 = vmatpush2.msra.mxu0 0.0
    %1670 = vmatprep.subr.mxu0 0.0
    %1671 = vmatpush2.msra.mxu0 0.0
    %1672 = vmatprep.subr.mxu0 0.0
    %1673 = vmatpush2.msra.mxu0 0.0
    %1674 = vmatprep.subr.mxu0 0.0
    %1675 = vmatpush2.msra.mxu0 0.0
    %1676 = vmatprep.subr.mxu0 0.0
    %1677 = vmatpush2.msra.mxu0 0.0
    %1678 = vmatprep.subr.mxu0 0.0
    %1679 = vmatpush2.msra.mxu0 0.0
    %1680 = vmatprep.mubr.f32.mxu0 0.0
    %v1681 = vand.u32 %v1062, 4294901760
    %v1682 = vsub.f32 %v1062, %v1681
    %v1683 = vand.u32 %v1682, 4294901760
    %1684 = vmatmul.mubr.f32.gmra.mxu0 %v1683
    %v1685 = vpop.f32.mrf.mxu0
    %v1686 = vadd.f32 %v1548, %v1685
    %v1687 = vpop.f32.mrf.mxu0
    %1688 = vmatprep.mubr.f32.mxu0 0.0
    %v1689 = vand.u32 %v1063, 4294901760
    %v1690 = vsub.f32 %v1063, %v1689
    %v1691 = vand.u32 %v1690, 4294901760
    %1692 = vmatmul.mubr.f32.gmra.mxu0 %v1691
    %v1693 = vpop.f32.mrf.mxu0
    %v1694 = vadd.f32 %v1555, %v1693
    %v1695 = vpop.f32.mrf.mxu0
    %1696 = vmatprep.mubr.f32.mxu0 0.0
    %v1697 = vand.u32 %v1064, 4294901760
    %v1698 = vsub.f32 %v1064, %v1697
    %v1699 = vand.u32 %v1698, 4294901760
    %1700 = vmatmul.mubr.f32.gmra.mxu0 %v1699
    %v1701 = vpop.f32.mrf.mxu0
    %v1702 = vadd.f32 %v1562, %v1701
    %v1703 = vpop.f32.mrf.mxu0
    %1704 = vmatprep.mubr.f32.mxu0 0.0
    %v1705 = vand.u32 %v1065, 4294901760
    %v1706 = vsub.f32 %v1065, %v1705
    %v1707 = vand.u32 %v1706, 4294901760
    %1708 = vmatmul.mubr.f32.gmra.mxu0 %v1707
    %v1709 = vpop.f32.mrf.mxu0
    %v1710 = vadd.f32 %v1569, %v1709
    %v1711 = vpop.f32.mrf.mxu0
    %1712 = vmatprep.mubr.f32.mxu0 0.0
    %v1713 = vand.u32 %v1066, 4294901760
    %v1714 = vsub.f32 %v1066, %v1713
    %v1715 = vand.u32 %v1714, 4294901760
    %1716 = vmatmul.mubr.f32.gmra.mxu0 %v1715
    %v1717 = vpop.f32.mrf.mxu0
    %v1718 = vadd.f32 %v1576, %v1717
    %v1719 = vpop.f32.mrf.mxu0
    %1720 = vmatprep.mubr.f32.mxu0 0.0
    %v1721 = vand.u32 %v1067, 4294901760
    %v1722 = vsub.f32 %v1067, %v1721
    %v1723 = vand.u32 %v1722, 4294901760
    %1724 = vmatmul.mubr.f32.gmra.mxu0 %v1723
    %v1725 = vpop.f32.mrf.mxu0
    %v1726 = vadd.f32 %v1583, %v1725
    %v1727 = vpop.f32.mrf.mxu0
    %1728 = vmatprep.mubr.f32.mxu0 0.0
    %v1729 = vand.u32 %v1068, 4294901760
    %v1730 = vsub.f32 %v1068, %v1729
    %v1731 = vand.u32 %v1730, 4294901760
    %1732 = vmatmul.mubr.f32.gmra.mxu0 %v1731
    %v1733 = vpop.f32.mrf.mxu0
    %v1734 = vadd.f32 %v1590, %v1733
    %v1735 = vpop.f32.mrf.mxu0
    %1736 = vmatprep.mubr.f32.mxu0 0.0
    %v1737 = vand.u32 %v1069, 4294901760
    %v1738 = vsub.f32 %v1069, %v1737
    %v1739 = vand.u32 %v1738, 4294901760
    %1740 = vmatmul.mubr.f32.gmra.mxu0 %v1739
    %v1741 = vpop.f32.mrf.mxu0
    %v1742 = vadd.f32 %v1597, %v1741
    %v1743 = vpop.f32.mrf.mxu0
    %1744 = vdwg.mxu0
    %1745 = vmatprep.subr.mxu0 0.0
    %v1746 = vand.u32 %v1085, 4294901760
    %v1747 = vsub.f32 %v1085, %v1746
    %v1748 = vand.u32 %v1747, 4294901760
    %1749 = vmatpush1.msra.mxu0 %v1748
    %1750 = vmatprep.subr.mxu0 0.0
    %v1751 = vand.u32 %v1084, 4294901760
    %v1752 = vsub.f32 %v1084, %v1751
    %v1753 = vand.u32 %v1752, 4294901760
    %1754 = vmatpush1.msra.mxu0 %v1753
    %1755 = vmatprep.subr.mxu0 0.0
    %v1756 = vand.u32 %v1083, 4294901760
    %v1757 = vsub.f32 %v1083, %v1756
    %v1758 = vand.u32 %v1757, 4294901760
    %1759 = vmatpush1.msra.mxu0 %v1758
    %1760 = vmatprep.subr.mxu0 0.0
    %v1761 = vand.u32 %v1082, 4294901760
    %v1762 = vsub.f32 %v1082, %v1761
    %v1763 = vand.u32 %v1762, 4294901760
    %1764 = vmatpush1.msra.mxu0 %v1763
    %1765 = vmatprep.subr.mxu0 0.0
    %v1766 = vand.u32 %v1081, 4294901760
    %v1767 = vsub.f32 %v1081, %v1766
    %v1768 = vand.u32 %v1767, 4294901760
    %1769 = vmatpush1.msra.mxu0 %v1768
    %1770 = vmatprep.subr.mxu0 0.0
    %v1771 = vand.u32 %v1080, 4294901760
    %v1772 = vsub.f32 %v1080, %v1771
    %v1773 = vand.u32 %v1772, 4294901760
    %1774 = vmatpush1.msra.mxu0 %v1773
    %1775 = vmatprep.subr.mxu0 0.0
    %v1776 = vand.u32 %v1079, 4294901760
    %v1777 = vsub.f32 %v1079, %v1776
    %v1778 = vand.u32 %v1777, 4294901760
    %1779 = vmatpush1.msra.mxu0 %v1778
    %1780 = vmatprep.subr.mxu0 0.0
    %v1781 = vand.u32 %v1078, 4294901760
    %v1782 = vsub.f32 %v1078, %v1781
    %v1783 = vand.u32 %v1782, 4294901760
    %1784 = vmatpush1.msra.mxu0 %v1783
    %1785 = vmatprep.subr.mxu0 0.0
    %v1786 = vand.u32 %v1077, 4294901760
    %v1787 = vsub.f32 %v1077, %v1786
    %v1788 = vand.u32 %v1787, 4294901760
    %1789 = vmatpush1.msra.mxu0 %v1788
    %1790 = vmatprep.subr.mxu0 0.0
    %v1791 = vand.u32 %v1076, 4294901760
    %v1792 = vsub.f32 %v1076, %v1791
    %v1793 = vand.u32 %v1792, 4294901760
    %1794 = vmatpush1.msra.mxu0 %v1793
    %1795 = vmatprep.subr.mxu0 0.0
    %v1796 = vand.u32 %v1075, 4294901760
    %v1797 = vsub.f32 %v1075, %v1796
    %v1798 = vand.u32 %v1797, 4294901760
    %1799 = vmatpush1.msra.mxu0 %v1798
    %1800 = vmatprep.subr.mxu0 0.0
    %v1801 = vand.u32 %v1074, 4294901760
    %v1802 = vsub.f32 %v1074, %v1801
    %v1803 = vand.u32 %v1802, 4294901760
    %1804 = vmatpush1.msra.mxu0 %v1803
    %1805 = vmatprep.subr.mxu0 0.0
    %v1806 = vand.u32 %v1073, 4294901760
    %v1807 = vsub.f32 %v1073, %v1806
    %v1808 = vand.u32 %v1807, 4294901760
    %1809 = vmatpush1.msra.mxu0 %v1808
    %1810 = vmatprep.subr.mxu0 0.0
    %v1811 = vand.u32 %v1072, 4294901760
    %v1812 = vsub.f32 %v1072, %v1811
    %v1813 = vand.u32 %v1812, 4294901760
    %1814 = vmatpush1.msra.mxu0 %v1813
    %1815 = vmatprep.subr.mxu0 0.0
    %v1816 = vand.u32 %v1071, 4294901760
    %v1817 = vsub.f32 %v1071, %v1816
    %v1818 = vand.u32 %v1817, 4294901760
    %1819 = vmatpush1.msra.mxu0 %v1818
    %1820 = vmatprep.subr.mxu0 0.0
    %v1821 = vand.u32 %v1070, 4294901760
    %v1822 = vsub.f32 %v1070, %v1821
    %v1823 = vand.u32 %v1822, 4294901760
    %1824 = vmatpush1.msra.mxu0 %v1823
    %1825 = vmatprep.subr.mxu0 0.0
    %1826 = vmatpush2.msra.mxu0 0.0
    %1827 = vmatprep.subr.mxu0 0.0
    %1828 = vmatpush2.msra.mxu0 0.0
    %1829 = vmatprep.subr.mxu0 0.0
    %1830 = vmatpush2.msra.mxu0 0.0
    %1831 = vmatprep.subr.mxu0 0.0
    %1832 = vmatpush2.msra.mxu0 0.0
    %1833 = vmatprep.subr.mxu0 0.0
    %1834 = vmatpush2.msra.mxu0 0.0
    %1835 = vmatprep.subr.mxu0 0.0
    %1836 = vmatpush2.msra.mxu0 0.0
    %1837 = vmatprep.subr.mxu0 0.0
    %1838 = vmatpush2.msra.mxu0 0.0
    %1839 = vmatprep.subr.mxu0 0.0
    %1840 = vmatpush2.msra.mxu0 0.0
    %1841 = vmatprep.subr.mxu0 0.0
    %1842 = vmatpush2.msra.mxu0 0.0
    %1843 = vmatprep.subr.mxu0 0.0
    %1844 = vmatpush2.msra.mxu0 0.0
    %1845 = vmatprep.subr.mxu0 0.0
    %1846 = vmatpush2.msra.mxu0 0.0
    %1847 = vmatprep.subr.mxu0 0.0
    %1848 = vmatpush2.msra.mxu0 0.0
    %1849 = vmatprep.subr.mxu0 0.0
    %1850 = vmatpush2.msra.mxu0 0.0
    %1851 = vmatprep.subr.mxu0 0.0
    %1852 = vmatpush2.msra.mxu0 0.0
    %1853 = vmatprep.subr.mxu0 0.0
    %1854 = vmatpush2.msra.mxu0 0.0
    %1855 = vmatprep.subr.mxu0 0.0
    %1856 = vmatpush2.msra.mxu0 0.0
    %1857 = vmatprep.mubr.f32.mxu0 0.0
    %v1858 = vand.u32 %v1062, 4294901760
    %1859 = vmatmul.mubr.f32.gmra.mxu0 %v1858
    %v1860 = vpop.f32.mrf.mxu0
    %v1861 = vadd.f32 %v1686, %v1860
    %v1862 = vpop.f32.mrf.mxu0
    %1863 = vmatprep.mubr.f32.mxu0 0.0
    %v1864 = vand.u32 %v1063, 4294901760
    %1865 = vmatmul.mubr.f32.gmra.mxu0 %v1864
    %v1866 = vpop.f32.mrf.mxu0
    %v1867 = vadd.f32 %v1694, %v1866
    %v1868 = vpop.f32.mrf.mxu0
    %1869 = vmatprep.mubr.f32.mxu0 0.0
    %v1870 = vand.u32 %v1064, 4294901760
    %1871 = vmatmul.mubr.f32.gmra.mxu0 %v1870
    %v1872 = vpop.f32.mrf.mxu0
    %v1873 = vadd.f32 %v1702, %v1872
    %v1874 = vpop.f32.mrf.mxu0
    %1875 = vmatprep.mubr.f32.mxu0 0.0
    %v1876 = vand.u32 %v1065, 4294901760
    %1877 = vmatmul.mubr.f32.gmra.mxu0 %v1876
    %v1878 = vpop.f32.mrf.mxu0
    %v1879 = vadd.f32 %v1710, %v1878
    %v1880 = vpop.f32.mrf.mxu0
    %1881 = vmatprep.mubr.f32.mxu0 0.0
    %v1882 = vand.u32 %v1066, 4294901760
    %1883 = vmatmul.mubr.f32.gmra.mxu0 %v1882
    %v1884 = vpop.f32.mrf.mxu0
    %v1885 = vadd.f32 %v1718, %v1884
    %v1886 = vpop.f32.mrf.mxu0
    %1887 = vmatprep.mubr.f32.mxu0 0.0
    %v1888 = vand.u32 %v1067, 4294901760
    %1889 = vmatmul.mubr.f32.gmra.mxu0 %v1888
    %v1890 = vpop.f32.mrf.mxu0
    %v1891 = vadd.f32 %v1726, %v1890
    %v1892 = vpop.f32.mrf.mxu0
    %1893 = vmatprep.mubr.f32.mxu0 0.0
    %v1894 = vand.u32 %v1068, 4294901760
    %1895 = vmatmul.mubr.f32.gmra.mxu0 %v1894
    %v1896 = vpop.f32.mrf.mxu0
    %v1897 = vadd.f32 %v1734, %v1896
    %v1898 = vpop.f32.mrf.mxu0
    %1899 = vmatprep.mubr.f32.mxu0 0.0
    %v1900 = vand.u32 %v1069, 4294901760
    %1901 = vmatmul.mubr.f32.gmra.mxu0 %v1900
    %v1902 = vpop.f32.mrf.mxu0
    %v1903 = vadd.f32 %v1742, %v1902
    %v1904 = vpop.f32.mrf.mxu0
    %1905 = vdwg.mxu0
    %1906 = vmatprep.subr.mxu0 0.0
    %v1907 = vand.u32 %v1085, 4294901760
    %1908 = vmatpush1.msra.mxu0 %v1907
    %1909 = vmatprep.subr.mxu0 0.0
    %v1910 = vand.u32 %v1084, 4294901760
    %1911 = vmatpush1.msra.mxu0 %v1910
    %1912 = vmatprep.subr.mxu0 0.0
    %v1913 = vand.u32 %v1083, 4294901760
    %1914 = vmatpush1.msra.mxu0 %v1913
    %1915 = vmatprep.subr.mxu0 0.0
    %v1916 = vand.u32 %v1082, 4294901760
    %1917 = vmatpush1.msra.mxu0 %v1916
    %1918 = vmatprep.subr.mxu0 0.0
    %v1919 = vand.u32 %v1081, 4294901760
    %1920 = vmatpush1.msra.mxu0 %v1919
    %1921 = vmatprep.subr.mxu0 0.0
    %v1922 = vand.u32 %v1080, 4294901760
    %1923 = vmatpush1.msra.mxu0 %v1922
    %1924 = vmatprep.subr.mxu0 0.0
    %v1925 = vand.u32 %v1079, 4294901760
    %1926 = vmatpush1.msra.mxu0 %v1925
    %1927 = vmatprep.subr.mxu0 0.0
    %v1928 = vand.u32 %v1078, 4294901760
    %1929 = vmatpush1.msra.mxu0 %v1928
    %1930 = vmatprep.subr.mxu0 0.0
    %v1931 = vand.u32 %v1077, 4294901760
    %1932 = vmatpush1.msra.mxu0 %v1931
    %1933 = vmatprep.subr.mxu0 0.0
    %v1934 = vand.u32 %v1076, 4294901760
    %1935 = vmatpush1.msra.mxu0 %v1934
    %1936 = vmatprep.subr.mxu0 0.0
    %v1937 = vand.u32 %v1075, 4294901760
    %1938 = vmatpush1.msra.mxu0 %v1937
    %1939 = vmatprep.subr.mxu0 0.0
    %v1940 = vand.u32 %v1074, 4294901760
    %1941 = vmatpush1.msra.mxu0 %v1940
    %1942 = vmatprep.subr.mxu0 0.0
    %v1943 = vand.u32 %v1073, 4294901760
    %1944 = vmatpush1.msra.mxu0 %v1943
    %1945 = vmatprep.subr.mxu0 0.0
    %v1946 = vand.u32 %v1072, 4294901760
    %1947 = vmatpush1.msra.mxu0 %v1946
    %1948 = vmatprep.subr.mxu0 0.0
    %v1949 = vand.u32 %v1071, 4294901760
    %1950 = vmatpush1.msra.mxu0 %v1949
    %1951 = vmatprep.subr.mxu0 0.0
    %v1952 = vand.u32 %v1070, 4294901760
    %1953 = vmatpush1.msra.mxu0 %v1952
    %1954 = vmatprep.subr.mxu0 0.0
    %1955 = vmatpush2.msra.mxu0 0.0
    %1956 = vmatprep.subr.mxu0 0.0
    %1957 = vmatpush2.msra.mxu0 0.0
    %1958 = vmatprep.subr.mxu0 0.0
    %1959 = vmatpush2.msra.mxu0 0.0
    %1960 = vmatprep.subr.mxu0 0.0
    %1961 = vmatpush2.msra.mxu0 0.0
    %1962 = vmatprep.subr.mxu0 0.0
    %1963 = vmatpush2.msra.mxu0 0.0
    %1964 = vmatprep.subr.mxu0 0.0
    %1965 = vmatpush2.msra.mxu0 0.0
    %1966 = vmatprep.subr.mxu0 0.0
    %1967 = vmatpush2.msra.mxu0 0.0
    %1968 = vmatprep.subr.mxu0 0.0
    %1969 = vmatpush2.msra.mxu0 0.0
    %1970 = vmatprep.subr.mxu0 0.0
    %1971 = vmatpush2.msra.mxu0 0.0
    %1972 = vmatprep.subr.mxu0 0.0
    %1973 = vmatpush2.msra.mxu0 0.0
    %1974 = vmatprep.subr.mxu0 0.0
    %1975 = vmatpush2.msra.mxu0 0.0
    %1976 = vmatprep.subr.mxu0 0.0
    %1977 = vmatpush2.msra.mxu0 0.0
    %1978 = vmatprep.subr.mxu0 0.0
    %1979 = vmatpush2.msra.mxu0 0.0
    %1980 = vmatprep.subr.mxu0 0.0
    %1981 = vmatpush2.msra.mxu0 0.0
    %1982 = vmatprep.subr.mxu0 0.0
    %1983 = vmatpush2.msra.mxu0 0.0
    %1984 = vmatprep.subr.mxu0 0.0
    %1985 = vmatpush2.msra.mxu0 0.0
    %1986 = vmatprep.mubr.f32.mxu0 0.0
    %v1987 = vand.u32 %v1062, 4294901760
    %1988 = vmatmul.mubr.f32.gmra.mxu0 %v1987
    %v1989 = vpop.f32.mrf.mxu0
    %v1990 = vadd.f32 %v1861, %v1989
    %v1991 = vpop.f32.mrf.mxu0
    %1992 = vmatprep.mubr.f32.mxu0 0.0
    %v1993 = vand.u32 %v1063, 4294901760
    %1994 = vmatmul.mubr.f32.gmra.mxu0 %v1993
    %v1995 = vpop.f32.mrf.mxu0
    %v1996 = vadd.f32 %v1867, %v1995
    %v1997 = vpop.f32.mrf.mxu0
    %1998 = vmatprep.mubr.f32.mxu0 0.0
    %v1999 = vand.u32 %v1064, 4294901760
    %2000 = vmatmul.mubr.f32.gmra.mxu0 %v1999
    %v2001 = vpop.f32.mrf.mxu0
    %v2002 = vadd.f32 %v1873, %v2001
    %v2003 = vpop.f32.mrf.mxu0
    %2004 = vmatprep.mubr.f32.mxu0 0.0
    %v2005 = vand.u32 %v1065, 4294901760
    %2006 = vmatmul.mubr.f32.gmra.mxu0 %v2005
    %v2007 = vpop.f32.mrf.mxu0
    %v2008 = vadd.f32 %v1879, %v2007
    %v2009 = vpop.f32.mrf.mxu0
    %2010 = vmatprep.mubr.f32.mxu0 0.0
    %v2011 = vand.u32 %v1066, 4294901760
    %2012 = vmatmul.mubr.f32.gmra.mxu0 %v2011
    %v2013 = vpop.f32.mrf.mxu0
    %v2014 = vadd.f32 %v1885, %v2013
    %v2015 = vpop.f32.mrf.mxu0
    %2016 = vmatprep.mubr.f32.mxu0 0.0
    %v2017 = vand.u32 %v1067, 4294901760
    %2018 = vmatmul.mubr.f32.gmra.mxu0 %v2017
    %v2019 = vpop.f32.mrf.mxu0
    %v2020 = vadd.f32 %v1891, %v2019
    %v2021 = vpop.f32.mrf.mxu0
    %2022 = vmatprep.mubr.f32.mxu0 0.0
    %v2023 = vand.u32 %v1068, 4294901760
    %2024 = vmatmul.mubr.f32.gmra.mxu0 %v2023
    %v2025 = vpop.f32.mrf.mxu0
    %v2026 = vadd.f32 %v1897, %v2025
    %v2027 = vpop.f32.mrf.mxu0
    %2028 = vmatprep.mubr.f32.mxu0 0.0
    %v2029 = vand.u32 %v1069, 4294901760
    %2030 = vmatmul.mubr.f32.gmra.mxu0 %v2029
    %v2031 = vpop.f32.mrf.mxu0
    %v2032 = vadd.f32 %v1903, %v2031
    %v2033 = vpop.f32.mrf.mxu0
    %2034 = vdwg.mxu0
    %v2035 = vmax.f32 %v1990, 0.0
    %v2036 = vmax.f32 %v1996, 0.0
    %v2037 = vmax.f32 %v2002, 0.0
    %v2038 = vmax.f32 %v2008, 0.0
    %v2039 = vmax.f32 %v2014, 0.0
    %v2040 = vmax.f32 %v2020, 0.0
    %v2041 = vmax.f32 %v2026, 0.0
    %v2042 = vmax.f32 %v2032, 0.0
    %v2043 = vld [vmem:[#allocation8] sm:$0xff]
    %v2044 = vld [vmem:[#allocation8 + $0x8] sm:$0xff]
    %v2045 = vld [vmem:[#allocation8 + $0x10] sm:$0xff]
    %v2046 = vld [vmem:[#allocation8 + $0x18] sm:$0xff]
    %v2047 = vld [vmem:[#allocation8 + $0x20] sm:$0xff]
    %v2048 = vld [vmem:[#allocation8 + $0x28] sm:$0xff]
    %v2049 = vld [vmem:[#allocation8 + $0x30] sm:$0xff]
    %v2050 = vld [vmem:[#allocation8 + $0x38] sm:$0xff]
    %v2051 = vld [vmem:[#allocation8 + $0x40] sm:$0xff]
    %v2052 = vld [vmem:[#allocation8 + $0x48] sm:$0xff]
    %v2053 = vld [vmem:[#allocation8 + $0x50] sm:$0xff]
    %v2054 = vld [vmem:[#allocation8 + $0x58] sm:$0xff]
    %v2055 = vld [vmem:[#allocation8 + $0x60] sm:$0xff]
    %v2056 = vld [vmem:[#allocation8 + $0x68] sm:$0xff]
    %v2057 = vld [vmem:[#allocation8 + $0x70] sm:$0xff]
    %v2058 = vld [vmem:[#allocation8 + $0x78] sm:$0xff]
    %v2059 = vld [vmem:[%s6] sm:$0x1]
    %v2061 = vlaneseq
    %v2062 = vshrl.u32 %v2061, 7
    %v2063 = vsub.s32 0, %v2062
    %v2064 = vrot.slane %v2059, %v2063
    %2066 = vmatprep.subr.mxu0 0.0
    %v2067 = vand.u32 %v2058, 4294901760
    %2068 = vmatpush1.msra.mxu0 %v2067
    %2069 = vmatprep.subr.mxu0 0.0
    %v2070 = vand.u32 %v2057, 4294901760
    %2071 = vmatpush1.msra.mxu0 %v2070
    %2072 = vmatprep.subr.mxu0 0.0
    %v2073 = vand.u32 %v2056, 4294901760
    %2074 = vmatpush1.msra.mxu0 %v2073
    %2075 = vmatprep.subr.mxu0 0.0
    %v2076 = vand.u32 %v2055, 4294901760
    %2077 = vmatpush1.msra.mxu0 %v2076
    %2078 = vmatprep.subr.mxu0 0.0
    %v2079 = vand.u32 %v2054, 4294901760
    %2080 = vmatpush1.msra.mxu0 %v2079
    %2081 = vmatprep.subr.mxu0 0.0
    %v2082 = vand.u32 %v2053, 4294901760
    %2083 = vmatpush1.msra.mxu0 %v2082
    %2084 = vmatprep.subr.mxu0 0.0
    %v2085 = vand.u32 %v2052, 4294901760
    %2086 = vmatpush1.msra.mxu0 %v2085
    %2087 = vmatprep.subr.mxu0 0.0
    %v2088 = vand.u32 %v2051, 4294901760
    %2089 = vmatpush1.msra.mxu0 %v2088
    %2090 = vmatprep.subr.mxu0 0.0
    %v2091 = vand.u32 %v2050, 4294901760
    %2092 = vmatpush1.msra.mxu0 %v2091
    %2093 = vmatprep.subr.mxu0 0.0
    %v2094 = vand.u32 %v2049, 4294901760
    %2095 = vmatpush1.msra.mxu0 %v2094
    %2096 = vmatprep.subr.mxu0 0.0
    %v2097 = vand.u32 %v2048, 4294901760
    %2098 = vmatpush1.msra.mxu0 %v2097
    %2099 = vmatprep.subr.mxu0 0.0
    %v2100 = vand.u32 %v2047, 4294901760
    %2101 = vmatpush1.msra.mxu0 %v2100
    %2102 = vmatprep.subr.mxu0 0.0
    %v2103 = vand.u32 %v2046, 4294901760
    %2104 = vmatpush1.msra.mxu0 %v2103
    %2105 = vmatprep.subr.mxu0 0.0
    %v2106 = vand.u32 %v2045, 4294901760
    %2107 = vmatpush1.msra.mxu0 %v2106
    %2108 = vmatprep.subr.mxu0 0.0
    %v2109 = vand.u32 %v2044, 4294901760
    %2110 = vmatpush1.msra.mxu0 %v2109
    %2111 = vmatprep.subr.mxu0 0.0
    %v2112 = vand.u32 %v2043, 4294901760
    %2113 = vmatpush1.msra.mxu0 %v2112
    %2114 = vmatprep.subr.mxu0 0.0
    %2115 = vmatpush2.msra.mxu0 0.0
    %2116 = vmatprep.subr.mxu0 0.0
    %2117 = vmatpush2.msra.mxu0 0.0
    %2118 = vmatprep.subr.mxu0 0.0
    %2119 = vmatpush2.msra.mxu0 0.0
    %2120 = vmatprep.subr.mxu0 0.0
    %2121 = vmatpush2.msra.mxu0 0.0
    %2122 = vmatprep.subr.mxu0 0.0
    %2123 = vmatpush2.msra.mxu0 0.0
    %2124 = vmatprep.subr.mxu0 0.0
    %2125 = vmatpush2.msra.mxu0 0.0
    %2126 = vmatprep.subr.mxu0 0.0
    %2127 = vmatpush2.msra.mxu0 0.0
    %2128 = vmatprep.subr.mxu0 0.0
    %2129 = vmatpush2.msra.mxu0 0.0
    %2130 = vmatprep.subr.mxu0 0.0
    %2131 = vmatpush2.msra.mxu0 0.0
    %2132 = vmatprep.subr.mxu0 0.0
    %2133 = vmatpush2.msra.mxu0 0.0
    %2134 = vmatprep.subr.mxu0 0.0
    %2135 = vmatpush2.msra.mxu0 0.0
    %2136 = vmatprep.subr.mxu0 0.0
    %2137 = vmatpush2.msra.mxu0 0.0
    %2138 = vmatprep.subr.mxu0 0.0
    %2139 = vmatpush2.msra.mxu0 0.0
    %2140 = vmatprep.subr.mxu0 0.0
    %2141 = vmatpush2.msra.mxu0 0.0
    %2142 = vmatprep.subr.mxu0 0.0
    %2143 = vmatpush2.msra.mxu0 0.0
    %2144 = vmatprep.subr.mxu0 0.0
    %2145 = vmatpush2.msra.mxu0 0.0
    %2146 = vmatprep.mubr.f32.mxu0 0.0
    %v2147 = vand.u32 %v2035, 4294901760
    %v2148 = vsub.f32 %v2035, %v2147
    %v2149 = vand.u32 %v2148, 4294901760
    %v2150 = vsub.f32 %v2148, %v2149
    %v2151 = vand.u32 %v2150, 4294901760
    %2152 = vmatmul.mubr.f32.gmra.mxu0 %v2151
    %v2153 = vpop.f32.mrf.mxu0
    %v2154 = vadd.f32 %v2064, %v2153
    %v2155 = vpop.f32.mrf.mxu0
    %2156 = vmatprep.mubr.f32.mxu0 0.0
    %v2157 = vand.u32 %v2036, 4294901760
    %v2158 = vsub.f32 %v2036, %v2157
    %v2159 = vand.u32 %v2158, 4294901760
    %v2160 = vsub.f32 %v2158, %v2159
    %v2161 = vand.u32 %v2160, 4294901760
    %2162 = vmatmul.mubr.f32.gmra.mxu0 %v2161
    %v2163 = vpop.f32.mrf.mxu0
    %v2164 = vadd.f32 %v2064, %v2163
    %v2165 = vpop.f32.mrf.mxu0
    %2166 = vmatprep.mubr.f32.mxu0 0.0
    %v2167 = vand.u32 %v2037, 4294901760
    %v2168 = vsub.f32 %v2037, %v2167
    %v2169 = vand.u32 %v2168, 4294901760
    %v2170 = vsub.f32 %v2168, %v2169
    %v2171 = vand.u32 %v2170, 4294901760
    %2172 = vmatmul.mubr.f32.gmra.mxu0 %v2171
    %v2173 = vpop.f32.mrf.mxu0
    %v2174 = vadd.f32 %v2064, %v2173
    %v2175 = vpop.f32.mrf.mxu0
    %2176 = vmatprep.mubr.f32.mxu0 0.0
    %v2177 = vand.u32 %v2038, 4294901760
    %v2178 = vsub.f32 %v2038, %v2177
    %v2179 = vand.u32 %v2178, 4294901760
    %v2180 = vsub.f32 %v2178, %v2179
    %v2181 = vand.u32 %v2180, 4294901760
    %2182 = vmatmul.mubr.f32.gmra.mxu0 %v2181
    %v2183 = vpop.f32.mrf.mxu0
    %v2184 = vadd.f32 %v2064, %v2183
    %v2185 = vpop.f32.mrf.mxu0
    %2186 = vmatprep.mubr.f32.mxu0 0.0
    %v2187 = vand.u32 %v2039, 4294901760
    %v2188 = vsub.f32 %v2039, %v2187
    %v2189 = vand.u32 %v2188, 4294901760
    %v2190 = vsub.f32 %v2188, %v2189
    %v2191 = vand.u32 %v2190, 4294901760
    %2192 = vmatmul.mubr.f32.gmra.mxu0 %v2191
    %v2193 = vpop.f32.mrf.mxu0
    %v2194 = vadd.f32 %v2064, %v2193
    %v2195 = vpop.f32.mrf.mxu0
    %2196 = vmatprep.mubr.f32.mxu0 0.0
    %v2197 = vand.u32 %v2040, 4294901760
    %v2198 = vsub.f32 %v2040, %v2197
    %v2199 = vand.u32 %v2198, 4294901760
    %v2200 = vsub.f32 %v2198, %v2199
    %v2201 = vand.u32 %v2200, 4294901760
    %2202 = vmatmul.mubr.f32.gmra.mxu0 %v2201
    %v2203 = vpop.f32.mrf.mxu0
    %v2204 = vadd.f32 %v2064, %v2203
    %v2205 = vpop.f32.mrf.mxu0
    %2206 = vmatprep.mubr.f32.mxu0 0.0
    %v2207 = vand.u32 %v2041, 4294901760
    %v2208 = vsub.f32 %v2041, %v2207
    %v2209 = vand.u32 %v2208, 4294901760
    %v2210 = vsub.f32 %v2208, %v2209
    %v2211 = vand.u32 %v2210, 4294901760
    %2212 = vmatmul.mubr.f32.gmra.mxu0 %v2211
    %v2213 = vpop.f32.mrf.mxu0
    %v2214 = vadd.f32 %v2064, %v2213
    %v2215 = vpop.f32.mrf.mxu0
    %2216 = vmatprep.mubr.f32.mxu0 0.0
    %v2217 = vand.u32 %v2042, 4294901760
    %v2218 = vsub.f32 %v2042, %v2217
    %v2219 = vand.u32 %v2218, 4294901760
    %v2220 = vsub.f32 %v2218, %v2219
    %v2221 = vand.u32 %v2220, 4294901760
    %2222 = vmatmul.mubr.f32.gmra.mxu0 %v2221
    %v2223 = vpop.f32.mrf.mxu0
    %v2224 = vadd.f32 %v2064, %v2223
    %v2225 = vpop.f32.mrf.mxu0
    %2226 = vdwg.mxu0
    %2227 = vmatprep.subr.mxu0 0.0
    %v2228 = vand.u32 %v2058, 4294901760
    %v2229 = vsub.f32 %v2058, %v2228
    %v2230 = vand.u32 %v2229, 4294901760
    %v2231 = vsub.f32 %v2229, %v2230
    %v2232 = vand.u32 %v2231, 4294901760
    %2233 = vmatpush1.msra.mxu0 %v2232
    %2234 = vmatprep.subr.mxu0 0.0
    %v2235 = vand.u32 %v2057, 4294901760
    %v2236 = vsub.f32 %v2057, %v2235
    %v2237 = vand.u32 %v2236, 4294901760
    %v2238 = vsub.f32 %v2236, %v2237
    %v2239 = vand.u32 %v2238, 4294901760
    %2240 = vmatpush1.msra.mxu0 %v2239
    %2241 = vmatprep.subr.mxu0 0.0
    %v2242 = vand.u32 %v2056, 4294901760
    %v2243 = vsub.f32 %v2056, %v2242
    %v2244 = vand.u32 %v2243, 4294901760
    %v2245 = vsub.f32 %v2243, %v2244
    %v2246 = vand.u32 %v2245, 4294901760
    %2247 = vmatpush1.msra.mxu0 %v2246
    %2248 = vmatprep.subr.mxu0 0.0
    %v2249 = vand.u32 %v2055, 4294901760
    %v2250 = vsub.f32 %v2055, %v2249
    %v2251 = vand.u32 %v2250, 4294901760
    %v2252 = vsub.f32 %v2250, %v2251
    %v2253 = vand.u32 %v2252, 4294901760
    %2254 = vmatpush1.msra.mxu0 %v2253
    %2255 = vmatprep.subr.mxu0 0.0
    %v2256 = vand.u32 %v2054, 4294901760
    %v2257 = vsub.f32 %v2054, %v2256
    %v2258 = vand.u32 %v2257, 4294901760
    %v2259 = vsub.f32 %v2257, %v2258
    %v2260 = vand.u32 %v2259, 4294901760
    %2261 = vmatpush1.msra.mxu0 %v2260
    %2262 = vmatprep.subr.mxu0 0.0
    %v2263 = vand.u32 %v2053, 4294901760
    %v2264 = vsub.f32 %v2053, %v2263
    %v2265 = vand.u32 %v2264, 4294901760
    %v2266 = vsub.f32 %v2264, %v2265
    %v2267 = vand.u32 %v2266, 4294901760
    %2268 = vmatpush1.msra.mxu0 %v2267
    %2269 = vmatprep.subr.mxu0 0.0
    %v2270 = vand.u32 %v2052, 4294901760
    %v2271 = vsub.f32 %v2052, %v2270
    %v2272 = vand.u32 %v2271, 4294901760
    %v2273 = vsub.f32 %v2271, %v2272
    %v2274 = vand.u32 %v2273, 4294901760
    %2275 = vmatpush1.msra.mxu0 %v2274
    %2276 = vmatprep.subr.mxu0 0.0
    %v2277 = vand.u32 %v2051, 4294901760
    %v2278 = vsub.f32 %v2051, %v2277
    %v2279 = vand.u32 %v2278, 4294901760
    %v2280 = vsub.f32 %v2278, %v2279
    %v2281 = vand.u32 %v2280, 4294901760
    %2282 = vmatpush1.msra.mxu0 %v2281
    %2283 = vmatprep.subr.mxu0 0.0
    %v2284 = vand.u32 %v2050, 4294901760
    %v2285 = vsub.f32 %v2050, %v2284
    %v2286 = vand.u32 %v2285, 4294901760
    %v2287 = vsub.f32 %v2285, %v2286
    %v2288 = vand.u32 %v2287, 4294901760
    %2289 = vmatpush1.msra.mxu0 %v2288
    %2290 = vmatprep.subr.mxu0 0.0
    %v2291 = vand.u32 %v2049, 4294901760
    %v2292 = vsub.f32 %v2049, %v2291
    %v2293 = vand.u32 %v2292, 4294901760
    %v2294 = vsub.f32 %v2292, %v2293
    %v2295 = vand.u32 %v2294, 4294901760
    %2296 = vmatpush1.msra.mxu0 %v2295
    %2297 = vmatprep.subr.mxu0 0.0
    %v2298 = vand.u32 %v2048, 4294901760
    %v2299 = vsub.f32 %v2048, %v2298
    %v2300 = vand.u32 %v2299, 4294901760
    %v2301 = vsub.f32 %v2299, %v2300
    %v2302 = vand.u32 %v2301, 4294901760
    %2303 = vmatpush1.msra.mxu0 %v2302
    %2304 = vmatprep.subr.mxu0 0.0
    %v2305 = vand.u32 %v2047, 4294901760
    %v2306 = vsub.f32 %v2047, %v2305
    %v2307 = vand.u32 %v2306, 4294901760
    %v2308 = vsub.f32 %v2306, %v2307
    %v2309 = vand.u32 %v2308, 4294901760
    %2310 = vmatpush1.msra.mxu0 %v2309
    %2311 = vmatprep.subr.mxu0 0.0
    %v2312 = vand.u32 %v2046, 4294901760
    %v2313 = vsub.f32 %v2046, %v2312
    %v2314 = vand.u32 %v2313, 4294901760
    %v2315 = vsub.f32 %v2313, %v2314
    %v2316 = vand.u32 %v2315, 4294901760
    %2317 = vmatpush1.msra.mxu0 %v2316
    %2318 = vmatprep.subr.mxu0 0.0
    %v2319 = vand.u32 %v2045, 4294901760
    %v2320 = vsub.f32 %v2045, %v2319
    %v2321 = vand.u32 %v2320, 4294901760
    %v2322 = vsub.f32 %v2320, %v2321
    %v2323 = vand.u32 %v2322, 4294901760
    %2324 = vmatpush1.msra.mxu0 %v2323
    %2325 = vmatprep.subr.mxu0 0.0
    %v2326 = vand.u32 %v2044, 4294901760
    %v2327 = vsub.f32 %v2044, %v2326
    %v2328 = vand.u32 %v2327, 4294901760
    %v2329 = vsub.f32 %v2327, %v2328
    %v2330 = vand.u32 %v2329, 4294901760
    %2331 = vmatpush1.msra.mxu0 %v2330
    %2332 = vmatprep.subr.mxu0 0.0
    %v2333 = vand.u32 %v2043, 4294901760
    %v2334 = vsub.f32 %v2043, %v2333
    %v2335 = vand.u32 %v2334, 4294901760
    %v2336 = vsub.f32 %v2334, %v2335
    %v2337 = vand.u32 %v2336, 4294901760
    %2338 = vmatpush1.msra.mxu0 %v2337
    %2339 = vmatprep.subr.mxu0 0.0
    %2340 = vmatpush2.msra.mxu0 0.0
    %2341 = vmatprep.subr.mxu0 0.0
    %2342 = vmatpush2.msra.mxu0 0.0
    %2343 = vmatprep.subr.mxu0 0.0
    %2344 = vmatpush2.msra.mxu0 0.0
    %2345 = vmatprep.subr.mxu0 0.0
    %2346 = vmatpush2.msra.mxu0 0.0
    %2347 = vmatprep.subr.mxu0 0.0
    %2348 = vmatpush2.msra.mxu0 0.0
    %2349 = vmatprep.subr.mxu0 0.0
    %2350 = vmatpush2.msra.mxu0 0.0
    %2351 = vmatprep.subr.mxu0 0.0
    %2352 = vmatpush2.msra.mxu0 0.0
    %2353 = vmatprep.subr.mxu0 0.0
    %2354 = vmatpush2.msra.mxu0 0.0
    %2355 = vmatprep.subr.mxu0 0.0
    %2356 = vmatpush2.msra.mxu0 0.0
    %2357 = vmatprep.subr.mxu0 0.0
    %2358 = vmatpush2.msra.mxu0 0.0
    %2359 = vmatprep.subr.mxu0 0.0
    %2360 = vmatpush2.msra.mxu0 0.0
    %2361 = vmatprep.subr.mxu0 0.0
    %2362 = vmatpush2.msra.mxu0 0.0
    %2363 = vmatprep.subr.mxu0 0.0
    %2364 = vmatpush2.msra.mxu0 0.0
    %2365 = vmatprep.subr.mxu0 0.0
    %2366 = vmatpush2.msra.mxu0 0.0
    %2367 = vmatprep.subr.mxu0 0.0
    %2368 = vmatpush2.msra.mxu0 0.0
    %2369 = vmatprep.subr.mxu0 0.0
    %2370 = vmatpush2.msra.mxu0 0.0
    %2371 = vmatprep.mubr.f32.mxu0 0.0
    %v2372 = vand.u32 %v2035, 4294901760
    %2373 = vmatmul.mubr.f32.gmra.mxu0 %v2372
    %v2374 = vpop.f32.mrf.mxu0
    %v2375 = vadd.f32 %v2154, %v2374
    %v2376 = vpop.f32.mrf.mxu0
    %2377 = vmatprep.mubr.f32.mxu0 0.0
    %v2378 = vand.u32 %v2036, 4294901760
    %2379 = vmatmul.mubr.f32.gmra.mxu0 %v2378
    %v2380 = vpop.f32.mrf.mxu0
    %v2381 = vadd.f32 %v2164, %v2380
    %v2382 = vpop.f32.mrf.mxu0
    %2383 = vmatprep.mubr.f32.mxu0 0.0
    %v2384 = vand.u32 %v2037, 4294901760
    %2385 = vmatmul.mubr.f32.gmra.mxu0 %v2384
    %v2386 = vpop.f32.mrf.mxu0
    %v2387 = vadd.f32 %v2174, %v2386
    %v2388 = vpop.f32.mrf.mxu0
    %2389 = vmatprep.mubr.f32.mxu0 0.0
    %v2390 = vand.u32 %v2038, 4294901760
    %2391 = vmatmul.mubr.f32.gmra.mxu0 %v2390
    %v2392 = vpop.f32.mrf.mxu0
    %v2393 = vadd.f32 %v2184, %v2392
    %v2394 = vpop.f32.mrf.mxu0
    %2395 = vmatprep.mubr.f32.mxu0 0.0
    %v2396 = vand.u32 %v2039, 4294901760
    %2397 = vmatmul.mubr.f32.gmra.mxu0 %v2396
    %v2398 = vpop.f32.mrf.mxu0
    %v2399 = vadd.f32 %v2194, %v2398
    %v2400 = vpop.f32.mrf.mxu0
    %2401 = vmatprep.mubr.f32.mxu0 0.0
    %v2402 = vand.u32 %v2040, 4294901760
    %2403 = vmatmul.mubr.f32.gmra.mxu0 %v2402
    %v2404 = vpop.f32.mrf.mxu0
    %v2405 = vadd.f32 %v2204, %v2404
    %v2406 = vpop.f32.mrf.mxu0
    %2407 = vmatprep.mubr.f32.mxu0 0.0
    %v2408 = vand.u32 %v2041, 4294901760
    %2409 = vmatmul.mubr.f32.gmra.mxu0 %v2408
    %v2410 = vpop.f32.mrf.mxu0
    %v2411 = vadd.f32 %v2214, %v2410
    %v2412 = vpop.f32.mrf.mxu0
    %2413 = vmatprep.mubr.f32.mxu0 0.0
    %v2414 = vand.u32 %v2042, 4294901760
    %2415 = vmatmul.mubr.f32.gmra.mxu0 %v2414
    %v2416 = vpop.f32.mrf.mxu0
    %v2417 = vadd.f32 %v2224, %v2416
    %v2418 = vpop.f32.mrf.mxu0
    %2419 = vdwg.mxu0
    %2420 = vmatprep.subr.mxu0 0.0
    %v2421 = vand.u32 %v2058, 4294901760
    %v2422 = vsub.f32 %v2058, %v2421
    %2423 = vmatpush1.msra.mxu0 %v2422
    %2424 = vmatprep.subr.mxu0 0.0
    %v2425 = vand.u32 %v2057, 4294901760
    %v2426 = vsub.f32 %v2057, %v2425
    %2427 = vmatpush1.msra.mxu0 %v2426
    %2428 = vmatprep.subr.mxu0 0.0
    %v2429 = vand.u32 %v2056, 4294901760
    %v2430 = vsub.f32 %v2056, %v2429
    %2431 = vmatpush1.msra.mxu0 %v2430
    %2432 = vmatprep.subr.mxu0 0.0
    %v2433 = vand.u32 %v2055, 4294901760
    %v2434 = vsub.f32 %v2055, %v2433
    %2435 = vmatpush1.msra.mxu0 %v2434
    %2436 = vmatprep.subr.mxu0 0.0
    %v2437 = vand.u32 %v2054, 4294901760
    %v2438 = vsub.f32 %v2054, %v2437
    %2439 = vmatpush1.msra.mxu0 %v2438
    %2440 = vmatprep.subr.mxu0 0.0
    %v2441 = vand.u32 %v2053, 4294901760
    %v2442 = vsub.f32 %v2053, %v2441
    %2443 = vmatpush1.msra.mxu0 %v2442
    %2444 = vmatprep.subr.mxu0 0.0
    %v2445 = vand.u32 %v2052, 4294901760
    %v2446 = vsub.f32 %v2052, %v2445
    %2447 = vmatpush1.msra.mxu0 %v2446
    %2448 = vmatprep.subr.mxu0 0.0
    %v2449 = vand.u32 %v2051, 4294901760
    %v2450 = vsub.f32 %v2051, %v2449
    %2451 = vmatpush1.msra.mxu0 %v2450
    %2452 = vmatprep.subr.mxu0 0.0
    %v2453 = vand.u32 %v2050, 4294901760
    %v2454 = vsub.f32 %v2050, %v2453
    %2455 = vmatpush1.msra.mxu0 %v2454
    %2456 = vmatprep.subr.mxu0 0.0
    %v2457 = vand.u32 %v2049, 4294901760
    %v2458 = vsub.f32 %v2049, %v2457
    %2459 = vmatpush1.msra.mxu0 %v2458
    %2460 = vmatprep.subr.mxu0 0.0
    %v2461 = vand.u32 %v2048, 4294901760
    %v2462 = vsub.f32 %v2048, %v2461
    %2463 = vmatpush1.msra.mxu0 %v2462
    %2464 = vmatprep.subr.mxu0 0.0
    %v2465 = vand.u32 %v2047, 4294901760
    %v2466 = vsub.f32 %v2047, %v2465
    %2467 = vmatpush1.msra.mxu0 %v2466
    %2468 = vmatprep.subr.mxu0 0.0
    %v2469 = vand.u32 %v2046, 4294901760
    %v2470 = vsub.f32 %v2046, %v2469
    %2471 = vmatpush1.msra.mxu0 %v2470
    %2472 = vmatprep.subr.mxu0 0.0
    %v2473 = vand.u32 %v2045, 4294901760
    %v2474 = vsub.f32 %v2045, %v2473
    %2475 = vmatpush1.msra.mxu0 %v2474
    %2476 = vmatprep.subr.mxu0 0.0
    %v2477 = vand.u32 %v2044, 4294901760
    %v2478 = vsub.f32 %v2044, %v2477
    %2479 = vmatpush1.msra.mxu0 %v2478
    %2480 = vmatprep.subr.mxu0 0.0
    %v2481 = vand.u32 %v2043, 4294901760
    %v2482 = vsub.f32 %v2043, %v2481
    %2483 = vmatpush1.msra.mxu0 %v2482
    %2484 = vmatprep.subr.mxu0 0.0
    %2485 = vmatpush2.msra.mxu0 0.0
    %2486 = vmatprep.subr.mxu0 0.0
    %2487 = vmatpush2.msra.mxu0 0.0
    %2488 = vmatprep.subr.mxu0 0.0
    %2489 = vmatpush2.msra.mxu0 0.0
    %2490 = vmatprep.subr.mxu0 0.0
    %2491 = vmatpush2.msra.mxu0 0.0
    %2492 = vmatprep.subr.mxu0 0.0
    %2493 = vmatpush2.msra.mxu0 0.0
    %2494 = vmatprep.subr.mxu0 0.0
    %2495 = vmatpush2.msra.mxu0 0.0
    %2496 = vmatprep.subr.mxu0 0.0
    %2497 = vmatpush2.msra.mxu0 0.0
    %2498 = vmatprep.subr.mxu0 0.0
    %2499 = vmatpush2.msra.mxu0 0.0
    %2500 = vmatprep.subr.mxu0 0.0
    %2501 = vmatpush2.msra.mxu0 0.0
    %2502 = vmatprep.subr.mxu0 0.0
    %2503 = vmatpush2.msra.mxu0 0.0
    %2504 = vmatprep.subr.mxu0 0.0
    %2505 = vmatpush2.msra.mxu0 0.0
    %2506 = vmatprep.subr.mxu0 0.0
    %2507 = vmatpush2.msra.mxu0 0.0
    %2508 = vmatprep.subr.mxu0 0.0
    %2509 = vmatpush2.msra.mxu0 0.0
    %2510 = vmatprep.subr.mxu0 0.0
    %2511 = vmatpush2.msra.mxu0 0.0
    %2512 = vmatprep.subr.mxu0 0.0
    %2513 = vmatpush2.msra.mxu0 0.0
    %2514 = vmatprep.subr.mxu0 0.0
    %2515 = vmatpush2.msra.mxu0 0.0
    %2516 = vmatprep.mubr.f32.mxu0 0.0
    %v2517 = vand.u32 %v2035, 4294901760
    %v2518 = vsub.f32 %v2035, %v2517
    %2519 = vmatmul.mubr.f32.gmra.mxu0 %v2518
    %v2520 = vpop.f32.mrf.mxu0
    %v2521 = vadd.f32 %v2375, %v2520
    %v2522 = vpop.f32.mrf.mxu0
    %2523 = vmatprep.mubr.f32.mxu0 0.0
    %v2524 = vand.u32 %v2036, 4294901760
    %v2525 = vsub.f32 %v2036, %v2524
    %2526 = vmatmul.mubr.f32.gmra.mxu0 %v2525
    %v2527 = vpop.f32.mrf.mxu0
    %v2528 = vadd.f32 %v2381, %v2527
    %v2529 = vpop.f32.mrf.mxu0
    %2530 = vmatprep.mubr.f32.mxu0 0.0
    %v2531 = vand.u32 %v2037, 4294901760
    %v2532 = vsub.f32 %v2037, %v2531
    %2533 = vmatmul.mubr.f32.gmra.mxu0 %v2532
    %v2534 = vpop.f32.mrf.mxu0
    %v2535 = vadd.f32 %v2387, %v2534
    %v2536 = vpop.f32.mrf.mxu0
    %2537 = vmatprep.mubr.f32.mxu0 0.0
    %v2538 = vand.u32 %v2038, 4294901760
    %v2539 = vsub.f32 %v2038, %v2538
    %2540 = vmatmul.mubr.f32.gmra.mxu0 %v2539
    %v2541 = vpop.f32.mrf.mxu0
    %v2542 = vadd.f32 %v2393, %v2541
    %v2543 = vpop.f32.mrf.mxu0
    %2544 = vmatprep.mubr.f32.mxu0 0.0
    %v2545 = vand.u32 %v2039, 4294901760
    %v2546 = vsub.f32 %v2039, %v2545
    %2547 = vmatmul.mubr.f32.gmra.mxu0 %v2546
    %v2548 = vpop.f32.mrf.mxu0
    %v2549 = vadd.f32 %v2399, %v2548
    %v2550 = vpop.f32.mrf.mxu0
    %2551 = vmatprep.mubr.f32.mxu0 0.0
    %v2552 = vand.u32 %v2040, 4294901760
    %v2553 = vsub.f32 %v2040, %v2552
    %2554 = vmatmul.mubr.f32.gmra.mxu0 %v2553
    %v2555 = vpop.f32.mrf.mxu0
    %v2556 = vadd.f32 %v2405, %v2555
    %v2557 = vpop.f32.mrf.mxu0
    %2558 = vmatprep.mubr.f32.mxu0 0.0
    %v2559 = vand.u32 %v2041, 4294901760
    %v2560 = vsub.f32 %v2041, %v2559
    %2561 = vmatmul.mubr.f32.gmra.mxu0 %v2560
    %v2562 = vpop.f32.mrf.mxu0
    %v2563 = vadd.f32 %v2411, %v2562
    %v2564 = vpop.f32.mrf.mxu0
    %2565 = vmatprep.mubr.f32.mxu0 0.0
    %v2566 = vand.u32 %v2042, 4294901760
    %v2567 = vsub.f32 %v2042, %v2566
    %2568 = vmatmul.mubr.f32.gmra.mxu0 %v2567
    %v2569 = vpop.f32.mrf.mxu0
    %v2570 = vadd.f32 %v2417, %v2569
    %v2571 = vpop.f32.mrf.mxu0
    %2572 = vdwg.mxu0
    %2573 = vmatprep.subr.mxu0 0.0
    %v2574 = vand.u32 %v2058, 4294901760
    %2575 = vmatpush1.msra.mxu0 %v2574
    %2576 = vmatprep.subr.mxu0 0.0
    %v2577 = vand.u32 %v2057, 4294901760
    %2578 = vmatpush1.msra.mxu0 %v2577
    %2579 = vmatprep.subr.mxu0 0.0
    %v2580 = vand.u32 %v2056, 4294901760
    %2581 = vmatpush1.msra.mxu0 %v2580
    %2582 = vmatprep.subr.mxu0 0.0
    %v2583 = vand.u32 %v2055, 4294901760
    %2584 = vmatpush1.msra.mxu0 %v2583
    %2585 = vmatprep.subr.mxu0 0.0
    %v2586 = vand.u32 %v2054, 4294901760
    %2587 = vmatpush1.msra.mxu0 %v2586
    %2588 = vmatprep.subr.mxu0 0.0
    %v2589 = vand.u32 %v2053, 4294901760
    %2590 = vmatpush1.msra.mxu0 %v2589
    %2591 = vmatprep.subr.mxu0 0.0
    %v2592 = vand.u32 %v2052, 4294901760
    %2593 = vmatpush1.msra.mxu0 %v2592
    %2594 = vmatprep.subr.mxu0 0.0
    %v2595 = vand.u32 %v2051, 4294901760
    %2596 = vmatpush1.msra.mxu0 %v2595
    %2597 = vmatprep.subr.mxu0 0.0
    %v2598 = vand.u32 %v2050, 4294901760
    %2599 = vmatpush1.msra.mxu0 %v2598
    %2600 = vmatprep.subr.mxu0 0.0
    %v2601 = vand.u32 %v2049, 4294901760
    %2602 = vmatpush1.msra.mxu0 %v2601
    %2603 = vmatprep.subr.mxu0 0.0
    %v2604 = vand.u32 %v2048, 4294901760
    %2605 = vmatpush1.msra.mxu0 %v2604
    %2606 = vmatprep.subr.mxu0 0.0
    %v2607 = vand.u32 %v2047, 4294901760
    %2608 = vmatpush1.msra.mxu0 %v2607
    %2609 = vmatprep.subr.mxu0 0.0
    %v2610 = vand.u32 %v2046, 4294901760
    %2611 = vmatpush1.msra.mxu0 %v2610
    %2612 = vmatprep.subr.mxu0 0.0
    %v2613 = vand.u32 %v2045, 4294901760
    %2614 = vmatpush1.msra.mxu0 %v2613
    %2615 = vmatprep.subr.mxu0 0.0
    %v2616 = vand.u32 %v2044, 4294901760
    %2617 = vmatpush1.msra.mxu0 %v2616
    %2618 = vmatprep.subr.mxu0 0.0
    %v2619 = vand.u32 %v2043, 4294901760
    %2620 = vmatpush1.msra.mxu0 %v2619
    %2621 = vmatprep.subr.mxu0 0.0
    %2622 = vmatpush2.msra.mxu0 0.0
    %2623 = vmatprep.subr.mxu0 0.0
    %2624 = vmatpush2.msra.mxu0 0.0
    %2625 = vmatprep.subr.mxu0 0.0
    %2626 = vmatpush2.msra.mxu0 0.0
    %2627 = vmatprep.subr.mxu0 0.0
    %2628 = vmatpush2.msra.mxu0 0.0
    %2629 = vmatprep.subr.mxu0 0.0
    %2630 = vmatpush2.msra.mxu0 0.0
    %2631 = vmatprep.subr.mxu0 0.0
    %2632 = vmatpush2.msra.mxu0 0.0
    %2633 = vmatprep.subr.mxu0 0.0
    %2634 = vmatpush2.msra.mxu0 0.0
    %2635 = vmatprep.subr.mxu0 0.0
    %2636 = vmatpush2.msra.mxu0 0.0
    %2637 = vmatprep.subr.mxu0 0.0
    %2638 = vmatpush2.msra.mxu0 0.0
    %2639 = vmatprep.subr.mxu0 0.0
    %2640 = vmatpush2.msra.mxu0 0.0
    %2641 = vmatprep.subr.mxu0 0.0
    %2642 = vmatpush2.msra.mxu0 0.0
    %2643 = vmatprep.subr.mxu0 0.0
    %2644 = vmatpush2.msra.mxu0 0.0
    %2645 = vmatprep.subr.mxu0 0.0
    %2646 = vmatpush2.msra.mxu0 0.0
    %2647 = vmatprep.subr.mxu0 0.0
    %2648 = vmatpush2.msra.mxu0 0.0
    %2649 = vmatprep.subr.mxu0 0.0
    %2650 = vmatpush2.msra.mxu0 0.0
    %2651 = vmatprep.subr.mxu0 0.0
    %2652 = vmatpush2.msra.mxu0 0.0
    %2653 = vmatprep.mubr.f32.mxu0 0.0
    %v2654 = vand.u32 %v2035, 4294901760
    %v2655 = vsub.f32 %v2035, %v2654
    %v2656 = vand.u32 %v2655, 4294901760
    %2657 = vmatmul.mubr.f32.gmra.mxu0 %v2656
    %v2658 = vpop.f32.mrf.mxu0
    %v2659 = vadd.f32 %v2521, %v2658
    %v2660 = vpop.f32.mrf.mxu0
    %2661 = vmatprep.mubr.f32.mxu0 0.0
    %v2662 = vand.u32 %v2036, 4294901760
    %v2663 = vsub.f32 %v2036, %v2662
    %v2664 = vand.u32 %v2663, 4294901760
    %2665 = vmatmul.mubr.f32.gmra.mxu0 %v2664
    %v2666 = vpop.f32.mrf.mxu0
    %v2667 = vadd.f32 %v2528, %v2666
    %v2668 = vpop.f32.mrf.mxu0
    %2669 = vmatprep.mubr.f32.mxu0 0.0
    %v2670 = vand.u32 %v2037, 4294901760
    %v2671 = vsub.f32 %v2037, %v2670
    %v2672 = vand.u32 %v2671, 4294901760
    %2673 = vmatmul.mubr.f32.gmra.mxu0 %v2672
    %v2674 = vpop.f32.mrf.mxu0
    %v2675 = vadd.f32 %v2535, %v2674
    %v2676 = vpop.f32.mrf.mxu0
    %2677 = vmatprep.mubr.f32.mxu0 0.0
    %v2678 = vand.u32 %v2038, 4294901760
    %v2679 = vsub.f32 %v2038, %v2678
    %v2680 = vand.u32 %v2679, 4294901760
    %2681 = vmatmul.mubr.f32.gmra.mxu0 %v2680
    %v2682 = vpop.f32.mrf.mxu0
    %v2683 = vadd.f32 %v2542, %v2682
    %v2684 = vpop.f32.mrf.mxu0
    %2685 = vmatprep.mubr.f32.mxu0 0.0
    %v2686 = vand.u32 %v2039, 4294901760
    %v2687 = vsub.f32 %v2039, %v2686
    %v2688 = vand.u32 %v2687, 4294901760
    %2689 = vmatmul.mubr.f32.gmra.mxu0 %v2688
    %v2690 = vpop.f32.mrf.mxu0
    %v2691 = vadd.f32 %v2549, %v2690
    %v2692 = vpop.f32.mrf.mxu0
    %2693 = vmatprep.mubr.f32.mxu0 0.0
    %v2694 = vand.u32 %v2040, 4294901760
    %v2695 = vsub.f32 %v2040, %v2694
    %v2696 = vand.u32 %v2695, 4294901760
    %2697 = vmatmul.mubr.f32.gmra.mxu0 %v2696
    %v2698 = vpop.f32.mrf.mxu0
    %v2699 = vadd.f32 %v2556, %v2698
    %v2700 = vpop.f32.mrf.mxu0
    %2701 = vmatprep.mubr.f32.mxu0 0.0
    %v2702 = vand.u32 %v2041, 4294901760
    %v2703 = vsub.f32 %v2041, %v2702
    %v2704 = vand.u32 %v2703, 4294901760
    %2705 = vmatmul.mubr.f32.gmra.mxu0 %v2704
    %v2706 = vpop.f32.mrf.mxu0
    %v2707 = vadd.f32 %v2563, %v2706
    %v2708 = vpop.f32.mrf.mxu0
    %2709 = vmatprep.mubr.f32.mxu0 0.0
    %v2710 = vand.u32 %v2042, 4294901760
    %v2711 = vsub.f32 %v2042, %v2710
    %v2712 = vand.u32 %v2711, 4294901760
    %2713 = vmatmul.mubr.f32.gmra.mxu0 %v2712
    %v2714 = vpop.f32.mrf.mxu0
    %v2715 = vadd.f32 %v2570, %v2714
    %v2716 = vpop.f32.mrf.mxu0
    %2717 = vdwg.mxu0
    %2718 = vmatprep.subr.mxu0 0.0
    %v2719 = vand.u32 %v2058, 4294901760
    %v2720 = vsub.f32 %v2058, %v2719
    %v2721 = vand.u32 %v2720, 4294901760
    %2722 = vmatpush1.msra.mxu0 %v2721
    %2723 = vmatprep.subr.mxu0 0.0
    %v2724 = vand.u32 %v2057, 4294901760
    %v2725 = vsub.f32 %v2057, %v2724
    %v2726 = vand.u32 %v2725, 4294901760
    %2727 = vmatpush1.msra.mxu0 %v2726
    %2728 = vmatprep.subr.mxu0 0.0
    %v2729 = vand.u32 %v2056, 4294901760
    %v2730 = vsub.f32 %v2056, %v2729
    %v2731 = vand.u32 %v2730, 4294901760
    %2732 = vmatpush1.msra.mxu0 %v2731
    %2733 = vmatprep.subr.mxu0 0.0
    %v2734 = vand.u32 %v2055, 4294901760
    %v2735 = vsub.f32 %v2055, %v2734
    %v2736 = vand.u32 %v2735, 4294901760
    %2737 = vmatpush1.msra.mxu0 %v2736
    %2738 = vmatprep.subr.mxu0 0.0
    %v2739 = vand.u32 %v2054, 4294901760
    %v2740 = vsub.f32 %v2054, %v2739
    %v2741 = vand.u32 %v2740, 4294901760
    %2742 = vmatpush1.msra.mxu0 %v2741
    %2743 = vmatprep.subr.mxu0 0.0
    %v2744 = vand.u32 %v2053, 4294901760
    %v2745 = vsub.f32 %v2053, %v2744
    %v2746 = vand.u32 %v2745, 4294901760
    %2747 = vmatpush1.msra.mxu0 %v2746
    %2748 = vmatprep.subr.mxu0 0.0
    %v2749 = vand.u32 %v2052, 4294901760
    %v2750 = vsub.f32 %v2052, %v2749
    %v2751 = vand.u32 %v2750, 4294901760
    %2752 = vmatpush1.msra.mxu0 %v2751
    %2753 = vmatprep.subr.mxu0 0.0
    %v2754 = vand.u32 %v2051, 4294901760
    %v2755 = vsub.f32 %v2051, %v2754
    %v2756 = vand.u32 %v2755, 4294901760
    %2757 = vmatpush1.msra.mxu0 %v2756
    %2758 = vmatprep.subr.mxu0 0.0
    %v2759 = vand.u32 %v2050, 4294901760
    %v2760 = vsub.f32 %v2050, %v2759
    %v2761 = vand.u32 %v2760, 4294901760
    %2762 = vmatpush1.msra.mxu0 %v2761
    %2763 = vmatprep.subr.mxu0 0.0
    %v2764 = vand.u32 %v2049, 4294901760
    %v2765 = vsub.f32 %v2049, %v2764
    %v2766 = vand.u32 %v2765, 4294901760
    %2767 = vmatpush1.msra.mxu0 %v2766
    %2768 = vmatprep.subr.mxu0 0.0
    %v2769 = vand.u32 %v2048, 4294901760
    %v2770 = vsub.f32 %v2048, %v2769
    %v2771 = vand.u32 %v2770, 4294901760
    %2772 = vmatpush1.msra.mxu0 %v2771
    %2773 = vmatprep.subr.mxu0 0.0
    %v2774 = vand.u32 %v2047, 4294901760
    %v2775 = vsub.f32 %v2047, %v2774
    %v2776 = vand.u32 %v2775, 4294901760
    %2777 = vmatpush1.msra.mxu0 %v2776
    %2778 = vmatprep.subr.mxu0 0.0
    %v2779 = vand.u32 %v2046, 4294901760
    %v2780 = vsub.f32 %v2046, %v2779
    %v2781 = vand.u32 %v2780, 4294901760
    %2782 = vmatpush1.msra.mxu0 %v2781
    %2783 = vmatprep.subr.mxu0 0.0
    %v2784 = vand.u32 %v2045, 4294901760
    %v2785 = vsub.f32 %v2045, %v2784
    %v2786 = vand.u32 %v2785, 4294901760
    %2787 = vmatpush1.msra.mxu0 %v2786
    %2788 = vmatprep.subr.mxu0 0.0
    %v2789 = vand.u32 %v2044, 4294901760
    %v2790 = vsub.f32 %v2044, %v2789
    %v2791 = vand.u32 %v2790, 4294901760
    %2792 = vmatpush1.msra.mxu0 %v2791
    %2793 = vmatprep.subr.mxu0 0.0
    %v2794 = vand.u32 %v2043, 4294901760
    %v2795 = vsub.f32 %v2043, %v2794
    %v2796 = vand.u32 %v2795, 4294901760
    %2797 = vmatpush1.msra.mxu0 %v2796
    %2798 = vmatprep.subr.mxu0 0.0
    %2799 = vmatpush2.msra.mxu0 0.0
    %2800 = vmatprep.subr.mxu0 0.0
    %2801 = vmatpush2.msra.mxu0 0.0
    %2802 = vmatprep.subr.mxu0 0.0
    %2803 = vmatpush2.msra.mxu0 0.0
    %2804 = vmatprep.subr.mxu0 0.0
    %2805 = vmatpush2.msra.mxu0 0.0
    %2806 = vmatprep.subr.mxu0 0.0
    %2807 = vmatpush2.msra.mxu0 0.0
    %2808 = vmatprep.subr.mxu0 0.0
    %2809 = vmatpush2.msra.mxu0 0.0
    %2810 = vmatprep.subr.mxu0 0.0
    %2811 = vmatpush2.msra.mxu0 0.0
    %2812 = vmatprep.subr.mxu0 0.0
    %2813 = vmatpush2.msra.mxu0 0.0
    %2814 = vmatprep.subr.mxu0 0.0
    %2815 = vmatpush2.msra.mxu0 0.0
    %2816 = vmatprep.subr.mxu0 0.0
    %2817 = vmatpush2.msra.mxu0 0.0
    %2818 = vmatprep.subr.mxu0 0.0
    %2819 = vmatpush2.msra.mxu0 0.0
    %2820 = vmatprep.subr.mxu0 0.0
    %2821 = vmatpush2.msra.mxu0 0.0
    %2822 = vmatprep.subr.mxu0 0.0
    %2823 = vmatpush2.msra.mxu0 0.0
    %2824 = vmatprep.subr.mxu0 0.0
    %2825 = vmatpush2.msra.mxu0 0.0
    %2826 = vmatprep.subr.mxu0 0.0
    %2827 = vmatpush2.msra.mxu0 0.0
    %2828 = vmatprep.subr.mxu0 0.0
    %2829 = vmatpush2.msra.mxu0 0.0
    %2830 = vmatprep.mubr.f32.mxu0 0.0
    %v2831 = vand.u32 %v2035, 4294901760
    %2832 = vmatmul.mubr.f32.gmra.mxu0 %v2831
    %v2833 = vpop.f32.mrf.mxu0
    %v2834 = vadd.f32 %v2659, %v2833
    %v2835 = vpop.f32.mrf.mxu0
    %2836 = vmatprep.mubr.f32.mxu0 0.0
    %v2837 = vand.u32 %v2036, 4294901760
    %2838 = vmatmul.mubr.f32.gmra.mxu0 %v2837
    %v2839 = vpop.f32.mrf.mxu0
    %v2840 = vadd.f32 %v2667, %v2839
    %v2841 = vpop.f32.mrf.mxu0
    %2842 = vmatprep.mubr.f32.mxu0 0.0
    %v2843 = vand.u32 %v2037, 4294901760
    %2844 = vmatmul.mubr.f32.gmra.mxu0 %v2843
    %v2845 = vpop.f32.mrf.mxu0
    %v2846 = vadd.f32 %v2675, %v2845
    %v2847 = vpop.f32.mrf.mxu0
    %2848 = vmatprep.mubr.f32.mxu0 0.0
    %v2849 = vand.u32 %v2038, 4294901760
    %2850 = vmatmul.mubr.f32.gmra.mxu0 %v2849
    %v2851 = vpop.f32.mrf.mxu0
    %v2852 = vadd.f32 %v2683, %v2851
    %v2853 = vpop.f32.mrf.mxu0
    %2854 = vmatprep.mubr.f32.mxu0 0.0
    %v2855 = vand.u32 %v2039, 4294901760
    %2856 = vmatmul.mubr.f32.gmra.mxu0 %v2855
    %v2857 = vpop.f32.mrf.mxu0
    %v2858 = vadd.f32 %v2691, %v2857
    %v2859 = vpop.f32.mrf.mxu0
    %2860 = vmatprep.mubr.f32.mxu0 0.0
    %v2861 = vand.u32 %v2040, 4294901760
    %2862 = vmatmul.mubr.f32.gmra.mxu0 %v2861
    %v2863 = vpop.f32.mrf.mxu0
    %v2864 = vadd.f32 %v2699, %v2863
    %v2865 = vpop.f32.mrf.mxu0
    %2866 = vmatprep.mubr.f32.mxu0 0.0
    %v2867 = vand.u32 %v2041, 4294901760
    %2868 = vmatmul.mubr.f32.gmra.mxu0 %v2867
    %v2869 = vpop.f32.mrf.mxu0
    %v2870 = vadd.f32 %v2707, %v2869
    %v2871 = vpop.f32.mrf.mxu0
    %2872 = vmatprep.mubr.f32.mxu0 0.0
    %v2873 = vand.u32 %v2042, 4294901760
    %2874 = vmatmul.mubr.f32.gmra.mxu0 %v2873
    %v2875 = vpop.f32.mrf.mxu0
    %v2876 = vadd.f32 %v2715, %v2875
    %v2877 = vpop.f32.mrf.mxu0
    %2878 = vdwg.mxu0
    %2879 = vmatprep.subr.mxu0 0.0
    %v2880 = vand.u32 %v2058, 4294901760
    %2881 = vmatpush1.msra.mxu0 %v2880
    %2882 = vmatprep.subr.mxu0 0.0
    %v2883 = vand.u32 %v2057, 4294901760
    %2884 = vmatpush1.msra.mxu0 %v2883
    %2885 = vmatprep.subr.mxu0 0.0
    %v2886 = vand.u32 %v2056, 4294901760
    %2887 = vmatpush1.msra.mxu0 %v2886
    %2888 = vmatprep.subr.mxu0 0.0
    %v2889 = vand.u32 %v2055, 4294901760
    %2890 = vmatpush1.msra.mxu0 %v2889
    %2891 = vmatprep.subr.mxu0 0.0
    %v2892 = vand.u32 %v2054, 4294901760
    %2893 = vmatpush1.msra.mxu0 %v2892
    %2894 = vmatprep.subr.mxu0 0.0
    %v2895 = vand.u32 %v2053, 4294901760
    %2896 = vmatpush1.msra.mxu0 %v2895
    %2897 = vmatprep.subr.mxu0 0.0
    %v2898 = vand.u32 %v2052, 4294901760
    %2899 = vmatpush1.msra.mxu0 %v2898
    %2900 = vmatprep.subr.mxu0 0.0
    %v2901 = vand.u32 %v2051, 4294901760
    %2902 = vmatpush1.msra.mxu0 %v2901
    %2903 = vmatprep.subr.mxu0 0.0
    %v2904 = vand.u32 %v2050, 4294901760
    %2905 = vmatpush1.msra.mxu0 %v2904
    %2906 = vmatprep.subr.mxu0 0.0
    %v2907 = vand.u32 %v2049, 4294901760
    %2908 = vmatpush1.msra.mxu0 %v2907
    %2909 = vmatprep.subr.mxu0 0.0
    %v2910 = vand.u32 %v2048, 4294901760
    %2911 = vmatpush1.msra.mxu0 %v2910
    %2912 = vmatprep.subr.mxu0 0.0
    %v2913 = vand.u32 %v2047, 4294901760
    %2914 = vmatpush1.msra.mxu0 %v2913
    %2915 = vmatprep.subr.mxu0 0.0
    %v2916 = vand.u32 %v2046, 4294901760
    %2917 = vmatpush1.msra.mxu0 %v2916
    %2918 = vmatprep.subr.mxu0 0.0
    %v2919 = vand.u32 %v2045, 4294901760
    %2920 = vmatpush1.msra.mxu0 %v2919
    %2921 = vmatprep.subr.mxu0 0.0
    %v2922 = vand.u32 %v2044, 4294901760
    %2923 = vmatpush1.msra.mxu0 %v2922
    %2924 = vmatprep.subr.mxu0 0.0
    %v2925 = vand.u32 %v2043, 4294901760
    %2926 = vmatpush1.msra.mxu0 %v2925
    %2927 = vmatprep.subr.mxu0 0.0
    %2928 = vmatpush2.msra.mxu0 0.0
    %2929 = vmatprep.subr.mxu0 0.0
    %2930 = vmatpush2.msra.mxu0 0.0
    %2931 = vmatprep.subr.mxu0 0.0
    %2932 = vmatpush2.msra.mxu0 0.0
    %2933 = vmatprep.subr.mxu0 0.0
    %2934 = vmatpush2.msra.mxu0 0.0
    %2935 = vmatprep.subr.mxu0 0.0
    %2936 = vmatpush2.msra.mxu0 0.0
    %2937 = vmatprep.subr.mxu0 0.0
    %2938 = vmatpush2.msra.mxu0 0.0
    %2939 = vmatprep.subr.mxu0 0.0
    %2940 = vmatpush2.msra.mxu0 0.0
    %2941 = vmatprep.subr.mxu0 0.0
    %2942 = vmatpush2.msra.mxu0 0.0
    %2943 = vmatprep.subr.mxu0 0.0
    %2944 = vmatpush2.msra.mxu0 0.0
    %2945 = vmatprep.subr.mxu0 0.0
    %2946 = vmatpush2.msra.mxu0 0.0
    %2947 = vmatprep.subr.mxu0 0.0
    %2948 = vmatpush2.msra.mxu0 0.0
    %2949 = vmatprep.subr.mxu0 0.0
    %2950 = vmatpush2.msra.mxu0 0.0
    %2951 = vmatprep.subr.mxu0 0.0
    %2952 = vmatpush2.msra.mxu0 0.0
    %2953 = vmatprep.subr.mxu0 0.0
    %2954 = vmatpush2.msra.mxu0 0.0
    %2955 = vmatprep.subr.mxu0 0.0
    %2956 = vmatpush2.msra.mxu0 0.0
    %2957 = vmatprep.subr.mxu0 0.0
    %2958 = vmatpush2.msra.mxu0 0.0
    %2959 = vmatprep.mubr.f32.mxu0 0.0
    %v2960 = vand.u32 %v2035, 4294901760
    %2961 = vmatmul.mubr.f32.gmra.mxu0 %v2960
    %v2962 = vpop.f32.mrf.mxu0
    %v2963 = vadd.f32 %v2834, %v2962
    %v2964 = vpop.f32.mrf.mxu0
    %2965 = vmatprep.mubr.f32.mxu0 0.0
    %v2966 = vand.u32 %v2036, 4294901760
    %2967 = vmatmul.mubr.f32.gmra.mxu0 %v2966
    %v2968 = vpop.f32.mrf.mxu0
    %v2969 = vadd.f32 %v2840, %v2968
    %v2970 = vpop.f32.mrf.mxu0
    %2971 = vmatprep.mubr.f32.mxu0 0.0
    %v2972 = vand.u32 %v2037, 4294901760
    %2973 = vmatmul.mubr.f32.gmra.mxu0 %v2972
    %v2974 = vpop.f32.mrf.mxu0
    %v2975 = vadd.f32 %v2846, %v2974
    %v2976 = vpop.f32.mrf.mxu0
    %2977 = vmatprep.mubr.f32.mxu0 0.0
    %v2978 = vand.u32 %v2038, 4294901760
    %2979 = vmatmul.mubr.f32.gmra.mxu0 %v2978
    %v2980 = vpop.f32.mrf.mxu0
    %v2981 = vadd.f32 %v2852, %v2980
    %v2982 = vpop.f32.mrf.mxu0
    %2983 = vmatprep.mubr.f32.mxu0 0.0
    %v2984 = vand.u32 %v2039, 4294901760
    %2985 = vmatmul.mubr.f32.gmra.mxu0 %v2984
    %v2986 = vpop.f32.mrf.mxu0
    %v2987 = vadd.f32 %v2858, %v2986
    %v2988 = vpop.f32.mrf.mxu0
    %2989 = vmatprep.mubr.f32.mxu0 0.0
    %v2990 = vand.u32 %v2040, 4294901760
    %2991 = vmatmul.mubr.f32.gmra.mxu0 %v2990
    %v2992 = vpop.f32.mrf.mxu0
    %v2993 = vadd.f32 %v2864, %v2992
    %v2994 = vpop.f32.mrf.mxu0
    %2995 = vmatprep.mubr.f32.mxu0 0.0
    %v2996 = vand.u32 %v2041, 4294901760
    %2997 = vmatmul.mubr.f32.gmra.mxu0 %v2996
    %v2998 = vpop.f32.mrf.mxu0
    %v2999 = vadd.f32 %v2870, %v2998
    %v3000 = vpop.f32.mrf.mxu0
    %3001 = vmatprep.mubr.f32.mxu0 0.0
    %v3002 = vand.u32 %v2042, 4294901760
    %3003 = vmatmul.mubr.f32.gmra.mxu0 %v3002
    %v3004 = vpop.f32.mrf.mxu0
    %v3005 = vadd.f32 %v2876, %v3004
    %v3006 = vpop.f32.mrf.mxu0
    %3007 = vdwg.mxu0
    %v3008 = vmax.f32 %v2963, 0.0
    %v3009 = vmax.f32 %v2969, 0.0
    %v3010 = vmax.f32 %v2975, 0.0
    %v3011 = vmax.f32 %v2981, 0.0
    %v3012 = vmax.f32 %v2987, 0.0
    %v3013 = vmax.f32 %v2993, 0.0
    %v3014 = vmax.f32 %v2999, 0.0
    %v3015 = vmax.f32 %v3005, 0.0
    %v3016 = vld [vmem:[%s7] sm:$0x1]
    %v3018 = vlaneseq
    %v3019 = vshrl.u32 %v3018, 7
    %v3020 = vsub.s32 0, %v3019
    %v3021 = vrot.slane %v3016, %v3020
    %v3023 = vmul.f32 %v3008, %v3021
    %v3024 = vmul.f32 %v3009, %v3021
    %v3025 = vmul.f32 %v3010, %v3021
    %v3026 = vmul.f32 %v3011, %v3021
    %v3027 = vmul.f32 %v3012, %v3021
    %v3028 = vmul.f32 %v3013, %v3021
    %v3029 = vmul.f32 %v3014, %v3021
    %v3030 = vmul.f32 %v3015, %v3021
    %3031 = vadd.xlane.f32.xlu0 %v3023
    %v3032 = vpop.xlane.xlu0 %3031
    %3033 = vadd.xlane.f32.xlu0 %v3024
    %v3034 = vpop.xlane.xlu0 %3033
    %3035 = vadd.xlane.f32.xlu0 %v3025
    %v3036 = vpop.xlane.xlu0 %3035
    %3037 = vadd.xlane.f32.xlu0 %v3026
    %v3038 = vpop.xlane.xlu0 %3037
    %3039 = vadd.xlane.f32.xlu0 %v3027
    %v3040 = vpop.xlane.xlu0 %3039
    %3041 = vadd.xlane.f32.xlu0 %v3028
    %v3042 = vpop.xlane.xlu0 %3041
    %3043 = vadd.xlane.f32.xlu0 %v3029
    %v3044 = vpop.xlane.xlu0 %3043
    %3045 = vadd.xlane.f32.xlu0 %v3030
    %v3046 = vpop.xlane.xlu0 %3045
    %v3047 = vld [vmem:[#allocation2] sm:$0x1]
    %v3049 = vlaneseq
    %v3050 = vshrl.u32 %v3049, 7
    %v3051 = vsub.s32 0, %v3050
    %v3052 = vrot.slane %v3047, %v3051
    %v3054 = vadd.f32 %v3032, %v3052
    %v3055 = vadd.f32 %v3034, %v3052
    %v3056 = vadd.f32 %v3036, %v3052
    %v3057 = vadd.f32 %v3038, %v3052
    %v3058 = vadd.f32 %v3040, %v3052
    %v3059 = vadd.f32 %v3042, %v3052
    %v3060 = vadd.f32 %v3044, %v3052
    %v3061 = vadd.f32 %v3046, %v3052
    %v3062 = vxor.u32 %v3054, 2147483648
    %v3063 = vxor.u32 %v3055, 2147483648
    %v3064 = vxor.u32 %v3056, 2147483648
    %v3065 = vxor.u32 %v3057, 2147483648
    %v3066 = vxor.u32 %v3058, 2147483648
    %v3067 = vxor.u32 %v3059, 2147483648
    %v3068 = vxor.u32 %v3060, 2147483648
    %v3069 = vxor.u32 %v3061, 2147483648
    %v3070 = vmul.f32 %v3062, 1.442695
    %v3071 = vpow.pop %v3070
    %v3072 = vmul.f32 %v3063, 1.442695
    %v3073 = vpow.pop %v3072
    %v3074 = vmul.f32 %v3064, 1.442695
    %v3075 = vpow.pop %v3074
    %v3076 = vmul.f32 %v3065, 1.442695
    %v3077 = vpow.pop %v3076
    %v3078 = vmul.f32 %v3066, 1.442695
    %v3079 = vpow.pop %v3078
    %v3080 = vmul.f32 %v3067, 1.442695
    %v3081 = vpow.pop %v3080
    %v3082 = vmul.f32 %v3068, 1.442695
    %v3083 = vpow.pop %v3082
    %v3084 = vmul.f32 %v3069, 1.442695
    %v3085 = vpow.pop %v3084
    %v3086 = vadd.f32 %v3071, 1.0
    %v3087 = vadd.f32 %v3073, 1.0
    %v3088 = vadd.f32 %v3075, 1.0
    %v3089 = vadd.f32 %v3077, 1.0
    %v3090 = vadd.f32 %v3079, 1.0
    %v3091 = vadd.f32 %v3081, 1.0
    %v3092 = vadd.f32 %v3083, 1.0
    %v3093 = vadd.f32 %v3085, 1.0
    %v3094 = vrcp.pop %v3086
    %v3095 = vmul.f32 1.0, %v3094
    %v3096 = vrcp.pop %v3087
    %v3097 = vmul.f32 1.0, %v3096
    %v3098 = vrcp.pop %v3088
    %v3099 = vmul.f32 1.0, %v3098
    %v3100 = vrcp.pop %v3089
    %v3101 = vmul.f32 1.0, %v3100
    %v3102 = vrcp.pop %v3090
    %v3103 = vmul.f32 1.0, %v3102
    %v3104 = vrcp.pop %v3091
    %v3105 = vmul.f32 1.0, %v3104
    %v3106 = vrcp.pop %v3092
    %v3107 = vmul.f32 1.0, %v3106
    %v3108 = vrcp.pop %v3093
    %v3109 = vmul.f32 1.0, %v3108
    %vm3110 = vcmask 7168
    %3111 = vst.msk [vmem:[%s9] sm:$0xff] %vm3110, %v3095
    %3112 = vst.msk [vmem:[%s9 + $0x8] sm:$0xff] %vm3110, %v3097
    %3113 = vst.msk [vmem:[%s9 + $0x10] sm:$0xff] %vm3110, %v3099
    %3114 = vst.msk [vmem:[%s9 + $0x18] sm:$0xff] %vm3110, %v3101
    %3115 = vst.msk [vmem:[%s9 + $0x20] sm:$0xff] %vm3110, %v3103
    %3116 = vst.msk [vmem:[%s9 + $0x28] sm:$0xff] %vm3110, %v3105
    %3117 = vst.msk [vmem:[%s9 + $0x30] sm:$0xff] %vm3110, %v3107
    %3118 = vst.msk [vmem:[%s9 + $0x38] sm:$0xff] %vm3110, %v3109
    // Predicated region
    $region54: #{tpu_custom_call.1} parent=1 // pred_check
      _
    $region55: #{tpu_custom_call.1} parent=1 // pred_check_branch
      %3120 = sbr.rel (0) target = $region57
    $region56: #{tpu_custom_call.1} parent=1 // pred_region
      _
    $region57: #{tpu_custom_call.1} parent=1 // pred_fallthru
      _
    // Predicated region
    $region58: #{tpu_custom_call.1} parent=1 // pred_check
      _
    $region59: #{tpu_custom_call.1} parent=1 // pred_check_branch
      %3122 = sbr.rel (0) target = $region61
    $region60: #{tpu_custom_call.1} parent=1 // pred_region
      _
    $region61: #{tpu_custom_call.1} parent=1 // pred_fallthru
      _
    %3123 = vsyncpa [#allocation4], 1
    %3124 = vsyncpa [#allocation6], 1
    %3125 = vsyncpa [#allocation9], 1

</llo_original>
